<compile_context>
chip_gen: v6e
topology: v6e:2x2x1
jax: 0.10.0
libtpu: 0.0.40
codegen_flags: <defaults>
</compile_context>

<pallas_src>
import functools

import jax
import jax.numpy as jnp
from jax.experimental import pallas as pl
from jax.experimental.pallas import tpu as pltpu

# ----------------- small config (consistent with the module's constructor) -----------------
ENCODING_DIM = 16
NUM_LAYERS = 2
EMBED_DIM = 32
EMBED_2D_DIM = 16
NUM_HEADS = 4
MLP_DIM = 4 * EMBED_DIM
BEAD_EMBED_DIM = 8
POS_EMBED_DIM = 16
POS_EMBED_R = 4
DMAP_MIN = 0.0
DMAP_CUTOFF = 10.0
NUM_GAUSSIANS = 32
NORM_EPS = 1e-5

# Scoped VMEM budget: generous vs. the default, still below v7x's 64 MiB physical VMEM
# (raise toward ~96 MiB on v5e/v6e 128-MiB parts if L grows and the untiled path is kept).
VMEM_LIMIT = 48 * 1024 * 1024


# ============================== fused encoder kernel ==============================

def _encoder_kernel(
    x_ref, tf_ref, ae_ref,                                    # per-batch inputs
    off_ref, wefft_ref, pbiast_ref,                           # batch-invariant bias inputs
    win1_ref, bin1_ref, win2_ref, bin2_ref,                   # project_input
    wada_ref, bada_ref,                                       # per-layer adaLN conditioning
    wqkv_ref, bqkv_ref, wo_ref, bo_ref,                       # per-layer attention
    wm1_ref, bm1_ref, wm2_ref, bm2_ref,                       # per-layer MLP
    wout1_ref, bout1_ref, wout2_ref, bout2_ref,               # out_module
    enc_ref,                                                  # output
    s_sc, bias_sc,                                            # VMEM scratch
    *, coeff, eps, scale, L, E, H, NL):
    """One (batch, layer) grid step; residual stream + 2-D bias stay resident in VMEM."""
    layer = pl.program_id(1)
    Dh = E // H

    def mm(a, w):
        # bf16 MXU operands, f32 accumulation (weights are pre-cast to bf16 in the wrapper).
        return jnp.dot(a.astype(jnp.bfloat16), w, preferred_element_type=jnp.float32)

    def adanorm(u, g, b):                                     # f32 VPU math (v5e-safe)
        mu = jnp.mean(u, axis=-1, keepdims=True)
        var = jnp.mean((u - mu) ** 2, axis=-1, keepdims=True)
        return (u - mu) * jax.lax.rsqrt(var + eps) * g + b

    # ---------------- per-batch prologue (runs only at layer 0) ----------------
    @pl.when(layer == 0)
    def _prologue():
        # project_input: Linear -> ReLU -> Linear on torsion features (fused, stays in VMEM).
        h0 = jnp.maximum(mm(tf_ref[0], win1_ref[...]) + bin1_ref[...], 0.0)
        s_sc[...] = mm(h0, win2_ref[...]) + bin2_ref[...]

        # Ca-Ca distances from the (L, 3) coordinate tile, all f32 (no bf16 dmap, no (L,L)
        # HBM load): d^2 = |x_i|^2 + |x_j|^2 - 2 x_i.x_j, with |x_i|^2 read off diag(gram).
        xc = x_ref[0]                                         # (L, 3) f32
        gram = jax.lax.dot_general(xc, xc, (((1,), (1,)), ((), ())),
                                   preferred_element_type=jnp.float32)     # (L, L)
        ri = jax.lax.broadcasted_iota(jnp.int32, (L, L), 0)
        ci = jax.lax.broadcasted_iota(jnp.int32, (L, L), 1)
        diag = jnp.where(ri == ci, gram, 0.0)
        n_col = jnp.sum(diag, axis=1, keepdims=True)          # (L, 1)
        n_row = jnp.sum(diag, axis=0, keepdims=True)          # (1, L)
        d = jnp.sqrt(jnp.maximum(n_col + n_row - 2.0 * gram, 0.0))          # (L, L) f32

        # RBF + folded project_dmap/w2d bias for ALL layers & heads, computed ONCE per
        # batch element; the G-reduction runs on the MXU (not a VPU broadcast-reduce):
        #   bias[c, i, j] = sum_g wefft[c, g] * exp(coeff*(d_ij - off_g)^2) + pbias[c, i, j]
        off = off_ref[...]                                    # (G, 1)
        wefft = wefft_ref[...]                                # (C, G) f32
        for i in range(L):                                    # static query-row loop (no reshapes)
            dd = d[i:i + 1, :] - off                          # (G, L)
            rbf_i = jnp.exp(coeff * dd * dd)                  # (G, L)  -- EUP, once per batch
            bias_sc[:, i, :] = (
                jnp.dot(wefft, rbf_i, preferred_element_type=jnp.float32)
                + pbiast_ref[:, i, :])
        # TODO(synk): for L >~ 512, re-tile this prologue and the attention below
        # flash-style over query blocks and add that block axis to the grid (bounds live
        # VMEM on v7x's 64 MiB and feeds both TensorCores when B is small).

    # ---------------- adaLN conditioning for this layer (tiny lane-dense matmul) ----------------
    cond = mm(ae_ref[0], wada_ref[0]) + bada_ref[0]           # (L, 4E)
    g1 = 1.0 + cond[:, 0:E]
    b1 = cond[:, E:2 * E]
    g2 = 1.0 + cond[:, 2 * E:3 * E]
    b2 = cond[:, 3 * E:4 * E]

    # ---------------- attention sub-block (pre-norm adaLN) ----------------
    s = s_sc[...]                                             # (L, E) residual stream
    sn = adanorm(s, g1, b1)
    qkv = mm(sn, wqkv_ref[0]) + bqkv_ref[0]                   # fused QKV: one MXU pass (L, 3E)
    q = qkv[:, 0:E]
    k = qkv[:, E:2 * E]
    v = qkv[:, 2 * E:3 * E]
    wo = wo_ref[0]                                            # (E, E) bf16

    acc = jnp.zeros((L, E), jnp.float32)
    for h in range(H):                                        # H small & static -> unrolled
        qh = q[:, h * Dh:(h + 1) * Dh]
        kh = k[:, h * Dh:(h + 1) * Dh]
        vh = v[:, h * Dh:(h + 1) * Dh]
        sc = jax.lax.dot_general(qh.astype(jnp.bfloat16), kh.astype(jnp.bfloat16),
                                 (((1,), (1,)), ((), ())),
                                 preferred_element_type=jnp.float32) * scale
        sc = sc + bias_sc[layer * H + h]                      # per-(layer, head) 2-D bias
        m = jnp.max(sc, axis=-1, keepdims=True)
        p = jnp.exp(sc - m)
        inv = 1.0 / jnp.sum(p, axis=-1, keepdims=True)        # exact (tiny), matches f32 reference
        vt = mm(vh, wo[h * Dh:(h + 1) * Dh, :])               # fold Wo into V: (L, E)
        acc = acc + mm(p, vt.astype(jnp.bfloat16)) * inv      # normalize AFTER the PV matmul
    s = s + acc + bo_ref[0]

    # ---------------- MLP sub-block (pre-norm adaLN) ----------------
    sn2 = adanorm(s, g2, b2)
    hmid = jnp.maximum(mm(sn2, wm1_ref[0]) + bm1_ref[0], 0.0)
    s = s + mm(hmid, wm2_ref[0]) + bm2_ref[0]
    s_sc[...] = s

    # ---------------- out_module fused into the last layer step ----------------
    @pl.when(layer == NL - 1)
    def _epilogue():
        ho = jnp.maximum(mm(s, wout1_ref[...]) + bout1_ref[...], 0.0)
        enc_ref[0] = mm(ho, wout2_ref[...]) + bout2_ref[...]


# ============================== geometry glue (plain JAX) ==============================

def chain_dihedrals(x):
    # x: (B, L, 3) -> (B, L-3)
    b0 = -(x[:, 1:-2] - x[:, 0:-3])
    b1 = x[:, 2:-1] - x[:, 1:-2]
    b2 = x[:, 3:] - x[:, 2:-1]
    b0xb1 = jnp.cross(b0, b1)
    b1xb2 = jnp.cross(b2, b1)
    b0xb1_x_b1xb2 = jnp.cross(b0xb1, b1xb2)
    y = jnp.sum(b0xb1_x_b1xb2 * b1, axis=2) / jnp.linalg.norm(b1, axis=2)
    xx = jnp.sum(b0xb1 * b1xb2, axis=2)
    return jnp.arctan2(y, xx)


def get_chain_torsion_features(x):
    t = chain_dihedrals(x)[:, :, None]                                   # (B, L-3, 1)
    t_f = jnp.concatenate([jnp.cos(t), jnp.sin(t), jnp.ones_like(t)], axis=2)
    t_f = jnp.pad(t_f, ((0, 0), (1, 2), (0, 0)))                         # pad(0,0,1,2)
    return t_f                                                           # (B, L, 3)


# ============================== parameters ==============================

def init_params(key):
    keys = iter(jax.random.split(key, 512))

    def nrm(shape, scale=0.05):
        return (scale * jax.random.normal(next(keys), shape)).astype(jnp.float32)

    G, E2, E = NUM_GAUSSIANS, EMBED_2D_DIM, EMBED_DIM
    Bd, Pd, H = BEAD_EMBED_DIM, POS_EMBED_DIM, NUM_HEADS

    offsets = jnp.linspace(DMAP_MIN, DMAP_CUTOFF, G).astype(jnp.float32)
    coeff = -0.5 / float(offsets[1] - offsets[0]) ** 2

    params = dict(
        rbf_offsets=offsets, rbf_coeff=coeff,
        w_dmap=nrm((G, E2)), b_dmap=nrm((E2,)),
        w_in1=nrm((3, E)), b_in1=nrm((E,)),
        w_in2=nrm((E, E)), b_in2=nrm((E,)),
        bead_table=nrm((20, Bd)),
        w_pos=nrm((2 * POS_EMBED_R + 1, Pd)), b_pos=nrm((Pd,)),
        w_out1=nrm((E, E)), b_out1=nrm((E,)),
        w_out2=nrm((E, ENCODING_DIM)), b_out2=nrm((ENCODING_DIM,)),
        layers=[],
    )
    for _ in range(NUM_LAYERS):
        params['layers'].append(dict(
            w_ada1=nrm((Bd, 2 * E)), b_ada1=nrm((2 * E,)),
            wq=nrm((E, E)), bq=nrm((E,)),
            wk=nrm((E, E)), bk=nrm((E,)),
            wv=nrm((E, E)), bv=nrm((E,)),
            wo=nrm((E, E)), bo=nrm((E,)),
            w2d=nrm((E2 + Pd, H)), b2d=nrm((H,)),
            w_ada2=nrm((Bd, 2 * E)), b_ada2=nrm((2 * E,)),
            wm1=nrm((E, MLP_DIM)), bm1=nrm((MLP_DIM,)),
            wm2=nrm((MLP_DIM, E)), bm2=nrm((E,)),
        ))
    return params


# ============================== model ==============================

def ca_transformer_encoder_forward(x, a, params):
    """x: (B, L, 3) float32 Ca coordinates; a: (B, L) int32 bead types in [0, 20)."""
    # TODO(synk): AE_IdpGAN_TransformerBlock source was not provided; this reconstructs a
    # pre-norm block with 'adanorm' conditioning on bead embeddings (g = 1 + cond) and an
    # additive per-head attention bias built from concat(z, p) ('concat' inject, use_bias_2d).
    B, L, _ = x.shape
    E, H, NL, G = EMBED_DIM, NUM_HEADS, NUM_LAYERS, NUM_GAUSSIANS
    E2, Pd, Bd = EMBED_2D_DIM, POS_EMBED_DIM, BEAD_EMBED_DIM
    M, ENC = MLP_DIM, ENCODING_DIM
    C = NL * H
    bf16, f32 = jnp.bfloat16, jnp.float32

    # ---- O(L) geometry / embedding features ----
    t_f = get_chain_torsion_features(x)                                  # (B, L, 3)
    a_e = jnp.take(params['bead_table'], a, axis=0)                      # (B, L, Bd)

    # ---- batch-invariant folds (const-folded under jit) ----
    idx = jnp.arange(L)
    rel = jnp.clip(idx[:, None] - idx[None, :], -POS_EMBED_R, POS_EMBED_R) + POS_EMBED_R
    onehot = jax.nn.one_hot(rel, 2 * POS_EMBED_R + 1, dtype=f32).reshape(L * L, -1)
    p_feat = onehot @ params['w_pos'] + params['b_pos']                  # (L*L, Pd)

    # project_dmap is a single Linear (use_dmap_mlp=False), so it folds EXACTLY into the
    # per-layer 2-D bias:  bias = rbf @ (w_dmap @ w2d_z) + (b_dmap @ w2d_z + p @ w2d_p + b2d)
    wefft, pbiast = [], []
    for lp in params['layers']:
        w2d_z, w2d_p = lp['w2d'][:E2], lp['w2d'][E2:]
        wefft.append((params['w_dmap'] @ w2d_z).T)                       # (H, G)
        pb = p_feat @ w2d_p + params['b_dmap'] @ w2d_z + lp['b2d']       # (L*L, H)
        pbiast.append(pb.T.reshape(H, L, L))
    wefft = jnp.concatenate(wefft, axis=0)                               # (C, G)
    pbiast = jnp.concatenate(pbiast, axis=0)                             # (C, L, L)
    off = params['rbf_offsets'].reshape(G, 1)

    # ---- stacked per-layer weights (bf16 MXU operands, f32 biases) ----
    layers = params['layers']
    stack = lambda key: jnp.stack([lp[key] for lp in layers])
    wada = jnp.stack([jnp.concatenate([lp['w_ada1'], lp['w_ada2']], axis=1)
                      for lp in layers]).astype(bf16)                    # (NL, Bd, 4E)
    bada = jnp.stack([jnp.concatenate([lp['b_ada1'], lp['b_ada2']])[None, :]
                      for lp in layers])                                 # (NL, 1, 4E)
    wqkv = jnp.stack([jnp.concatenate([lp['wq'], lp['wk'], lp['wv']], axis=1)
                      for lp in layers]).astype(bf16)                    # (NL, E, 3E)
    bqkv = jnp.stack([jnp.concatenate([lp['bq'], lp['bk'], lp['bv']])[None, :]
                      for lp in layers])                                 # (NL, 1, 3E)
    wo = stack('wo').astype(bf16)                                        # (NL, E, E)
    bo = stack('bo')[:, None, :]                                         # (NL, 1, E)
    wm1 = stack('wm1').astype(bf16)                                      # (NL, E, M)
    bm1 = stack('bm1')[:, None, :]
    wm2 = stack('wm2').astype(bf16)                                      # (NL, M, E)
    bm2 = stack('bm2')[:, None, :]

    win1 = params['w_in1'].astype(bf16); bin1 = params['b_in1'][None, :]
    win2 = params['w_in2'].astype(bf16); bin2 = params['b_in2'][None, :]
    wout1 = params['w_out1'].astype(bf16); bout1 = params['b_out1'][None, :]
    wout2 = params['w_out2'].astype(bf16); bout2 = params['b_out2'][None, :]

    # ---- block specs ----
    per_b = lambda b, l: (b, 0, 0)
    per_l = lambda b, l: (l, 0, 0)

    def const2(shape):   # batch-invariant operand: constant block index, single-buffered
        return pl.BlockSpec(shape, lambda b, l: (0, 0), pipeline_mode=pl.Buffered(1))

    def const3(shape):
        return pl.BlockSpec(shape, lambda b, l: (0, 0, 0), pipeline_mode=pl.Buffered(1))

    in_specs = [
        pl.BlockSpec((1, L, 3), per_b),            # x (Ca coordinates)
        pl.BlockSpec((1, L, 3), per_b),            # torsion features
        pl.BlockSpec((1, L, Bd), per_b),           # bead embeddings
        const2((G, 1)),                            # RBF offsets
        const2((C, G)),                            # folded (w_dmap @ w2d_z)^T, all layers/heads
        const3((C, L, L)),                         # positional / constant bias part
        const2((3, E)), const2((1, E)),            # project_input layer 1
        const2((E, E)), const2((1, E)),            # project_input layer 2
        pl.BlockSpec((1, Bd, 4 * E), per_l),       # adaLN weights (this layer)
        pl.BlockSpec((1, 1, 4 * E), per_l),
        pl.BlockSpec((1, E, 3 * E), per_l),        # fused Wqkv
        pl.BlockSpec((1, 1, 3 * E), per_l),
        pl.BlockSpec((1, E, E), per_l),            # Wo
        pl.BlockSpec((1, 1, E), per_l),
        pl.BlockSpec((1, E, M), per_l),            # MLP
        pl.BlockSpec((1, 1, M), per_l),
        pl.BlockSpec((1, M, E), per_l),
        pl.BlockSpec((1, 1, E), per_l),
        const2((E, E)), const2((1, E)),            # out_module layer 1
        const2((E, ENC)), const2((1, ENC)),        # out_module layer 2
    ]

    kern = functools.partial(
        _encoder_kernel, coeff=float(params['rbf_coeff']), eps=NORM_EPS,
        scale=float((E // H) ** -0.5), L=L, E=E, H=H, NL=NL)

    return pl.pallas_call(
        kern,
        out_shape=jax.ShapeDtypeStruct((B, L, ENC), f32),
        grid=(B, NL),
        in_specs=in_specs,
        out_specs=pl.BlockSpec((1, L, ENC), per_b),
        scratch_shapes=[pltpu.VMEM((L, E), f32),       # residual stream (persists across layers)
                        pltpu.VMEM((C, L, L), f32)],   # per-(layer, head) attention bias
        compiler_params=pltpu.CompilerParams(
            dimension_semantics=("parallel", "arbitrary"),   # batch parallel, layers sequential
            vmem_limit_bytes=VMEM_LIMIT),
    )(x, t_f, a_e, off, wefft, pbiast,
      win1, bin1, win2, bin2,
      wada, bada, wqkv, bqkv, wo, bo, wm1, bm1, wm2, bm2,
      wout1, bout1, wout2, bout2)


# ============================== main ==============================

if __name__ == "__main__":
    key = jax.random.PRNGKey(0)
    kx, ka, kp = jax.random.split(key, 3)

    B, L = 2, 8
    x = 3.0 * jax.random.normal(kx, (B, L, 3), dtype=jnp.float32)        # Ca coordinates
    a = jax.random.randint(ka, (B, L), 0, 20)                            # bead / residue types

    params = init_params(kp)
    fwd = jax.jit(lambda xx, aa: ca_transformer_encoder_forward(xx, aa, params))
    enc = fwd(x, a)
    jax.block_until_ready(enc)

    assert enc.shape == (B, L, ENCODING_DIM)
    assert bool(jnp.all(jnp.isfinite(enc)))
    print("KERNEL_OK")
</pallas_src>

<mosaic_0001>
module attributes {stable_mosaic.version = 11 : i64} {
  func.func @_encoder_kernel(%arg0: i32, %arg1: i32, %arg2: memref<1x8x3xf32, #tpu.memory_space<vmem>>, %arg3: memref<1x8x3xf32, #tpu.memory_space<vmem>>, %arg4: memref<1x8x8xf32, #tpu.memory_space<vmem>>, %arg5: memref<32x1xf32, #tpu.memory_space<vmem>>, %arg6: memref<8x32xf32, #tpu.memory_space<vmem>>, %arg7: memref<8x8x8xf32, #tpu.memory_space<vmem>>, %arg8: memref<3x32xbf16, #tpu.memory_space<vmem>>, %arg9: memref<1x32xf32, #tpu.memory_space<vmem>>, %arg10: memref<32x32xbf16, #tpu.memory_space<vmem>>, %arg11: memref<1x32xf32, #tpu.memory_space<vmem>>, %arg12: memref<1x8x128xbf16, #tpu.memory_space<vmem>>, %arg13: memref<1x1x128xf32, #tpu.memory_space<vmem>>, %arg14: memref<1x32x96xbf16, #tpu.memory_space<vmem>>, %arg15: memref<1x1x96xf32, #tpu.memory_space<vmem>>, %arg16: memref<1x32x32xbf16, #tpu.memory_space<vmem>>, %arg17: memref<1x1x32xf32, #tpu.memory_space<vmem>>, %arg18: memref<1x32x128xbf16, #tpu.memory_space<vmem>>, %arg19: memref<1x1x128xf32, #tpu.memory_space<vmem>>, %arg20: memref<1x128x32xbf16, #tpu.memory_space<vmem>>, %arg21: memref<1x1x32xf32, #tpu.memory_space<vmem>>, %arg22: memref<32x32xbf16, #tpu.memory_space<vmem>>, %arg23: memref<1x32xf32, #tpu.memory_space<vmem>>, %arg24: memref<32x16xbf16, #tpu.memory_space<vmem>>, %arg25: memref<1x16xf32, #tpu.memory_space<vmem>>, %arg26: memref<1x8x16xf32, #tpu.memory_space<vmem>>, %arg27: memref<8x32xf32, #tpu.memory_space<vmem>>, %arg28: memref<8x8x8xf32, #tpu.memory_space<vmem>>) attributes {dimension_semantics = [#tpu.dimension_semantics<parallel>, #tpu.dimension_semantics<arbitrary>], iteration_bounds = array<i64: 2, 2>, scalar_prefetch = 0 : i64, scratch_operands = 2 : i64, tpu.core_type = #tpu.core_type<tc>, window_params = [{transform_indices = @transform_0, window_bounds = array<i64: 1, 8, 3>}, {transform_indices = @transform_1, window_bounds = array<i64: 1, 8, 3>}, {transform_indices = @transform_2, window_bounds = array<i64: 1, 8, 8>}, {pipeline_mode = #tpu.pipeline_mode<synchronous>, transform_indices = @transform_3, window_bounds = array<i64: 32, 1>}, {pipeline_mode = #tpu.pipeline_mode<synchronous>, transform_indices = @transform_4, window_bounds = array<i64: 8, 32>}, {pipeline_mode = #tpu.pipeline_mode<synchronous>, transform_indices = @transform_5, window_bounds = array<i64: 8, 8, 8>}, {pipeline_mode = #tpu.pipeline_mode<synchronous>, transform_indices = @transform_6, window_bounds = array<i64: 3, 32>}, {pipeline_mode = #tpu.pipeline_mode<synchronous>, transform_indices = @transform_7, window_bounds = array<i64: 1, 32>}, {pipeline_mode = #tpu.pipeline_mode<synchronous>, transform_indices = @transform_8, window_bounds = array<i64: 32, 32>}, {pipeline_mode = #tpu.pipeline_mode<synchronous>, transform_indices = @transform_9, window_bounds = array<i64: 1, 32>}, {transform_indices = @transform_10, window_bounds = array<i64: 1, 8, 128>}, {transform_indices = @transform_11, window_bounds = array<i64: 1, 1, 128>}, {transform_indices = @transform_12, window_bounds = array<i64: 1, 32, 96>}, {transform_indices = @transform_13, window_bounds = array<i64: 1, 1, 96>}, {transform_indices = @transform_14, window_bounds = array<i64: 1, 32, 32>}, {transform_indices = @transform_15, window_bounds = array<i64: 1, 1, 32>}, {transform_indices = @transform_16, window_bounds = array<i64: 1, 32, 128>}, {transform_indices = @transform_17, window_bounds = array<i64: 1, 1, 128>}, {transform_indices = @transform_18, window_bounds = array<i64: 1, 128, 32>}, {transform_indices = @transform_19, window_bounds = array<i64: 1, 1, 32>}, {pipeline_mode = #tpu.pipeline_mode<synchronous>, transform_indices = @transform_20, window_bounds = array<i64: 32, 32>}, {pipeline_mode = #tpu.pipeline_mode<synchronous>, transform_indices = @transform_21, window_bounds = array<i64: 1, 32>}, {pipeline_mode = #tpu.pipeline_mode<synchronous>, transform_indices = @transform_22, window_bounds = array<i64: 32, 16>}, {pipeline_mode = #tpu.pipeline_mode<synchronous>, transform_indices = @transform_23, window_bounds = array<i64: 1, 16>}, {transform_indices = @transform_24, window_bounds = array<i64: 1, 8, 16>}]} {
    %c0_i32 = arith.constant 0 : i32
    %0 = arith.cmpi eq, %arg1, %c0_i32 : i32
    %1 = arith.extui %0 : i1 to i32
    %c0_i32_0 = arith.constant 0 : i32
    %2 = arith.cmpi ne, %1, %c0_i32_0 : i32
    scf.if %2 {
      %c0_96 = arith.constant 0 : index
      %c0_97 = arith.constant 0 : index
      %c0_98 = arith.constant 0 : index
      %232 = vector.load %arg3[%c0_96, %c0_97, %c0_98] : memref<1x8x3xf32, #tpu.memory_space<vmem>>, vector<1x8x3xf32>
      %233 = vector.shape_cast %232 : vector<1x8x3xf32> to vector<8x3xf32>
      %c0_99 = arith.constant 0 : index
      %c0_100 = arith.constant 0 : index
      %234 = vector.load %arg8[%c0_99, %c0_100] : memref<3x32xbf16, #tpu.memory_space<vmem>>, vector<3x32xbf16>
      %235 = arith.truncf %233 : vector<8x3xf32> to vector<8x3xbf16>
      %cst_101 = arith.constant dense<0.000000e+00> : vector<8x32xf32>
      %236 = tpu.matmul %235, %234, %cst_101 {dimension_numbers = #tpu.dot_dimension_numbers<[1], [0], [0], [1], [0, 0, 1, 1], [], []>} : vector<8x3xbf16>, vector<3x32xbf16>, vector<8x32xf32> -> vector<8x32xf32>
      %c0_102 = arith.constant 0 : index
      %c0_103 = arith.constant 0 : index
      %237 = vector.load %arg9[%c0_102, %c0_103] : memref<1x32xf32, #tpu.memory_space<vmem>>, vector<1x32xf32>
      %238 = vector.broadcast %237 : vector<1x32xf32> to vector<8x32xf32>
      %239 = arith.addf %236, %238 : vector<8x32xf32>
      %cst_104 = arith.constant 0.000000e+00 : f32
      %240 = vector.broadcast %cst_104 : f32 to vector<8x32xf32>
      %241 = arith.maximumf %239, %240 : vector<8x32xf32>
      %c0_105 = arith.constant 0 : index
      %c0_106 = arith.constant 0 : index
      %242 = vector.load %arg10[%c0_105, %c0_106] : memref<32x32xbf16, #tpu.memory_space<vmem>>, vector<32x32xbf16>
      %243 = arith.truncf %241 : vector<8x32xf32> to vector<8x32xbf16>
      %cst_107 = arith.constant dense<0.000000e+00> : vector<8x32xf32>
      %244 = tpu.matmul %243, %242, %cst_107 {dimension_numbers = #tpu.dot_dimension_numbers<[1], [0], [0], [1], [0, 0, 1, 1], [], []>} : vector<8x32xbf16>, vector<32x32xbf16>, vector<8x32xf32> -> vector<8x32xf32>
      %c0_108 = arith.constant 0 : index
      %c0_109 = arith.constant 0 : index
      %245 = vector.load %arg11[%c0_108, %c0_109] : memref<1x32xf32, #tpu.memory_space<vmem>>, vector<1x32xf32>
      %246 = vector.broadcast %245 : vector<1x32xf32> to vector<8x32xf32>
      %247 = arith.addf %244, %246 : vector<8x32xf32>
      %c0_110 = arith.constant 0 : index
      %c0_111 = arith.constant 0 : index
      %248 = vector.load %arg27[%c0_110, %c0_111] : memref<8x32xf32, #tpu.memory_space<vmem>>, vector<8x32xf32>
      tpu.vector_store %arg27[%c0_110, %c0_111], %247 {strides = array<i32>} : memref<8x32xf32, #tpu.memory_space<vmem>>, vector<8x32xf32>,
      %c0_112 = arith.constant 0 : index
      %c0_113 = arith.constant 0 : index
      %c0_114 = arith.constant 0 : index
      %249 = vector.load %arg2[%c0_112, %c0_113, %c0_114] : memref<1x8x3xf32, #tpu.memory_space<vmem>>, vector<1x8x3xf32>
      %250 = vector.shape_cast %249 : vector<1x8x3xf32> to vector<8x3xf32>
      %cst_115 = arith.constant dense<0.000000e+00> : vector<8x8xf32>
      %251 = tpu.matmul %250, %250, %cst_115 {dimension_numbers = #tpu.dot_dimension_numbers<[1], [1], [0], [0], [0, 0, 1, 0], [], []>} : vector<8x3xf32>, vector<8x3xf32>, vector<8x8xf32> -> vector<8x8xf32>
      %252 = tpu.iota {dimensions = array<i32: 0>} : vector<8x8xi32>
      %253 = tpu.iota {dimensions = array<i32: 1>} : vector<8x8xi32>
      %254 = arith.cmpi eq, %252, %253 : vector<8x8xi32>
      %cst_116 = arith.constant 0.000000e+00 : f32
      %255 = vector.broadcast %cst_116 : f32 to vector<8x8xf32>
      %256 = arith.select %254, %251, %255 : vector<8x8xi1>, vector<8x8xf32>
      %cst_117 = arith.constant dense<0.000000e+00> : vector<8xf32>
      %257 = vector.multi_reduction <add>, %256, %cst_117 [1] : vector<8x8xf32> to vector<8xf32>
      %258 = vector.shape_cast %257 : vector<8xf32> to vector<8x1xf32>
      %cst_118 = arith.constant dense<0.000000e+00> : vector<8xf32>
      %259 = vector.multi_reduction <add>, %256, %cst_118 [0] : vector<8x8xf32> to vector<8xf32>
      %260 = vector.shape_cast %259 : vector<8xf32> to vector<1x8xf32>
      %261 = vector.broadcast %258 : vector<8x1xf32> to vector<8x8xf32>
      %262 = vector.broadcast %260 : vector<1x8xf32> to vector<8x8xf32>
      %263 = arith.addf %261, %262 : vector<8x8xf32>
      %cst_119 = arith.constant 2.000000e+00 : f32
      %264 = vector.broadcast %cst_119 : f32 to vector<8x8xf32>
      %265 = arith.mulf %264, %251 : vector<8x8xf32>
      %266 = arith.subf %263, %265 : vector<8x8xf32>
      %cst_120 = arith.constant 0.000000e+00 : f32
      %267 = vector.broadcast %cst_120 : f32 to vector<8x8xf32>
      %268 = arith.maximumf %266, %267 : vector<8x8xf32>
      %269 = math.sqrt %268 : vector<8x8xf32>
      %c0_121 = arith.constant 0 : index
      %c0_122 = arith.constant 0 : index
      %270 = vector.load %arg5[%c0_121, %c0_122] : memref<32x1xf32, #tpu.memory_space<vmem>>, vector<32x1xf32>
      %c0_123 = arith.constant 0 : index
      %c0_124 = arith.constant 0 : index
      %271 = vector.load %arg6[%c0_123, %c0_124] : memref<8x32xf32, #tpu.memory_space<vmem>>, vector<8x32xf32>
      %272 = vector.extract_strided_slice %269 {offsets = [0, 0], sizes = [1, 8], strides = [1, 1]} : vector<8x8xf32> to vector<1x8xf32>
      %273 = vector.broadcast %272 : vector<1x8xf32> to vector<32x8xf32>
      %274 = vector.broadcast %270 : vector<32x1xf32> to vector<32x8xf32>
      %275 = arith.subf %273, %274 : vector<32x8xf32>
      %cst_125 = arith.constant -4.80500031 : f32
      %276 = vector.broadcast %cst_125 : f32 to vector<32x8xf32>
      %277 = arith.mulf %276, %275 : vector<32x8xf32>
      %278 = arith.mulf %277, %275 : vector<32x8xf32>
      %279 = math.exp %278 : vector<32x8xf32>
      %cst_126 = arith.constant dense<0.000000e+00> : vector<8x8xf32>
      %280 = tpu.matmul %271, %279, %cst_126 {dimension_numbers = #tpu.dot_dimension_numbers<[1], [0], [0], [1], [0, 0, 1, 1], [], []>} : vector<8x32xf32>, vector<32x8xf32>, vector<8x8xf32> -> vector<8x8xf32>
      %c0_127 = arith.constant 0 : index
      %c0_128 = arith.constant 0 : index
      %c0_129 = arith.constant 0 : index
      %281 = vector.load %arg7[%c0_127, %c0_128, %c0_129] : memref<8x8x8xf32, #tpu.memory_space<vmem>>, vector<8x1x8xf32>
      %282 = vector.shape_cast %281 : vector<8x1x8xf32> to vector<8x8xf32>
      %283 = arith.addf %280, %282 : vector<8x8xf32>
      %c0_130 = arith.constant 0 : index
      %c0_131 = arith.constant 0 : index
      %c0_132 = arith.constant 0 : index
      %284 = vector.load %arg28[%c0_130, %c0_131, %c0_132] : memref<8x8x8xf32, #tpu.memory_space<vmem>>, vector<8x1x8xf32>
      %285 = vector.shape_cast %284 : vector<8x1x8xf32> to vector<8x8xf32>
      %286 = vector.shape_cast %283 : vector<8x8xf32> to vector<8x1x8xf32>
      tpu.vector_store %arg28[%c0_130, %c0_131, %c0_132], %286 {strides = array<i32>} : memref<8x8x8xf32, #tpu.memory_space<vmem>>, vector<8x1x8xf32>,
      %287 = vector.extract_strided_slice %269 {offsets = [1, 0], sizes = [1, 8], strides = [1, 1]} : vector<8x8xf32> to vector<1x8xf32>
      %288 = vector.broadcast %287 : vector<1x8xf32> to vector<32x8xf32>
      %289 = vector.broadcast %270 : vector<32x1xf32> to vector<32x8xf32>
      %290 = arith.subf %288, %289 : vector<32x8xf32>
      %cst_133 = arith.constant -4.80500031 : f32
      %291 = vector.broadcast %cst_133 : f32 to vector<32x8xf32>
      %292 = arith.mulf %291, %290 : vector<32x8xf32>
      %293 = arith.mulf %292, %290 : vector<32x8xf32>
      %294 = math.exp %293 : vector<32x8xf32>
      %cst_134 = arith.constant dense<0.000000e+00> : vector<8x8xf32>
      %295 = tpu.matmul %271, %294, %cst_134 {dimension_numbers = #tpu.dot_dimension_numbers<[1], [0], [0], [1], [0, 0, 1, 1], [], []>} : vector<8x32xf32>, vector<32x8xf32>, vector<8x8xf32> -> vector<8x8xf32>
      %c0_135 = arith.constant 0 : index
      %c1 = arith.constant 1 : index
      %c0_136 = arith.constant 0 : index
      %296 = vector.load %arg7[%c0_135, %c1, %c0_136] : memref<8x8x8xf32, #tpu.memory_space<vmem>>, vector<8x1x8xf32>
      %297 = vector.shape_cast %296 : vector<8x1x8xf32> to vector<8x8xf32>
      %298 = arith.addf %295, %297 : vector<8x8xf32>
      %c0_137 = arith.constant 0 : index
      %c1_138 = arith.constant 1 : index
      %c0_139 = arith.constant 0 : index
      %299 = vector.load %arg28[%c0_137, %c1_138, %c0_139] : memref<8x8x8xf32, #tpu.memory_space<vmem>>, vector<8x1x8xf32>
      %300 = vector.shape_cast %299 : vector<8x1x8xf32> to vector<8x8xf32>
      %301 = vector.shape_cast %298 : vector<8x8xf32> to vector<8x1x8xf32>
      tpu.vector_store %arg28[%c0_137, %c1_138, %c0_139], %301 {strides = array<i32>} : memref<8x8x8xf32, #tpu.memory_space<vmem>>, vector<8x1x8xf32>,
      %302 = vector.extract_strided_slice %269 {offsets = [2, 0], sizes = [1, 8], strides = [1, 1]} : vector<8x8xf32> to vector<1x8xf32>
      %303 = vector.broadcast %302 : vector<1x8xf32> to vector<32x8xf32>
      %304 = vector.broadcast %270 : vector<32x1xf32> to vector<32x8xf32>
      %305 = arith.subf %303, %304 : vector<32x8xf32>
      %cst_140 = arith.constant -4.80500031 : f32
      %306 = vector.broadcast %cst_140 : f32 to vector<32x8xf32>
      %307 = arith.mulf %306, %305 : vector<32x8xf32>
      %308 = arith.mulf %307, %305 : vector<32x8xf32>
      %309 = math.exp %308 : vector<32x8xf32>
      %cst_141 = arith.constant dense<0.000000e+00> : vector<8x8xf32>
      %310 = tpu.matmul %271, %309, %cst_141 {dimension_numbers = #tpu.dot_dimension_numbers<[1], [0], [0], [1], [0, 0, 1, 1], [], []>} : vector<8x32xf32>, vector<32x8xf32>, vector<8x8xf32> -> vector<8x8xf32>
      %c0_142 = arith.constant 0 : index
      %c2 = arith.constant 2 : index
      %c0_143 = arith.constant 0 : index
      %311 = vector.load %arg7[%c0_142, %c2, %c0_143] : memref<8x8x8xf32, #tpu.memory_space<vmem>>, vector<8x1x8xf32>
      %312 = vector.shape_cast %311 : vector<8x1x8xf32> to vector<8x8xf32>
      %313 = arith.addf %310, %312 : vector<8x8xf32>
      %c0_144 = arith.constant 0 : index
      %c2_145 = arith.constant 2 : index
      %c0_146 = arith.constant 0 : index
      %314 = vector.load %arg28[%c0_144, %c2_145, %c0_146] : memref<8x8x8xf32, #tpu.memory_space<vmem>>, vector<8x1x8xf32>
      %315 = vector.shape_cast %314 : vector<8x1x8xf32> to vector<8x8xf32>
      %316 = vector.shape_cast %313 : vector<8x8xf32> to vector<8x1x8xf32>
      tpu.vector_store %arg28[%c0_144, %c2_145, %c0_146], %316 {strides = array<i32>} : memref<8x8x8xf32, #tpu.memory_space<vmem>>, vector<8x1x8xf32>,
      %317 = vector.extract_strided_slice %269 {offsets = [3, 0], sizes = [1, 8], strides = [1, 1]} : vector<8x8xf32> to vector<1x8xf32>
      %318 = vector.broadcast %317 : vector<1x8xf32> to vector<32x8xf32>
      %319 = vector.broadcast %270 : vector<32x1xf32> to vector<32x8xf32>
      %320 = arith.subf %318, %319 : vector<32x8xf32>
      %cst_147 = arith.constant -4.80500031 : f32
      %321 = vector.broadcast %cst_147 : f32 to vector<32x8xf32>
      %322 = arith.mulf %321, %320 : vector<32x8xf32>
      %323 = arith.mulf %322, %320 : vector<32x8xf32>
      %324 = math.exp %323 : vector<32x8xf32>
      %cst_148 = arith.constant dense<0.000000e+00> : vector<8x8xf32>
      %325 = tpu.matmul %271, %324, %cst_148 {dimension_numbers = #tpu.dot_dimension_numbers<[1], [0], [0], [1], [0, 0, 1, 1], [], []>} : vector<8x32xf32>, vector<32x8xf32>, vector<8x8xf32> -> vector<8x8xf32>
      %c0_149 = arith.constant 0 : index
      %c3 = arith.constant 3 : index
      %c0_150 = arith.constant 0 : index
      %326 = vector.load %arg7[%c0_149, %c3, %c0_150] : memref<8x8x8xf32, #tpu.memory_space<vmem>>, vector<8x1x8xf32>
      %327 = vector.shape_cast %326 : vector<8x1x8xf32> to vector<8x8xf32>
      %328 = arith.addf %325, %327 : vector<8x8xf32>
      %c0_151 = arith.constant 0 : index
      %c3_152 = arith.constant 3 : index
      %c0_153 = arith.constant 0 : index
      %329 = vector.load %arg28[%c0_151, %c3_152, %c0_153] : memref<8x8x8xf32, #tpu.memory_space<vmem>>, vector<8x1x8xf32>
      %330 = vector.shape_cast %329 : vector<8x1x8xf32> to vector<8x8xf32>
      %331 = vector.shape_cast %328 : vector<8x8xf32> to vector<8x1x8xf32>
      tpu.vector_store %arg28[%c0_151, %c3_152, %c0_153], %331 {strides = array<i32>} : memref<8x8x8xf32, #tpu.memory_space<vmem>>, vector<8x1x8xf32>,
      %332 = vector.extract_strided_slice %269 {offsets = [4, 0], sizes = [1, 8], strides = [1, 1]} : vector<8x8xf32> to vector<1x8xf32>
      %333 = vector.broadcast %332 : vector<1x8xf32> to vector<32x8xf32>
      %334 = vector.broadcast %270 : vector<32x1xf32> to vector<32x8xf32>
      %335 = arith.subf %333, %334 : vector<32x8xf32>
      %cst_154 = arith.constant -4.80500031 : f32
      %336 = vector.broadcast %cst_154 : f32 to vector<32x8xf32>
      %337 = arith.mulf %336, %335 : vector<32x8xf32>
      %338 = arith.mulf %337, %335 : vector<32x8xf32>
      %339 = math.exp %338 : vector<32x8xf32>
      %cst_155 = arith.constant dense<0.000000e+00> : vector<8x8xf32>
      %340 = tpu.matmul %271, %339, %cst_155 {dimension_numbers = #tpu.dot_dimension_numbers<[1], [0], [0], [1], [0, 0, 1, 1], [], []>} : vector<8x32xf32>, vector<32x8xf32>, vector<8x8xf32> -> vector<8x8xf32>
      %c0_156 = arith.constant 0 : index
      %c4 = arith.constant 4 : index
      %c0_157 = arith.constant 0 : index
      %341 = vector.load %arg7[%c0_156, %c4, %c0_157] : memref<8x8x8xf32, #tpu.memory_space<vmem>>, vector<8x1x8xf32>
      %342 = vector.shape_cast %341 : vector<8x1x8xf32> to vector<8x8xf32>
      %343 = arith.addf %340, %342 : vector<8x8xf32>
      %c0_158 = arith.constant 0 : index
      %c4_159 = arith.constant 4 : index
      %c0_160 = arith.constant 0 : index
      %344 = vector.load %arg28[%c0_158, %c4_159, %c0_160] : memref<8x8x8xf32, #tpu.memory_space<vmem>>, vector<8x1x8xf32>
      %345 = vector.shape_cast %344 : vector<8x1x8xf32> to vector<8x8xf32>
      %346 = vector.shape_cast %343 : vector<8x8xf32> to vector<8x1x8xf32>
      tpu.vector_store %arg28[%c0_158, %c4_159, %c0_160], %346 {strides = array<i32>} : memref<8x8x8xf32, #tpu.memory_space<vmem>>, vector<8x1x8xf32>,
      %347 = vector.extract_strided_slice %269 {offsets = [5, 0], sizes = [1, 8], strides = [1, 1]} : vector<8x8xf32> to vector<1x8xf32>
      %348 = vector.broadcast %347 : vector<1x8xf32> to vector<32x8xf32>
      %349 = vector.broadcast %270 : vector<32x1xf32> to vector<32x8xf32>
      %350 = arith.subf %348, %349 : vector<32x8xf32>
      %cst_161 = arith.constant -4.80500031 : f32
      %351 = vector.broadcast %cst_161 : f32 to vector<32x8xf32>
      %352 = arith.mulf %351, %350 : vector<32x8xf32>
      %353 = arith.mulf %352, %350 : vector<32x8xf32>
      %354 = math.exp %353 : vector<32x8xf32>
      %cst_162 = arith.constant dense<0.000000e+00> : vector<8x8xf32>
      %355 = tpu.matmul %271, %354, %cst_162 {dimension_numbers = #tpu.dot_dimension_numbers<[1], [0], [0], [1], [0, 0, 1, 1], [], []>} : vector<8x32xf32>, vector<32x8xf32>, vector<8x8xf32> -> vector<8x8xf32>
      %c0_163 = arith.constant 0 : index
      %c5 = arith.constant 5 : index
      %c0_164 = arith.constant 0 : index
      %356 = vector.load %arg7[%c0_163, %c5, %c0_164] : memref<8x8x8xf32, #tpu.memory_space<vmem>>, vector<8x1x8xf32>
      %357 = vector.shape_cast %356 : vector<8x1x8xf32> to vector<8x8xf32>
      %358 = arith.addf %355, %357 : vector<8x8xf32>
      %c0_165 = arith.constant 0 : index
      %c5_166 = arith.constant 5 : index
      %c0_167 = arith.constant 0 : index
      %359 = vector.load %arg28[%c0_165, %c5_166, %c0_167] : memref<8x8x8xf32, #tpu.memory_space<vmem>>, vector<8x1x8xf32>
      %360 = vector.shape_cast %359 : vector<8x1x8xf32> to vector<8x8xf32>
      %361 = vector.shape_cast %358 : vector<8x8xf32> to vector<8x1x8xf32>
      tpu.vector_store %arg28[%c0_165, %c5_166, %c0_167], %361 {strides = array<i32>} : memref<8x8x8xf32, #tpu.memory_space<vmem>>, vector<8x1x8xf32>,
      %362 = vector.extract_strided_slice %269 {offsets = [6, 0], sizes = [1, 8], strides = [1, 1]} : vector<8x8xf32> to vector<1x8xf32>
      %363 = vector.broadcast %362 : vector<1x8xf32> to vector<32x8xf32>
      %364 = vector.broadcast %270 : vector<32x1xf32> to vector<32x8xf32>
      %365 = arith.subf %363, %364 : vector<32x8xf32>
      %cst_168 = arith.constant -4.80500031 : f32
      %366 = vector.broadcast %cst_168 : f32 to vector<32x8xf32>
      %367 = arith.mulf %366, %365 : vector<32x8xf32>
      %368 = arith.mulf %367, %365 : vector<32x8xf32>
      %369 = math.exp %368 : vector<32x8xf32>
      %cst_169 = arith.constant dense<0.000000e+00> : vector<8x8xf32>
      %370 = tpu.matmul %271, %369, %cst_169 {dimension_numbers = #tpu.dot_dimension_numbers<[1], [0], [0], [1], [0, 0, 1, 1], [], []>} : vector<8x32xf32>, vector<32x8xf32>, vector<8x8xf32> -> vector<8x8xf32>
      %c0_170 = arith.constant 0 : index
      %c6 = arith.constant 6 : index
      %c0_171 = arith.constant 0 : index
      %371 = vector.load %arg7[%c0_170, %c6, %c0_171] : memref<8x8x8xf32, #tpu.memory_space<vmem>>, vector<8x1x8xf32>
      %372 = vector.shape_cast %371 : vector<8x1x8xf32> to vector<8x8xf32>
      %373 = arith.addf %370, %372 : vector<8x8xf32>
      %c0_172 = arith.constant 0 : index
      %c6_173 = arith.constant 6 : index
      %c0_174 = arith.constant 0 : index
      %374 = vector.load %arg28[%c0_172, %c6_173, %c0_174] : memref<8x8x8xf32, #tpu.memory_space<vmem>>, vector<8x1x8xf32>
      %375 = vector.shape_cast %374 : vector<8x1x8xf32> to vector<8x8xf32>
      %376 = vector.shape_cast %373 : vector<8x8xf32> to vector<8x1x8xf32>
      tpu.vector_store %arg28[%c0_172, %c6_173, %c0_174], %376 {strides = array<i32>} : memref<8x8x8xf32, #tpu.memory_space<vmem>>, vector<8x1x8xf32>,
      %377 = vector.extract_strided_slice %269 {offsets = [7, 0], sizes = [1, 8], strides = [1, 1]} : vector<8x8xf32> to vector<1x8xf32>
      %378 = vector.broadcast %377 : vector<1x8xf32> to vector<32x8xf32>
      %379 = vector.broadcast %270 : vector<32x1xf32> to vector<32x8xf32>
      %380 = arith.subf %378, %379 : vector<32x8xf32>
      %cst_175 = arith.constant -4.80500031 : f32
      %381 = vector.broadcast %cst_175 : f32 to vector<32x8xf32>
      %382 = arith.mulf %381, %380 : vector<32x8xf32>
      %383 = arith.mulf %382, %380 : vector<32x8xf32>
      %384 = math.exp %383 : vector<32x8xf32>
      %cst_176 = arith.constant dense<0.000000e+00> : vector<8x8xf32>
      %385 = tpu.matmul %271, %384, %cst_176 {dimension_numbers = #tpu.dot_dimension_numbers<[1], [0], [0], [1], [0, 0, 1, 1], [], []>} : vector<8x32xf32>, vector<32x8xf32>, vector<8x8xf32> -> vector<8x8xf32>
      %c0_177 = arith.constant 0 : index
      %c7 = arith.constant 7 : index
      %c0_178 = arith.constant 0 : index
      %386 = vector.load %arg7[%c0_177, %c7, %c0_178] : memref<8x8x8xf32, #tpu.memory_space<vmem>>, vector<8x1x8xf32>
      %387 = vector.shape_cast %386 : vector<8x1x8xf32> to vector<8x8xf32>
      %388 = arith.addf %385, %387 : vector<8x8xf32>
      %c0_179 = arith.constant 0 : index
      %c7_180 = arith.constant 7 : index
      %c0_181 = arith.constant 0 : index
      %389 = vector.load %arg28[%c0_179, %c7_180, %c0_181] : memref<8x8x8xf32, #tpu.memory_space<vmem>>, vector<8x1x8xf32>
      %390 = vector.shape_cast %389 : vector<8x1x8xf32> to vector<8x8xf32>
      %391 = vector.shape_cast %388 : vector<8x8xf32> to vector<8x1x8xf32>
      tpu.vector_store %arg28[%c0_179, %c7_180, %c0_181], %391 {strides = array<i32>} : memref<8x8x8xf32, #tpu.memory_space<vmem>>, vector<8x1x8xf32>,
    } else {
    }
    %c0 = arith.constant 0 : index
    %c0_1 = arith.constant 0 : index
    %c0_2 = arith.constant 0 : index
    %3 = vector.load %arg4[%c0, %c0_1, %c0_2] : memref<1x8x8xf32, #tpu.memory_space<vmem>>, vector<1x8x8xf32>
    %4 = vector.shape_cast %3 : vector<1x8x8xf32> to vector<8x8xf32>
    %c0_3 = arith.constant 0 : index
    %c0_4 = arith.constant 0 : index
    %c0_5 = arith.constant 0 : index
    %5 = vector.load %arg12[%c0_3, %c0_4, %c0_5] : memref<1x8x128xbf16, #tpu.memory_space<vmem>>, vector<1x8x128xbf16>
    %6 = vector.shape_cast %5 : vector<1x8x128xbf16> to vector<8x128xbf16>
    %7 = arith.truncf %4 : vector<8x8xf32> to vector<8x8xbf16>
    %cst = arith.constant dense<0.000000e+00> : vector<8x128xf32>
    %8 = tpu.matmul %7, %6, %cst {dimension_numbers = #tpu.dot_dimension_numbers<[1], [0], [0], [1], [0, 0, 1, 1], [], []>} : vector<8x8xbf16>, vector<8x128xbf16>, vector<8x128xf32> -> vector<8x128xf32>
    %c0_6 = arith.constant 0 : index
    %c0_7 = arith.constant 0 : index
    %c0_8 = arith.constant 0 : index
    %9 = vector.load %arg13[%c0_6, %c0_7, %c0_8] : memref<1x1x128xf32, #tpu.memory_space<vmem>>, vector<1x1x128xf32>
    %10 = vector.shape_cast %9 : vector<1x1x128xf32> to vector<1x128xf32>
    %11 = vector.broadcast %10 : vector<1x128xf32> to vector<8x128xf32>
    %12 = arith.addf %8, %11 : vector<8x128xf32>
    %13 = vector.extract_strided_slice %12 {offsets = [0, 0], sizes = [8, 32], strides = [1, 1]} : vector<8x128xf32> to vector<8x32xf32>
    %cst_9 = arith.constant 1.000000e+00 : f32
    %14 = vector.broadcast %cst_9 : f32 to vector<8x32xf32>
    %15 = arith.addf %14, %13 : vector<8x32xf32>
    %16 = vector.extract_strided_slice %12 {offsets = [0, 32], sizes = [8, 32], strides = [1, 1]} : vector<8x128xf32> to vector<8x32xf32>
    %17 = vector.extract_strided_slice %12 {offsets = [0, 64], sizes = [8, 32], strides = [1, 1]} : vector<8x128xf32> to vector<8x32xf32>
    %cst_10 = arith.constant 1.000000e+00 : f32
    %18 = vector.broadcast %cst_10 : f32 to vector<8x32xf32>
    %19 = arith.addf %18, %17 : vector<8x32xf32>
    %20 = vector.extract_strided_slice %12 {offsets = [0, 96], sizes = [8, 32], strides = [1, 1]} : vector<8x128xf32> to vector<8x32xf32>
    %c0_11 = arith.constant 0 : index
    %c0_12 = arith.constant 0 : index
    %21 = vector.load %arg27[%c0_11, %c0_12] : memref<8x32xf32, #tpu.memory_space<vmem>>, vector<8x32xf32>
    %cst_13 = arith.constant dense<0.000000e+00> : vector<8xf32>
    %22 = vector.multi_reduction <add>, %21, %cst_13 [1] : vector<8x32xf32> to vector<8xf32>
    %23 = vector.shape_cast %22 : vector<8xf32> to vector<8x1xf32>
    %cst_14 = arith.constant 3.200000e+01 : f32
    %24 = vector.broadcast %cst_14 : f32 to vector<8x1xf32>
    %25 = arith.divf %23, %24 : vector<8x1xf32>
    %26 = vector.broadcast %25 : vector<8x1xf32> to vector<8x32xf32>
    %27 = arith.subf %21, %26 : vector<8x32xf32>
    %28 = arith.mulf %27, %27 : vector<8x32xf32>
    %cst_15 = arith.constant dense<0.000000e+00> : vector<8xf32>
    %29 = vector.multi_reduction <add>, %28, %cst_15 [1] : vector<8x32xf32> to vector<8xf32>
    %30 = vector.shape_cast %29 : vector<8xf32> to vector<8x1xf32>
    %cst_16 = arith.constant 3.200000e+01 : f32
    %31 = vector.broadcast %cst_16 : f32 to vector<8x1xf32>
    %32 = arith.divf %30, %31 : vector<8x1xf32>
    %33 = vector.broadcast %25 : vector<8x1xf32> to vector<8x32xf32>
    %34 = arith.subf %21, %33 : vector<8x32xf32>
    %cst_17 = arith.constant 9.99999974E-6 : f32
    %35 = vector.broadcast %cst_17 : f32 to vector<8x1xf32>
    %36 = arith.addf %32, %35 : vector<8x1xf32>
    %37 = math.rsqrt %36 : vector<8x1xf32>
    %38 = vector.broadcast %37 : vector<8x1xf32> to vector<8x32xf32>
    %39 = arith.mulf %34, %38 : vector<8x32xf32>
    %40 = arith.mulf %39, %15 : vector<8x32xf32>
    %41 = arith.addf %40, %16 : vector<8x32xf32>
    %c0_18 = arith.constant 0 : index
    %c0_19 = arith.constant 0 : index
    %c0_20 = arith.constant 0 : index
    %42 = vector.load %arg14[%c0_18, %c0_19, %c0_20] : memref<1x32x96xbf16, #tpu.memory_space<vmem>>, vector<1x32x96xbf16>
    %43 = vector.shape_cast %42 : vector<1x32x96xbf16> to vector<32x96xbf16>
    %44 = arith.truncf %41 : vector<8x32xf32> to vector<8x32xbf16>
    %cst_21 = arith.constant dense<0.000000e+00> : vector<8x96xf32>
    %45 = tpu.matmul %44, %43, %cst_21 {dimension_numbers = #tpu.dot_dimension_numbers<[1], [0], [0], [1], [0, 0, 1, 1], [], []>} : vector<8x32xbf16>, vector<32x96xbf16>, vector<8x96xf32> -> vector<8x96xf32>
    %c0_22 = arith.constant 0 : index
    %c0_23 = arith.constant 0 : index
    %c0_24 = arith.constant 0 : index
    %46 = vector.load %arg15[%c0_22, %c0_23, %c0_24] : memref<1x1x96xf32, #tpu.memory_space<vmem>>, vector<1x1x96xf32>
    %47 = vector.shape_cast %46 : vector<1x1x96xf32> to vector<1x96xf32>
    %48 = vector.broadcast %47 : vector<1x96xf32> to vector<8x96xf32>
    %49 = arith.addf %45, %48 : vector<8x96xf32>
    %50 = vector.extract_strided_slice %49 {offsets = [0, 0], sizes = [8, 32], strides = [1, 1]} : vector<8x96xf32> to vector<8x32xf32>
    %51 = vector.extract_strided_slice %49 {offsets = [0, 32], sizes = [8, 32], strides = [1, 1]} : vector<8x96xf32> to vector<8x32xf32>
    %52 = vector.extract_strided_slice %49 {offsets = [0, 64], sizes = [8, 32], strides = [1, 1]} : vector<8x96xf32> to vector<8x32xf32>
    %c0_25 = arith.constant 0 : index
    %c0_26 = arith.constant 0 : index
    %c0_27 = arith.constant 0 : index
    %53 = vector.load %arg16[%c0_25, %c0_26, %c0_27] : memref<1x32x32xbf16, #tpu.memory_space<vmem>>, vector<1x32x32xbf16>
    %54 = vector.shape_cast %53 : vector<1x32x32xbf16> to vector<32x32xbf16>
    %cst_28 = arith.constant 0.000000e+00 : f32
    %55 = vector.broadcast %cst_28 : f32 to vector<8x32xf32>
    %56 = vector.extract_strided_slice %50 {offsets = [0, 0], sizes = [8, 8], strides = [1, 1]} : vector<8x32xf32> to vector<8x8xf32>
    %57 = vector.extract_strided_slice %51 {offsets = [0, 0], sizes = [8, 8], strides = [1, 1]} : vector<8x32xf32> to vector<8x8xf32>
    %58 = vector.extract_strided_slice %52 {offsets = [0, 0], sizes = [8, 8], strides = [1, 1]} : vector<8x32xf32> to vector<8x8xf32>
    %59 = arith.truncf %56 : vector<8x8xf32> to vector<8x8xbf16>
    %60 = arith.truncf %57 : vector<8x8xf32> to vector<8x8xbf16>
    %cst_29 = arith.constant dense<0.000000e+00> : vector<8x8xf32>
    %61 = tpu.matmul %59, %60, %cst_29 {dimension_numbers = #tpu.dot_dimension_numbers<[1], [1], [0], [0], [0, 0, 1, 0], [], []>} : vector<8x8xbf16>, vector<8x8xbf16>, vector<8x8xf32> -> vector<8x8xf32>
    %cst_30 = arith.constant 0.353553385 : f32
    %62 = vector.broadcast %cst_30 : f32 to vector<8x8xf32>
    %63 = arith.mulf %61, %62 : vector<8x8xf32>
    %c4_i32 = arith.constant 4 : i32
    %64 = arith.muli %arg1, %c4_i32 : i32
    %c0_i32_31 = arith.constant 0 : i32
    %65 = arith.addi %64, %c0_i32_31 : i32
    %66 = arith.index_cast %65 : i32 to index
    %c0_32 = arith.constant 0 : index
    %c0_33 = arith.constant 0 : index
    %67 = vector.load %arg28[%66, %c0_32, %c0_33] : memref<8x8x8xf32, #tpu.memory_space<vmem>>, vector<1x8x8xf32>
    %68 = vector.shape_cast %67 : vector<1x8x8xf32> to vector<8x8xf32>
    %69 = arith.addf %63, %68 : vector<8x8xf32>
    %cst_34 = arith.constant dense<0xFF800000> : vector<8xf32>
    %70 = vector.multi_reduction <maximumf>, %69, %cst_34 [1] : vector<8x8xf32> to vector<8xf32>
    %71 = vector.shape_cast %70 : vector<8xf32> to vector<8x1xf32>
    %72 = vector.broadcast %71 : vector<8x1xf32> to vector<8x8xf32>
    %73 = arith.subf %69, %72 : vector<8x8xf32>
    %74 = math.exp %73 : vector<8x8xf32>
    %cst_35 = arith.constant dense<0.000000e+00> : vector<8xf32>
    %75 = vector.multi_reduction <add>, %74, %cst_35 [1] : vector<8x8xf32> to vector<8xf32>
    %76 = vector.shape_cast %75 : vector<8xf32> to vector<8x1xf32>
    %cst_36 = arith.constant 1.000000e+00 : f32
    %77 = vector.broadcast %cst_36 : f32 to vector<8x1xf32>
    %78 = arith.divf %77, %76 : vector<8x1xf32>
    %79 = vector.extract_strided_slice %54 {offsets = [0, 0], sizes = [8, 32], strides = [1, 1]} : vector<32x32xbf16> to vector<8x32xbf16>
    %80 = arith.truncf %58 : vector<8x8xf32> to vector<8x8xbf16>
    %cst_37 = arith.constant dense<0.000000e+00> : vector<8x32xf32>
    %81 = tpu.matmul %80, %79, %cst_37 {dimension_numbers = #tpu.dot_dimension_numbers<[1], [0], [0], [1], [0, 0, 1, 1], [], []>} : vector<8x8xbf16>, vector<8x32xbf16>, vector<8x32xf32> -> vector<8x32xf32>
    %82 = arith.truncf %81 : vector<8x32xf32> to vector<8x32xbf16>
    %83 = arith.truncf %74 : vector<8x8xf32> to vector<8x8xbf16>
    %cst_38 = arith.constant dense<0.000000e+00> : vector<8x32xf32>
    %84 = tpu.matmul %83, %82, %cst_38 {dimension_numbers = #tpu.dot_dimension_numbers<[1], [0], [0], [1], [0, 0, 1, 1], [], []>} : vector<8x8xbf16>, vector<8x32xbf16>, vector<8x32xf32> -> vector<8x32xf32>
    %85 = vector.broadcast %78 : vector<8x1xf32> to vector<8x32xf32>
    %86 = arith.mulf %84, %85 : vector<8x32xf32>
    %87 = arith.addf %55, %86 : vector<8x32xf32>
    %88 = vector.extract_strided_slice %50 {offsets = [0, 8], sizes = [8, 8], strides = [1, 1]} : vector<8x32xf32> to vector<8x8xf32>
    %89 = vector.extract_strided_slice %51 {offsets = [0, 8], sizes = [8, 8], strides = [1, 1]} : vector<8x32xf32> to vector<8x8xf32>
    %90 = vector.extract_strided_slice %52 {offsets = [0, 8], sizes = [8, 8], strides = [1, 1]} : vector<8x32xf32> to vector<8x8xf32>
    %91 = arith.truncf %88 : vector<8x8xf32> to vector<8x8xbf16>
    %92 = arith.truncf %89 : vector<8x8xf32> to vector<8x8xbf16>
    %cst_39 = arith.constant dense<0.000000e+00> : vector<8x8xf32>
    %93 = tpu.matmul %91, %92, %cst_39 {dimension_numbers = #tpu.dot_dimension_numbers<[1], [1], [0], [0], [0, 0, 1, 0], [], []>} : vector<8x8xbf16>, vector<8x8xbf16>, vector<8x8xf32> -> vector<8x8xf32>
    %cst_40 = arith.constant 0.353553385 : f32
    %94 = vector.broadcast %cst_40 : f32 to vector<8x8xf32>
    %95 = arith.mulf %93, %94 : vector<8x8xf32>
    %c4_i32_41 = arith.constant 4 : i32
    %96 = arith.muli %arg1, %c4_i32_41 : i32
    %c1_i32 = arith.constant 1 : i32
    %97 = arith.addi %96, %c1_i32 : i32
    %98 = arith.index_cast %97 : i32 to index
    %c0_42 = arith.constant 0 : index
    %c0_43 = arith.constant 0 : index
    %99 = vector.load %arg28[%98, %c0_42, %c0_43] : memref<8x8x8xf32, #tpu.memory_space<vmem>>, vector<1x8x8xf32>
    %100 = vector.shape_cast %99 : vector<1x8x8xf32> to vector<8x8xf32>
    %101 = arith.addf %95, %100 : vector<8x8xf32>
    %cst_44 = arith.constant dense<0xFF800000> : vector<8xf32>
    %102 = vector.multi_reduction <maximumf>, %101, %cst_44 [1] : vector<8x8xf32> to vector<8xf32>
    %103 = vector.shape_cast %102 : vector<8xf32> to vector<8x1xf32>
    %104 = vector.broadcast %103 : vector<8x1xf32> to vector<8x8xf32>
    %105 = arith.subf %101, %104 : vector<8x8xf32>
    %106 = math.exp %105 : vector<8x8xf32>
    %cst_45 = arith.constant dense<0.000000e+00> : vector<8xf32>
    %107 = vector.multi_reduction <add>, %106, %cst_45 [1] : vector<8x8xf32> to vector<8xf32>
    %108 = vector.shape_cast %107 : vector<8xf32> to vector<8x1xf32>
    %cst_46 = arith.constant 1.000000e+00 : f32
    %109 = vector.broadcast %cst_46 : f32 to vector<8x1xf32>
    %110 = arith.divf %109, %108 : vector<8x1xf32>
    %111 = vector.extract_strided_slice %54 {offsets = [8, 0], sizes = [8, 32], strides = [1, 1]} : vector<32x32xbf16> to vector<8x32xbf16>
    %112 = arith.truncf %90 : vector<8x8xf32> to vector<8x8xbf16>
    %cst_47 = arith.constant dense<0.000000e+00> : vector<8x32xf32>
    %113 = tpu.matmul %112, %111, %cst_47 {dimension_numbers = #tpu.dot_dimension_numbers<[1], [0], [0], [1], [0, 0, 1, 1], [], []>} : vector<8x8xbf16>, vector<8x32xbf16>, vector<8x32xf32> -> vector<8x32xf32>
    %114 = arith.truncf %113 : vector<8x32xf32> to vector<8x32xbf16>
    %115 = arith.truncf %106 : vector<8x8xf32> to vector<8x8xbf16>
    %cst_48 = arith.constant dense<0.000000e+00> : vector<8x32xf32>
    %116 = tpu.matmul %115, %114, %cst_48 {dimension_numbers = #tpu.dot_dimension_numbers<[1], [0], [0], [1], [0, 0, 1, 1], [], []>} : vector<8x8xbf16>, vector<8x32xbf16>, vector<8x32xf32> -> vector<8x32xf32>
    %117 = vector.broadcast %110 : vector<8x1xf32> to vector<8x32xf32>
    %118 = arith.mulf %116, %117 : vector<8x32xf32>
    %119 = arith.addf %87, %118 : vector<8x32xf32>
    %120 = vector.extract_strided_slice %50 {offsets = [0, 16], sizes = [8, 8], strides = [1, 1]} : vector<8x32xf32> to vector<8x8xf32>
    %121 = vector.extract_strided_slice %51 {offsets = [0, 16], sizes = [8, 8], strides = [1, 1]} : vector<8x32xf32> to vector<8x8xf32>
    %122 = vector.extract_strided_slice %52 {offsets = [0, 16], sizes = [8, 8], strides = [1, 1]} : vector<8x32xf32> to vector<8x8xf32>
    %123 = arith.truncf %120 : vector<8x8xf32> to vector<8x8xbf16>
    %124 = arith.truncf %121 : vector<8x8xf32> to vector<8x8xbf16>
    %cst_49 = arith.constant dense<0.000000e+00> : vector<8x8xf32>
    %125 = tpu.matmul %123, %124, %cst_49 {dimension_numbers = #tpu.dot_dimension_numbers<[1], [1], [0], [0], [0, 0, 1, 0], [], []>} : vector<8x8xbf16>, vector<8x8xbf16>, vector<8x8xf32> -> vector<8x8xf32>
    %cst_50 = arith.constant 0.353553385 : f32
    %126 = vector.broadcast %cst_50 : f32 to vector<8x8xf32>
    %127 = arith.mulf %125, %126 : vector<8x8xf32>
    %c4_i32_51 = arith.constant 4 : i32
    %128 = arith.muli %arg1, %c4_i32_51 : i32
    %c2_i32 = arith.constant 2 : i32
    %129 = arith.addi %128, %c2_i32 : i32
    %130 = arith.index_cast %129 : i32 to index
    %c0_52 = arith.constant 0 : index
    %c0_53 = arith.constant 0 : index
    %131 = vector.load %arg28[%130, %c0_52, %c0_53] : memref<8x8x8xf32, #tpu.memory_space<vmem>>, vector<1x8x8xf32>
    %132 = vector.shape_cast %131 : vector<1x8x8xf32> to vector<8x8xf32>
    %133 = arith.addf %127, %132 : vector<8x8xf32>
    %cst_54 = arith.constant dense<0xFF800000> : vector<8xf32>
    %134 = vector.multi_reduction <maximumf>, %133, %cst_54 [1] : vector<8x8xf32> to vector<8xf32>
    %135 = vector.shape_cast %134 : vector<8xf32> to vector<8x1xf32>
    %136 = vector.broadcast %135 : vector<8x1xf32> to vector<8x8xf32>
    %137 = arith.subf %133, %136 : vector<8x8xf32>
    %138 = math.exp %137 : vector<8x8xf32>
    %cst_55 = arith.constant dense<0.000000e+00> : vector<8xf32>
    %139 = vector.multi_reduction <add>, %138, %cst_55 [1] : vector<8x8xf32> to vector<8xf32>
    %140 = vector.shape_cast %139 : vector<8xf32> to vector<8x1xf32>
    %cst_56 = arith.constant 1.000000e+00 : f32
    %141 = vector.broadcast %cst_56 : f32 to vector<8x1xf32>
    %142 = arith.divf %141, %140 : vector<8x1xf32>
    %143 = vector.extract_strided_slice %54 {offsets = [16, 0], sizes = [8, 32], strides = [1, 1]} : vector<32x32xbf16> to vector<8x32xbf16>
    %144 = arith.truncf %122 : vector<8x8xf32> to vector<8x8xbf16>
    %cst_57 = arith.constant dense<0.000000e+00> : vector<8x32xf32>
    %145 = tpu.matmul %144, %143, %cst_57 {dimension_numbers = #tpu.dot_dimension_numbers<[1], [0], [0], [1], [0, 0, 1, 1], [], []>} : vector<8x8xbf16>, vector<8x32xbf16>, vector<8x32xf32> -> vector<8x32xf32>
    %146 = arith.truncf %145 : vector<8x32xf32> to vector<8x32xbf16>
    %147 = arith.truncf %138 : vector<8x8xf32> to vector<8x8xbf16>
    %cst_58 = arith.constant dense<0.000000e+00> : vector<8x32xf32>
    %148 = tpu.matmul %147, %146, %cst_58 {dimension_numbers = #tpu.dot_dimension_numbers<[1], [0], [0], [1], [0, 0, 1, 1], [], []>} : vector<8x8xbf16>, vector<8x32xbf16>, vector<8x32xf32> -> vector<8x32xf32>
    %149 = vector.broadcast %142 : vector<8x1xf32> to vector<8x32xf32>
    %150 = arith.mulf %148, %149 : vector<8x32xf32>
    %151 = arith.addf %119, %150 : vector<8x32xf32>
    %152 = vector.extract_strided_slice %50 {offsets = [0, 24], sizes = [8, 8], strides = [1, 1]} : vector<8x32xf32> to vector<8x8xf32>
    %153 = vector.extract_strided_slice %51 {offsets = [0, 24], sizes = [8, 8], strides = [1, 1]} : vector<8x32xf32> to vector<8x8xf32>
    %154 = vector.extract_strided_slice %52 {offsets = [0, 24], sizes = [8, 8], strides = [1, 1]} : vector<8x32xf32> to vector<8x8xf32>
    %155 = arith.truncf %152 : vector<8x8xf32> to vector<8x8xbf16>
    %156 = arith.truncf %153 : vector<8x8xf32> to vector<8x8xbf16>
    %cst_59 = arith.constant dense<0.000000e+00> : vector<8x8xf32>
    %157 = tpu.matmul %155, %156, %cst_59 {dimension_numbers = #tpu.dot_dimension_numbers<[1], [1], [0], [0], [0, 0, 1, 0], [], []>} : vector<8x8xbf16>, vector<8x8xbf16>, vector<8x8xf32> -> vector<8x8xf32>
    %cst_60 = arith.constant 0.353553385 : f32
    %158 = vector.broadcast %cst_60 : f32 to vector<8x8xf32>
    %159 = arith.mulf %157, %158 : vector<8x8xf32>
    %c4_i32_61 = arith.constant 4 : i32
    %160 = arith.muli %arg1, %c4_i32_61 : i32
    %c3_i32 = arith.constant 3 : i32
    %161 = arith.addi %160, %c3_i32 : i32
    %162 = arith.index_cast %161 : i32 to index
    %c0_62 = arith.constant 0 : index
    %c0_63 = arith.constant 0 : index
    %163 = vector.load %arg28[%162, %c0_62, %c0_63] : memref<8x8x8xf32, #tpu.memory_space<vmem>>, vector<1x8x8xf32>
    %164 = vector.shape_cast %163 : vector<1x8x8xf32> to vector<8x8xf32>
    %165 = arith.addf %159, %164 : vector<8x8xf32>
    %cst_64 = arith.constant dense<0xFF800000> : vector<8xf32>
    %166 = vector.multi_reduction <maximumf>, %165, %cst_64 [1] : vector<8x8xf32> to vector<8xf32>
    %167 = vector.shape_cast %166 : vector<8xf32> to vector<8x1xf32>
    %168 = vector.broadcast %167 : vector<8x1xf32> to vector<8x8xf32>
    %169 = arith.subf %165, %168 : vector<8x8xf32>
    %170 = math.exp %169 : vector<8x8xf32>
    %cst_65 = arith.constant dense<0.000000e+00> : vector<8xf32>
    %171 = vector.multi_reduction <add>, %170, %cst_65 [1] : vector<8x8xf32> to vector<8xf32>
    %172 = vector.shape_cast %171 : vector<8xf32> to vector<8x1xf32>
    %cst_66 = arith.constant 1.000000e+00 : f32
    %173 = vector.broadcast %cst_66 : f32 to vector<8x1xf32>
    %174 = arith.divf %173, %172 : vector<8x1xf32>
    %175 = vector.extract_strided_slice %54 {offsets = [24, 0], sizes = [8, 32], strides = [1, 1]} : vector<32x32xbf16> to vector<8x32xbf16>
    %176 = arith.truncf %154 : vector<8x8xf32> to vector<8x8xbf16>
    %cst_67 = arith.constant dense<0.000000e+00> : vector<8x32xf32>
    %177 = tpu.matmul %176, %175, %cst_67 {dimension_numbers = #tpu.dot_dimension_numbers<[1], [0], [0], [1], [0, 0, 1, 1], [], []>} : vector<8x8xbf16>, vector<8x32xbf16>, vector<8x32xf32> -> vector<8x32xf32>
    %178 = arith.truncf %177 : vector<8x32xf32> to vector<8x32xbf16>
    %179 = arith.truncf %170 : vector<8x8xf32> to vector<8x8xbf16>
    %cst_68 = arith.constant dense<0.000000e+00> : vector<8x32xf32>
    %180 = tpu.matmul %179, %178, %cst_68 {dimension_numbers = #tpu.dot_dimension_numbers<[1], [0], [0], [1], [0, 0, 1, 1], [], []>} : vector<8x8xbf16>, vector<8x32xbf16>, vector<8x32xf32> -> vector<8x32xf32>
    %181 = vector.broadcast %174 : vector<8x1xf32> to vector<8x32xf32>
    %182 = arith.mulf %180, %181 : vector<8x32xf32>
    %183 = arith.addf %151, %182 : vector<8x32xf32>
    %184 = arith.addf %21, %183 : vector<8x32xf32>
    %c0_69 = arith.constant 0 : index
    %c0_70 = arith.constant 0 : index
    %c0_71 = arith.constant 0 : index
    %185 = vector.load %arg17[%c0_69, %c0_70, %c0_71] : memref<1x1x32xf32, #tpu.memory_space<vmem>>, vector<1x1x32xf32>
    %186 = vector.shape_cast %185 : vector<1x1x32xf32> to vector<1x32xf32>
    %187 = vector.broadcast %186 : vector<1x32xf32> to vector<8x32xf32>
    %188 = arith.addf %184, %187 : vector<8x32xf32>
    %cst_72 = arith.constant dense<0.000000e+00> : vector<8xf32>
    %189 = vector.multi_reduction <add>, %188, %cst_72 [1] : vector<8x32xf32> to vector<8xf32>
    %190 = vector.shape_cast %189 : vector<8xf32> to vector<8x1xf32>
    %cst_73 = arith.constant 3.200000e+01 : f32
    %191 = vector.broadcast %cst_73 : f32 to vector<8x1xf32>
    %192 = arith.divf %190, %191 : vector<8x1xf32>
    %193 = vector.broadcast %192 : vector<8x1xf32> to vector<8x32xf32>
    %194 = arith.subf %188, %193 : vector<8x32xf32>
    %195 = arith.mulf %194, %194 : vector<8x32xf32>
    %cst_74 = arith.constant dense<0.000000e+00> : vector<8xf32>
    %196 = vector.multi_reduction <add>, %195, %cst_74 [1] : vector<8x32xf32> to vector<8xf32>
    %197 = vector.shape_cast %196 : vector<8xf32> to vector<8x1xf32>
    %cst_75 = arith.constant 3.200000e+01 : f32
    %198 = vector.broadcast %cst_75 : f32 to vector<8x1xf32>
    %199 = arith.divf %197, %198 : vector<8x1xf32>
    %200 = vector.broadcast %192 : vector<8x1xf32> to vector<8x32xf32>
    %201 = arith.subf %188, %200 : vector<8x32xf32>
    %cst_76 = arith.constant 9.99999974E-6 : f32
    %202 = vector.broadcast %cst_76 : f32 to vector<8x1xf32>
    %203 = arith.addf %199, %202 : vector<8x1xf32>
    %204 = math.rsqrt %203 : vector<8x1xf32>
    %205 = vector.broadcast %204 : vector<8x1xf32> to vector<8x32xf32>
    %206 = arith.mulf %201, %205 : vector<8x32xf32>
    %207 = arith.mulf %206, %19 : vector<8x32xf32>
    %208 = arith.addf %207, %20 : vector<8x32xf32>
    %c0_77 = arith.constant 0 : index
    %c0_78 = arith.constant 0 : index
    %c0_79 = arith.constant 0 : index
    %209 = vector.load %arg18[%c0_77, %c0_78, %c0_79] : memref<1x32x128xbf16, #tpu.memory_space<vmem>>, vector<1x32x128xbf16>
    %210 = vector.shape_cast %209 : vector<1x32x128xbf16> to vector<32x128xbf16>
    %211 = arith.truncf %208 : vector<8x32xf32> to vector<8x32xbf16>
    %cst_80 = arith.constant dense<0.000000e+00> : vector<8x128xf32>
    %212 = tpu.matmul %211, %210, %cst_80 {dimension_numbers = #tpu.dot_dimension_numbers<[1], [0], [0], [1], [0, 0, 1, 1], [], []>} : vector<8x32xbf16>, vector<32x128xbf16>, vector<8x128xf32> -> vector<8x128xf32>
    %c0_81 = arith.constant 0 : index
    %c0_82 = arith.constant 0 : index
    %c0_83 = arith.constant 0 : index
    %213 = vector.load %arg19[%c0_81, %c0_82, %c0_83] : memref<1x1x128xf32, #tpu.memory_space<vmem>>, vector<1x1x128xf32>
    %214 = vector.shape_cast %213 : vector<1x1x128xf32> to vector<1x128xf32>
    %215 = vector.broadcast %214 : vector<1x128xf32> to vector<8x128xf32>
    %216 = arith.addf %212, %215 : vector<8x128xf32>
    %cst_84 = arith.constant 0.000000e+00 : f32
    %217 = vector.broadcast %cst_84 : f32 to vector<8x128xf32>
    %218 = arith.maximumf %216, %217 : vector<8x128xf32>
    %c0_85 = arith.constant 0 : index
    %c0_86 = arith.constant 0 : index
    %c0_87 = arith.constant 0 : index
    %219 = vector.load %arg20[%c0_85, %c0_86, %c0_87] : memref<1x128x32xbf16, #tpu.memory_space<vmem>>, vector<1x128x32xbf16>
    %220 = vector.shape_cast %219 : vector<1x128x32xbf16> to vector<128x32xbf16>
    %221 = arith.truncf %218 : vector<8x128xf32> to vector<8x128xbf16>
    %cst_88 = arith.constant dense<0.000000e+00> : vector<8x32xf32>
    %222 = tpu.matmul %221, %220, %cst_88 {dimension_numbers = #tpu.dot_dimension_numbers<[1], [0], [0], [1], [0, 0, 1, 1], [], []>} : vector<8x128xbf16>, vector<128x32xbf16>, vector<8x32xf32> -> vector<8x32xf32>
    %223 = arith.addf %188, %222 : vector<8x32xf32>
    %c0_89 = arith.constant 0 : index
    %c0_90 = arith.constant 0 : index
    %c0_91 = arith.constant 0 : index
    %224 = vector.load %arg21[%c0_89, %c0_90, %c0_91] : memref<1x1x32xf32, #tpu.memory_space<vmem>>, vector<1x1x32xf32>
    %225 = vector.shape_cast %224 : vector<1x1x32xf32> to vector<1x32xf32>
    %226 = vector.broadcast %225 : vector<1x32xf32> to vector<8x32xf32>
    %227 = arith.addf %223, %226 : vector<8x32xf32>
    %c0_92 = arith.constant 0 : index
    %c0_93 = arith.constant 0 : index
    %228 = vector.load %arg27[%c0_92, %c0_93] : memref<8x32xf32, #tpu.memory_space<vmem>>, vector<8x32xf32>
    tpu.vector_store %arg27[%c0_92, %c0_93], %227 {strides = array<i32>} : memref<8x32xf32, #tpu.memory_space<vmem>>, vector<8x32xf32>,
    %c1_i32_94 = arith.constant 1 : i32
    %229 = arith.cmpi eq, %arg1, %c1_i32_94 : i32
    %230 = arith.extui %229 : i1 to i32
    %c0_i32_95 = arith.constant 0 : i32
    %231 = arith.cmpi ne, %230, %c0_i32_95 : i32
    scf.if %231 {
      %c0_96 = arith.constant 0 : index
      %c0_97 = arith.constant 0 : index
      %232 = vector.load %arg22[%c0_96, %c0_97] : memref<32x32xbf16, #tpu.memory_space<vmem>>, vector<32x32xbf16>
      %233 = arith.truncf %227 : vector<8x32xf32> to vector<8x32xbf16>
      %cst_98 = arith.constant dense<0.000000e+00> : vector<8x32xf32>
      %234 = tpu.matmul %233, %232, %cst_98 {dimension_numbers = #tpu.dot_dimension_numbers<[1], [0], [0], [1], [0, 0, 1, 1], [], []>} : vector<8x32xbf16>, vector<32x32xbf16>, vector<8x32xf32> -> vector<8x32xf32>
      %c0_99 = arith.constant 0 : index
      %c0_100 = arith.constant 0 : index
      %235 = vector.load %arg23[%c0_99, %c0_100] : memref<1x32xf32, #tpu.memory_space<vmem>>, vector<1x32xf32>
      %236 = vector.broadcast %235 : vector<1x32xf32> to vector<8x32xf32>
      %237 = arith.addf %234, %236 : vector<8x32xf32>
      %cst_101 = arith.constant 0.000000e+00 : f32
      %238 = vector.broadcast %cst_101 : f32 to vector<8x32xf32>
      %239 = arith.maximumf %237, %238 : vector<8x32xf32>
      %c0_102 = arith.constant 0 : index
      %c0_103 = arith.constant 0 : index
      %240 = vector.load %arg24[%c0_102, %c0_103] : memref<32x16xbf16, #tpu.memory_space<vmem>>, vector<32x16xbf16>
      %241 = arith.truncf %239 : vector<8x32xf32> to vector<8x32xbf16>
      %cst_104 = arith.constant dense<0.000000e+00> : vector<8x16xf32>
      %242 = tpu.matmul %241, %240, %cst_104 {dimension_numbers = #tpu.dot_dimension_numbers<[1], [0], [0], [1], [0, 0, 1, 1], [], []>} : vector<8x32xbf16>, vector<32x16xbf16>, vector<8x16xf32> -> vector<8x16xf32>
      %c0_105 = arith.constant 0 : index
      %c0_106 = arith.constant 0 : index
      %243 = vector.load %arg25[%c0_105, %c0_106] : memref<1x16xf32, #tpu.memory_space<vmem>>, vector<1x16xf32>
      %244 = vector.broadcast %243 : vector<1x16xf32> to vector<8x16xf32>
      %245 = arith.addf %242, %244 : vector<8x16xf32>
      %c0_107 = arith.constant 0 : index
      %c0_108 = arith.constant 0 : index
      %c0_109 = arith.constant 0 : index
      %246 = vector.load %arg26[%c0_107, %c0_108, %c0_109] : memref<1x8x16xf32, #tpu.memory_space<vmem>>, vector<1x8x16xf32>
      %247 = vector.shape_cast %246 : vector<1x8x16xf32> to vector<8x16xf32>
      %248 = vector.shape_cast %245 : vector<8x16xf32> to vector<1x8x16xf32>
      tpu.vector_store %arg26[%c0_107, %c0_108, %c0_109], %248 {strides = array<i32>} : memref<1x8x16xf32, #tpu.memory_space<vmem>>, vector<1x8x16xf32>,
    } else {
    }
    return
  }
  func.func @transform_0(%arg0: i32, %arg1: i32) -> (i32, i32, i32) {
    %c0_i32 = arith.constant 0 : i32
    %c0_i32_0 = arith.constant 0 : i32
    %c0_i32_1 = arith.constant 0 : i32
    return %arg0, %c0_i32, %c0_i32_0 : i32, i32, i32
  }
  func.func @transform_1(%arg0: i32, %arg1: i32) -> (i32, i32, i32) {
    %c0_i32 = arith.constant 0 : i32
    %c0_i32_0 = arith.constant 0 : i32
    %c0_i32_1 = arith.constant 0 : i32
    return %arg0, %c0_i32, %c0_i32_0 : i32, i32, i32
  }
  func.func @transform_2(%arg0: i32, %arg1: i32) -> (i32, i32, i32) {
    %c0_i32 = arith.constant 0 : i32
    %c0_i32_0 = arith.constant 0 : i32
    %c0_i32_1 = arith.constant 0 : i32
    return %arg0, %c0_i32, %c0_i32_0 : i32, i32, i32
  }
  func.func @transform_3(%arg0: i32, %arg1: i32) -> (i32, i32) {
    %c0_i32 = arith.constant 0 : i32
    %c0_i32_0 = arith.constant 0 : i32
    %c0_i32_1 = arith.constant 0 : i32
    return %c0_i32, %c0_i32_0 : i32, i32
  }
  func.func @transform_4(%arg0: i32, %arg1: i32) -> (i32, i32) {
    %c0_i32 = arith.constant 0 : i32
    %c0_i32_0 = arith.constant 0 : i32
    %c0_i32_1 = arith.constant 0 : i32
    return %c0_i32, %c0_i32_0 : i32, i32
  }
  func.func @transform_5(%arg0: i32, %arg1: i32) -> (i32, i32, i32) {
    %c0_i32 = arith.constant 0 : i32
    %c0_i32_0 = arith.constant 0 : i32
    %c0_i32_1 = arith.constant 0 : i32
    %c0_i32_2 = arith.constant 0 : i32
    return %c0_i32, %c0_i32_0, %c0_i32_1 : i32, i32, i32
  }
  func.func @transform_6(%arg0: i32, %arg1: i32) -> (i32, i32) {
    %c0_i32 = arith.constant 0 : i32
    %c0_i32_0 = arith.constant 0 : i32
    %c0_i32_1 = arith.constant 0 : i32
    return %c0_i32, %c0_i32_0 : i32, i32
  }
  func.func @transform_7(%arg0: i32, %arg1: i32) -> (i32, i32) {
    %c0_i32 = arith.constant 0 : i32
    %c0_i32_0 = arith.constant 0 : i32
    %c0_i32_1 = arith.constant 0 : i32
    return %c0_i32, %c0_i32_0 : i32, i32
  }
  func.func @transform_8(%arg0: i32, %arg1: i32) -> (i32, i32) {
    %c0_i32 = arith.constant 0 : i32
    %c0_i32_0 = arith.constant 0 : i32
    %c0_i32_1 = arith.constant 0 : i32
    return %c0_i32, %c0_i32_0 : i32, i32
  }
  func.func @transform_9(%arg0: i32, %arg1: i32) -> (i32, i32) {
    %c0_i32 = arith.constant 0 : i32
    %c0_i32_0 = arith.constant 0 : i32
    %c0_i32_1 = arith.constant 0 : i32
    return %c0_i32, %c0_i32_0 : i32, i32
  }
  func.func @transform_10(%arg0: i32, %arg1: i32) -> (i32, i32, i32) {
    %c0_i32 = arith.constant 0 : i32
    %c0_i32_0 = arith.constant 0 : i32
    %c0_i32_1 = arith.constant 0 : i32
    return %arg1, %c0_i32, %c0_i32_0 : i32, i32, i32
  }
  func.func @transform_11(%arg0: i32, %arg1: i32) -> (i32, i32, i32) {
    %c0_i32 = arith.constant 0 : i32
    %c0_i32_0 = arith.constant 0 : i32
    %c0_i32_1 = arith.constant 0 : i32
    return %arg1, %c0_i32, %c0_i32_0 : i32, i32, i32
  }
  func.func @transform_12(%arg0: i32, %arg1: i32) -> (i32, i32, i32) {
    %c0_i32 = arith.constant 0 : i32
    %c0_i32_0 = arith.constant 0 : i32
    %c0_i32_1 = arith.constant 0 : i32
    return %arg1, %c0_i32, %c0_i32_0 : i32, i32, i32
  }
  func.func @transform_13(%arg0: i32, %arg1: i32) -> (i32, i32, i32) {
    %c0_i32 = arith.constant 0 : i32
    %c0_i32_0 = arith.constant 0 : i32
    %c0_i32_1 = arith.constant 0 : i32
    return %arg1, %c0_i32, %c0_i32_0 : i32, i32, i32
  }
  func.func @transform_14(%arg0: i32, %arg1: i32) -> (i32, i32, i32) {
    %c0_i32 = arith.constant 0 : i32
    %c0_i32_0 = arith.constant 0 : i32
    %c0_i32_1 = arith.constant 0 : i32
    return %arg1, %c0_i32, %c0_i32_0 : i32, i32, i32
  }
  func.func @transform_15(%arg0: i32, %arg1: i32) -> (i32, i32, i32) {
    %c0_i32 = arith.constant 0 : i32
    %c0_i32_0 = arith.constant 0 : i32
    %c0_i32_1 = arith.constant 0 : i32
    return %arg1, %c0_i32, %c0_i32_0 : i32, i32, i32
  }
  func.func @transform_16(%arg0: i32, %arg1: i32) -> (i32, i32, i32) {
    %c0_i32 = arith.constant 0 : i32
    %c0_i32_0 = arith.constant 0 : i32
    %c0_i32_1 = arith.constant 0 : i32
    return %arg1, %c0_i32, %c0_i32_0 : i32, i32, i32
  }
  func.func @transform_17(%arg0: i32, %arg1: i32) -> (i32, i32, i32) {
    %c0_i32 = arith.constant 0 : i32
    %c0_i32_0 = arith.constant 0 : i32
    %c0_i32_1 = arith.constant 0 : i32
    return %arg1, %c0_i32, %c0_i32_0 : i32, i32, i32
  }
  func.func @transform_18(%arg0: i32, %arg1: i32) -> (i32, i32, i32) {
    %c0_i32 = arith.constant 0 : i32
    %c0_i32_0 = arith.constant 0 : i32
    %c0_i32_1 = arith.constant 0 : i32
    return %arg1, %c0_i32, %c0_i32_0 : i32, i32, i32
  }
  func.func @transform_19(%arg0: i32, %arg1: i32) -> (i32, i32, i32) {
    %c0_i32 = arith.constant 0 : i32
    %c0_i32_0 = arith.constant 0 : i32
    %c0_i32_1 = arith.constant 0 : i32
    return %arg1, %c0_i32, %c0_i32_0 : i32, i32, i32
  }
  func.func @transform_20(%arg0: i32, %arg1: i32) -> (i32, i32) {
    %c0_i32 = arith.constant 0 : i32
    %c0_i32_0 = arith.constant 0 : i32
    %c0_i32_1 = arith.constant 0 : i32
    return %c0_i32, %c0_i32_0 : i32, i32
  }
  func.func @transform_21(%arg0: i32, %arg1: i32) -> (i32, i32) {
    %c0_i32 = arith.constant 0 : i32
    %c0_i32_0 = arith.constant 0 : i32
    %c0_i32_1 = arith.constant 0 : i32
    return %c0_i32, %c0_i32_0 : i32, i32
  }
  func.func @transform_22(%arg0: i32, %arg1: i32) -> (i32, i32) {
    %c0_i32 = arith.constant 0 : i32
    %c0_i32_0 = arith.constant 0 : i32
    %c0_i32_1 = arith.constant 0 : i32
    return %c0_i32, %c0_i32_0 : i32, i32
  }
  func.func @transform_23(%arg0: i32, %arg1: i32) -> (i32, i32) {
    %c0_i32 = arith.constant 0 : i32
    %c0_i32_0 = arith.constant 0 : i32
    %c0_i32_1 = arith.constant 0 : i32
    return %c0_i32, %c0_i32_0 : i32, i32
  }
  func.func @transform_24(%arg0: i32, %arg1: i32) -> (i32, i32, i32) {
    %c0_i32 = arith.constant 0 : i32
    %c0_i32_0 = arith.constant 0 : i32
    %c0_i32_1 = arith.constant 0 : i32
    return %arg0, %c0_i32, %c0_i32_0 : i32, i32, i32
  }
}

</mosaic_0001>

<llo_original>
// kernel: _lambda_.1
$region0: #{_lambda_.1}
  #allocation0 [shape = 'u32[]', space=smem, size = 0x4, offset = 0x4, fixed_abs, tag = 'smem constant byte address 0x4 - core index']
  #allocation1 [shape = 'u32[144,128]{1,0:T(1,128)}', space=vmem, size = 0x12000, scoped, tag = 'internal scratch']
  #allocation2 [shape = 'f32[8,32]{1,0:T(8,128)}', space=vmem, size = 0x1000, scoped, tag = 'scratch operand']
  #allocation3 [shape = 'f32[8,8,8]{2,1,0:T(8,128)}', space=vmem, size = 0x8000, scoped, tag = 'scratch operand']
  %s0 = inlined_call_operand.vmem [shape: f32[2,8,3], index: 0, kind: input, shape index: {}]
  %s1 = inlined_call_operand.vmem [shape: f32[2,8,3], index: 1, kind: input, shape index: {}]
  %s2 = inlined_call_operand.vmem [shape: f32[2,8,8], index: 2, kind: input, shape index: {}]
  %s3 = inlined_call_operand.vmem [shape: f32[32,1], index: 3, kind: input, shape index: {}]
  %s4 = inlined_call_operand.vmem [shape: f32[8,32], index: 4, kind: input, shape index: {}]
  %s5 = inlined_call_operand.vmem [shape: f32[8,8,8], index: 5, kind: input, shape index: {}]
  %s6 = inlined_call_operand.vmem [shape: bf16[3,32], index: 6, kind: input, shape index: {}]
  %s7 = inlined_call_operand.vmem [shape: f32[1,32], index: 7, kind: input, shape index: {}]
  %s8 = inlined_call_operand.vmem [shape: bf16[32,32], index: 8, kind: input, shape index: {}]
  %s9 = inlined_call_operand.vmem [shape: f32[1,32], index: 9, kind: input, shape index: {}]
  %s10 = inlined_call_operand.vmem [shape: bf16[2,8,128], index: 10, kind: input, shape index: {}]
  %s11 = inlined_call_operand.vmem [shape: f32[2,1,128], index: 11, kind: input, shape index: {}]
  %s12 = inlined_call_operand.vmem [shape: bf16[2,32,96], index: 12, kind: input, shape index: {}]
  %s13 = inlined_call_operand.vmem [shape: f32[2,1,96], index: 13, kind: input, shape index: {}]
  %s14 = inlined_call_operand.vmem [shape: bf16[2,32,32], index: 14, kind: input, shape index: {}]
  %s15 = inlined_call_operand.vmem [shape: f32[2,1,32], index: 15, kind: input, shape index: {}]
  %s16 = inlined_call_operand.vmem [shape: bf16[2,32,128], index: 16, kind: input, shape index: {}]
  %s17 = inlined_call_operand.vmem [shape: f32[2,1,128], index: 17, kind: input, shape index: {}]
  %s18 = inlined_call_operand.vmem [shape: bf16[2,128,32], index: 18, kind: input, shape index: {}]
  %s19 = inlined_call_operand.vmem [shape: f32[2,1,32], index: 19, kind: input, shape index: {}]
  %s20 = inlined_call_operand.vmem [shape: bf16[32,32], index: 20, kind: input, shape index: {}]
  %s21 = inlined_call_operand.vmem [shape: f32[1,32], index: 21, kind: input, shape index: {}]
  %s22 = inlined_call_operand.vmem [shape: bf16[32,16], index: 22, kind: input, shape index: {}]
  %s23 = inlined_call_operand.vmem [shape: f32[1,16], index: 23, kind: input, shape index: {}]
  %s24 = inlined_call_operand.hbm [shape: f32[2,8,16], index: 24, kind: output, shape index: {}]
  %s25 = sld [smem:[#allocation0]]
  $region137: #{_lambda_.1} parent=0
    _
  %s27 = ssub.s32 1, %s25
  %s28 = scalar_select 0, %s27, %s25
  $region1: #{_lambda_.1} parent=0
    #allocation4 [shape = 'u8[8192]{0}', space=vmem, size = 0x2000, scoped, tag = 'output window, operand 0']
    #allocation5 [shape = 's32[2]{0}', space=sflag, size = 0x8, scoped, tag = 'scoped memory for _lambda_.1']
    %29 = vsyncpa [#allocation5], 0
    %s30 = scalar_lea.sflag [#allocation5], 1
    %31 = vsyncpa %s30, 0
    loop: start=0, step=1, limit=6
    $region2: #{_lambda_.1} parent=1 // loop_pre_header
      _
    $region3: #{_lambda_.1} parent=1 // loop_header
      %s33 = sphi 0, %s37
      %p34 = scmp.ge.s32.totalorder %s33, 6
      %s40 = sphi 0, %s52
      %s41 = sphi 0, %s48
      %s42 = sphi 0, %s40
      %s43 = sphi 0, %s41
      %s44 = sphi 0, %s42
      %s45 = sphi 0, %s43
      %s55 = sphi 0, %s57
      %s58 = sphi 0, %s55
      %s59 = sphi 0, %s58
      %s75 = sphi 0, %s59
      %s81 = sphi 0, %s83
      %s84 = sphi 0, %s81
      %s85 = sphi 0, %s84
      %s101 = sphi 0, %s85
      %s107 = sphi 0, %s109
      %s110 = sphi 0, %s107
      %s111 = sphi 0, %s110
      %s127 = sphi 0, %s111
      %s131 = sphi 0, %s131
      %s133 = sphi 0, %s131
      %s134 = sphi 0, %s133
      %s148 = sphi 0, %s134
      %s152 = sphi 0, %s152
      %s154 = sphi 0, %s152
      %s155 = sphi 0, %s154
      %s169 = sphi 0, %s155
      %s173 = sphi 0, %s173
      %s175 = sphi 0, %s173
      %s176 = sphi 0, %s175
      %s190 = sphi 0, %s176
      %s194 = sphi 0, %s194
      %s196 = sphi 0, %s194
      %s197 = sphi 0, %s196
      %s211 = sphi 0, %s197
      %s215 = sphi 0, %s215
      %s217 = sphi 0, %s215
      %s218 = sphi 0, %s217
      %s232 = sphi 0, %s218
      %s236 = sphi 0, %s236
      %s238 = sphi 0, %s236
      %s239 = sphi 0, %s238
      %s253 = sphi 0, %s239
      %s257 = sphi 0, %s257
      %s259 = sphi 0, %s257
      %s260 = sphi 0, %s259
      %s274 = sphi 0, %s260
      %s280 = sphi 0, %s282
      %s283 = sphi 0, %s280
      %s284 = sphi 0, %s283
      %s300 = sphi 0, %s284
      %s306 = sphi 0, %s308
      %s309 = sphi 0, %s306
      %s310 = sphi 0, %s309
      %s326 = sphi 0, %s310
      %s332 = sphi 0, %s334
      %s335 = sphi 0, %s332
      %s336 = sphi 0, %s335
      %s352 = sphi 0, %s336
      %s358 = sphi 0, %s360
      %s361 = sphi 0, %s358
      %s362 = sphi 0, %s361
      %s378 = sphi 0, %s362
      %s384 = sphi 0, %s386
      %s387 = sphi 0, %s384
      %s388 = sphi 0, %s387
      %s404 = sphi 0, %s388
      %s410 = sphi 0, %s412
      %s413 = sphi 0, %s410
      %s414 = sphi 0, %s413
      %s430 = sphi 0, %s414
      %s436 = sphi 0, %s438
      %s439 = sphi 0, %s436
      %s440 = sphi 0, %s439
      %s456 = sphi 0, %s440
      %s462 = sphi 0, %s464
      %s465 = sphi 0, %s462
      %s466 = sphi 0, %s465
      %s482 = sphi 0, %s466
      %s488 = sphi 0, %s490
      %s491 = sphi 0, %s488
      %s492 = sphi 0, %s491
      %s508 = sphi 0, %s492
      %s514 = sphi 0, %s516
      %s517 = sphi 0, %s514
      %s518 = sphi 0, %s517
      %s534 = sphi 0, %s518
      %s538 = sphi 0, %s538
      %s540 = sphi 0, %s538
      %s541 = sphi 0, %s540
      %s555 = sphi 0, %s541
      %s559 = sphi 0, %s559
      %s561 = sphi 0, %s559
      %s562 = sphi 0, %s561
      %s576 = sphi 0, %s562
      %s580 = sphi 0, %s580
      %s582 = sphi 0, %s580
      %s583 = sphi 0, %s582
      %s597 = sphi 0, %s583
      %s601 = sphi 0, %s601
      %s603 = sphi 0, %s601
      %s604 = sphi 0, %s603
      %s618 = sphi 0, %s604
      %s624 = sphi 0, %s626
      %s627 = sphi 0, %s624
      %s628 = sphi 0, %s627
      %s644 = sphi 0, %s628
    $region4: #{_lambda_.1} parent=1 // loop_header_branch
      %36 = sbr.rel (%p34) target = $region8
    $region5: #{_lambda_.1} parent=1 // loop_body
      %s38 = ssub.s32 %s33, 1
      %s39 = ssub.s32 %s33, 2
      %s46 = sadd.s32 1, %s41
      %p47 = scmp.ge.s32.totalorder %s46, 2
      %s48 = scalar_select %p47, 0, %s46
      %s49 = sadd.s32 1, %s40
      %s50 = scalar_select %p47, %s49, %s40
      %p51 = scmp.ge.s32.totalorder %s50, 2
      %s52 = scalar_select %p51, 0, %s50
      %s53 = ssub.s32 %s40, %s52
      %p54 = scmp.eq.s32.totalorder %s53, 0
      %s56 = sadd.s32 %s55, 1
      %s57 = scalar_select %p54, %s55, %s56
      %p60 = pneg %p54
      %p61 = scmp.eq.s32.totalorder %s33, 3
      %p62 = por %p60, %p61
      %p63 = scmp.ne.s32.totalorder %s55, %s58
      %p64 = scmp.eq.s32.totalorder %s33, 0
      %p65 = por %p63, %p64
      %p66 = scmp.ne.s32.totalorder %s55, %s58
      %p67 = scmp.eq.s32.totalorder %s38, 3
      %p68 = por %p66, %p67
      %p69 = scmp.ne.s32.totalorder %s58, %s59
      %p70 = scmp.eq.s32.totalorder %s38, 0
      %p71 = por %p69, %p70
      %p72 = scmp.ne.s32.totalorder %s58, %s59
      %p73 = scmp.eq.s32.totalorder %s39, 3
      %p74 = por %p72, %p73
      %p76 = scmp.ne.s32.totalorder %s59, %s75
      %p77 = scmp.eq.s32.totalorder %s39, 0
      %p78 = por %p76, %p77
      %s79 = ssub.s32 %s40, %s52
      %p80 = scmp.eq.s32.totalorder %s79, 0
      %s82 = sadd.s32 %s81, 1
      %s83 = scalar_select %p80, %s81, %s82
      %p86 = pneg %p80
      %p87 = scmp.eq.s32.totalorder %s33, 3
      %p88 = por %p86, %p87
      %p89 = scmp.ne.s32.totalorder %s81, %s84
      %p90 = scmp.eq.s32.totalorder %s33, 0
      %p91 = por %p89, %p90
      %p92 = scmp.ne.s32.totalorder %s81, %s84
      %p93 = scmp.eq.s32.totalorder %s38, 3
      %p94 = por %p92, %p93
      %p95 = scmp.ne.s32.totalorder %s84, %s85
      %p96 = scmp.eq.s32.totalorder %s38, 0
      %p97 = por %p95, %p96
      %p98 = scmp.ne.s32.totalorder %s84, %s85
      %p99 = scmp.eq.s32.totalorder %s39, 3
      %p100 = por %p98, %p99
      %p102 = scmp.ne.s32.totalorder %s85, %s101
      %p103 = scmp.eq.s32.totalorder %s39, 0
      %p104 = por %p102, %p103
      %s105 = ssub.s32 %s40, %s52
      %p106 = scmp.eq.s32.totalorder %s105, 0
      %s108 = sadd.s32 %s107, 1
      %s109 = scalar_select %p106, %s107, %s108
      %p112 = pneg %p106
      %p113 = scmp.eq.s32.totalorder %s33, 3
      %p114 = por %p112, %p113
      %p115 = scmp.ne.s32.totalorder %s107, %s110
      %p116 = scmp.eq.s32.totalorder %s33, 0
      %p117 = por %p115, %p116
      %p118 = scmp.ne.s32.totalorder %s107, %s110
      %p119 = scmp.eq.s32.totalorder %s38, 3
      %p120 = por %p118, %p119
      %p121 = scmp.ne.s32.totalorder %s110, %s111
      %p122 = scmp.eq.s32.totalorder %s38, 0
      %p123 = por %p121, %p122
      %p124 = scmp.ne.s32.totalorder %s110, %s111
      %p125 = scmp.eq.s32.totalorder %s39, 3
      %p126 = por %p124, %p125
      %p128 = scmp.ne.s32.totalorder %s111, %s127
      %p129 = scmp.eq.s32.totalorder %s39, 0
      %p130 = por %p128, %p129
      %s132 = sadd.s32 %s131, 1
      %p135 = scmp.eq.s32.totalorder %s33, 3
      %p136 = scmp.ne.s32.totalorder %s131, %s133
      %p137 = scmp.eq.s32.totalorder %s33, 0
      %p138 = por %p136, %p137
      %p139 = scmp.ne.s32.totalorder %s131, %s133
      %p140 = scmp.eq.s32.totalorder %s38, 3
      %p141 = por %p139, %p140
      %p142 = scmp.ne.s32.totalorder %s133, %s134
      %p143 = scmp.eq.s32.totalorder %s38, 0
      %p144 = por %p142, %p143
      %p145 = scmp.ne.s32.totalorder %s133, %s134
      %p146 = scmp.eq.s32.totalorder %s39, 3
      %p147 = por %p145, %p146
      %p149 = scmp.ne.s32.totalorder %s134, %s148
      %p150 = scmp.eq.s32.totalorder %s39, 0
      %p151 = por %p149, %p150
      %s153 = sadd.s32 %s152, 1
      %p156 = scmp.eq.s32.totalorder %s33, 3
      %p157 = scmp.ne.s32.totalorder %s152, %s154
      %p158 = scmp.eq.s32.totalorder %s33, 0
      %p159 = por %p157, %p158
      %p160 = scmp.ne.s32.totalorder %s152, %s154
      %p161 = scmp.eq.s32.totalorder %s38, 3
      %p162 = por %p160, %p161
      %p163 = scmp.ne.s32.totalorder %s154, %s155
      %p164 = scmp.eq.s32.totalorder %s38, 0
      %p165 = por %p163, %p164
      %p166 = scmp.ne.s32.totalorder %s154, %s155
      %p167 = scmp.eq.s32.totalorder %s39, 3
      %p168 = por %p166, %p167
      %p170 = scmp.ne.s32.totalorder %s155, %s169
      %p171 = scmp.eq.s32.totalorder %s39, 0
      %p172 = por %p170, %p171
      %s174 = sadd.s32 %s173, 1
      %p177 = scmp.eq.s32.totalorder %s33, 3
      %p178 = scmp.ne.s32.totalorder %s173, %s175
      %p179 = scmp.eq.s32.totalorder %s33, 0
      %p180 = por %p178, %p179
      %p181 = scmp.ne.s32.totalorder %s173, %s175
      %p182 = scmp.eq.s32.totalorder %s38, 3
      %p183 = por %p181, %p182
      %p184 = scmp.ne.s32.totalorder %s175, %s176
      %p185 = scmp.eq.s32.totalorder %s38, 0
      %p186 = por %p184, %p185
      %p187 = scmp.ne.s32.totalorder %s175, %s176
      %p188 = scmp.eq.s32.totalorder %s39, 3
      %p189 = por %p187, %p188
      %p191 = scmp.ne.s32.totalorder %s176, %s190
      %p192 = scmp.eq.s32.totalorder %s39, 0
      %p193 = por %p191, %p192
      %s195 = sadd.s32 %s194, 1
      %p198 = scmp.eq.s32.totalorder %s33, 3
      %p199 = scmp.ne.s32.totalorder %s194, %s196
      %p200 = scmp.eq.s32.totalorder %s33, 0
      %p201 = por %p199, %p200
      %p202 = scmp.ne.s32.totalorder %s194, %s196
      %p203 = scmp.eq.s32.totalorder %s38, 3
      %p204 = por %p202, %p203
      %p205 = scmp.ne.s32.totalorder %s196, %s197
      %p206 = scmp.eq.s32.totalorder %s38, 0
      %p207 = por %p205, %p206
      %p208 = scmp.ne.s32.totalorder %s196, %s197
      %p209 = scmp.eq.s32.totalorder %s39, 3
      %p210 = por %p208, %p209
      %p212 = scmp.ne.s32.totalorder %s197, %s211
      %p213 = scmp.eq.s32.totalorder %s39, 0
      %p214 = por %p212, %p213
      %s216 = sadd.s32 %s215, 1
      %p219 = scmp.eq.s32.totalorder %s33, 3
      %p220 = scmp.ne.s32.totalorder %s215, %s217
      %p221 = scmp.eq.s32.totalorder %s33, 0
      %p222 = por %p220, %p221
      %p223 = scmp.ne.s32.totalorder %s215, %s217
      %p224 = scmp.eq.s32.totalorder %s38, 3
      %p225 = por %p223, %p224
      %p226 = scmp.ne.s32.totalorder %s217, %s218
      %p227 = scmp.eq.s32.totalorder %s38, 0
      %p228 = por %p226, %p227
      %p229 = scmp.ne.s32.totalorder %s217, %s218
      %p230 = scmp.eq.s32.totalorder %s39, 3
      %p231 = por %p229, %p230
      %p233 = scmp.ne.s32.totalorder %s218, %s232
      %p234 = scmp.eq.s32.totalorder %s39, 0
      %p235 = por %p233, %p234
      %s237 = sadd.s32 %s236, 1
      %p240 = scmp.eq.s32.totalorder %s33, 3
      %p241 = scmp.ne.s32.totalorder %s236, %s238
      %p242 = scmp.eq.s32.totalorder %s33, 0
      %p243 = por %p241, %p242
      %p244 = scmp.ne.s32.totalorder %s236, %s238
      %p245 = scmp.eq.s32.totalorder %s38, 3
      %p246 = por %p244, %p245
      %p247 = scmp.ne.s32.totalorder %s238, %s239
      %p248 = scmp.eq.s32.totalorder %s38, 0
      %p249 = por %p247, %p248
      %p250 = scmp.ne.s32.totalorder %s238, %s239
      %p251 = scmp.eq.s32.totalorder %s39, 3
      %p252 = por %p250, %p251
      %p254 = scmp.ne.s32.totalorder %s239, %s253
      %p255 = scmp.eq.s32.totalorder %s39, 0
      %p256 = por %p254, %p255
      %s258 = sadd.s32 %s257, 1
      %p261 = scmp.eq.s32.totalorder %s33, 3
      %p262 = scmp.ne.s32.totalorder %s257, %s259
      %p263 = scmp.eq.s32.totalorder %s33, 0
      %p264 = por %p262, %p263
      %p265 = scmp.ne.s32.totalorder %s257, %s259
      %p266 = scmp.eq.s32.totalorder %s38, 3
      %p267 = por %p265, %p266
      %p268 = scmp.ne.s32.totalorder %s259, %s260
      %p269 = scmp.eq.s32.totalorder %s38, 0
      %p270 = por %p268, %p269
      %p271 = scmp.ne.s32.totalorder %s259, %s260
      %p272 = scmp.eq.s32.totalorder %s39, 3
      %p273 = por %p271, %p272
      %p275 = scmp.ne.s32.totalorder %s260, %s274
      %p276 = scmp.eq.s32.totalorder %s39, 0
      %p277 = por %p275, %p276
      %s278 = ssub.s32 %s41, %s48
      %p279 = scmp.eq.s32.totalorder %s278, 0
      %s281 = sadd.s32 %s280, 1
      %s282 = scalar_select %p279, %s280, %s281
      %p285 = pneg %p279
      %p286 = scmp.eq.s32.totalorder %s33, 3
      %p287 = por %p285, %p286
      %p288 = scmp.ne.s32.totalorder %s280, %s283
      %p289 = scmp.eq.s32.totalorder %s33, 0
      %p290 = por %p288, %p289
      %p291 = scmp.ne.s32.totalorder %s280, %s283
      %p292 = scmp.eq.s32.totalorder %s38, 3
      %p293 = por %p291, %p292
      %p294 = scmp.ne.s32.totalorder %s283, %s284
      %p295 = scmp.eq.s32.totalorder %s38, 0
      %p296 = por %p294, %p295
      %p297 = scmp.ne.s32.totalorder %s283, %s284
      %p298 = scmp.eq.s32.totalorder %s39, 3
      %p299 = por %p297, %p298
      %p301 = scmp.ne.s32.totalorder %s284, %s300
      %p302 = scmp.eq.s32.totalorder %s39, 0
      %p303 = por %p301, %p302
      %s304 = ssub.s32 %s41, %s48
      %p305 = scmp.eq.s32.totalorder %s304, 0
      %s307 = sadd.s32 %s306, 1
      %s308 = scalar_select %p305, %s306, %s307
      %p311 = pneg %p305
      %p312 = scmp.eq.s32.totalorder %s33, 3
      %p313 = por %p311, %p312
      %p314 = scmp.ne.s32.totalorder %s306, %s309
      %p315 = scmp.eq.s32.totalorder %s33, 0
      %p316 = por %p314, %p315
      %p317 = scmp.ne.s32.totalorder %s306, %s309
      %p318 = scmp.eq.s32.totalorder %s38, 3
      %p319 = por %p317, %p318
      %p320 = scmp.ne.s32.totalorder %s309, %s310
      %p321 = scmp.eq.s32.totalorder %s38, 0
      %p322 = por %p320, %p321
      %p323 = scmp.ne.s32.totalorder %s309, %s310
      %p324 = scmp.eq.s32.totalorder %s39, 3
      %p325 = por %p323, %p324
      %p327 = scmp.ne.s32.totalorder %s310, %s326
      %p328 = scmp.eq.s32.totalorder %s39, 0
      %p329 = por %p327, %p328
      %s330 = ssub.s32 %s41, %s48
      %p331 = scmp.eq.s32.totalorder %s330, 0
      %s333 = sadd.s32 %s332, 1
      %s334 = scalar_select %p331, %s332, %s333
      %p337 = pneg %p331
      %p338 = scmp.eq.s32.totalorder %s33, 3
      %p339 = por %p337, %p338
      %p340 = scmp.ne.s32.totalorder %s332, %s335
      %p341 = scmp.eq.s32.totalorder %s33, 0
      %p342 = por %p340, %p341
      %p343 = scmp.ne.s32.totalorder %s332, %s335
      %p344 = scmp.eq.s32.totalorder %s38, 3
      %p345 = por %p343, %p344
      %p346 = scmp.ne.s32.totalorder %s335, %s336
      %p347 = scmp.eq.s32.totalorder %s38, 0
      %p348 = por %p346, %p347
      %p349 = scmp.ne.s32.totalorder %s335, %s336
      %p350 = scmp.eq.s32.totalorder %s39, 3
      %p351 = por %p349, %p350
      %p353 = scmp.ne.s32.totalorder %s336, %s352
      %p354 = scmp.eq.s32.totalorder %s39, 0
      %p355 = por %p353, %p354
      %s356 = ssub.s32 %s41, %s48
      %p357 = scmp.eq.s32.totalorder %s356, 0
      %s359 = sadd.s32 %s358, 1
      %s360 = scalar_select %p357, %s358, %s359
      %p363 = pneg %p357
      %p364 = scmp.eq.s32.totalorder %s33, 3
      %p365 = por %p363, %p364
      %p366 = scmp.ne.s32.totalorder %s358, %s361
      %p367 = scmp.eq.s32.totalorder %s33, 0
      %p368 = por %p366, %p367
      %p369 = scmp.ne.s32.totalorder %s358, %s361
      %p370 = scmp.eq.s32.totalorder %s38, 3
      %p371 = por %p369, %p370
      %p372 = scmp.ne.s32.totalorder %s361, %s362
      %p373 = scmp.eq.s32.totalorder %s38, 0
      %p374 = por %p372, %p373
      %p375 = scmp.ne.s32.totalorder %s361, %s362
      %p376 = scmp.eq.s32.totalorder %s39, 3
      %p377 = por %p375, %p376
      %p379 = scmp.ne.s32.totalorder %s362, %s378
      %p380 = scmp.eq.s32.totalorder %s39, 0
      %p381 = por %p379, %p380
      %s382 = ssub.s32 %s41, %s48
      %p383 = scmp.eq.s32.totalorder %s382, 0
      %s385 = sadd.s32 %s384, 1
      %s386 = scalar_select %p383, %s384, %s385
      %p389 = pneg %p383
      %p390 = scmp.eq.s32.totalorder %s33, 3
      %p391 = por %p389, %p390
      %p392 = scmp.ne.s32.totalorder %s384, %s387
      %p393 = scmp.eq.s32.totalorder %s33, 0
      %p394 = por %p392, %p393
      %p395 = scmp.ne.s32.totalorder %s384, %s387
      %p396 = scmp.eq.s32.totalorder %s38, 3
      %p397 = por %p395, %p396
      %p398 = scmp.ne.s32.totalorder %s387, %s388
      %p399 = scmp.eq.s32.totalorder %s38, 0
      %p400 = por %p398, %p399
      %p401 = scmp.ne.s32.totalorder %s387, %s388
      %p402 = scmp.eq.s32.totalorder %s39, 3
      %p403 = por %p401, %p402
      %p405 = scmp.ne.s32.totalorder %s388, %s404
      %p406 = scmp.eq.s32.totalorder %s39, 0
      %p407 = por %p405, %p406
      %s408 = ssub.s32 %s41, %s48
      %p409 = scmp.eq.s32.totalorder %s408, 0
      %s411 = sadd.s32 %s410, 1
      %s412 = scalar_select %p409, %s410, %s411
      %p415 = pneg %p409
      %p416 = scmp.eq.s32.totalorder %s33, 3
      %p417 = por %p415, %p416
      %p418 = scmp.ne.s32.totalorder %s410, %s413
      %p419 = scmp.eq.s32.totalorder %s33, 0
      %p420 = por %p418, %p419
      %p421 = scmp.ne.s32.totalorder %s410, %s413
      %p422 = scmp.eq.s32.totalorder %s38, 3
      %p423 = por %p421, %p422
      %p424 = scmp.ne.s32.totalorder %s413, %s414
      %p425 = scmp.eq.s32.totalorder %s38, 0
      %p426 = por %p424, %p425
      %p427 = scmp.ne.s32.totalorder %s413, %s414
      %p428 = scmp.eq.s32.totalorder %s39, 3
      %p429 = por %p427, %p428
      %p431 = scmp.ne.s32.totalorder %s414, %s430
      %p432 = scmp.eq.s32.totalorder %s39, 0
      %p433 = por %p431, %p432
      %s434 = ssub.s32 %s41, %s48
      %p435 = scmp.eq.s32.totalorder %s434, 0
      %s437 = sadd.s32 %s436, 1
      %s438 = scalar_select %p435, %s436, %s437
      %p441 = pneg %p435
      %p442 = scmp.eq.s32.totalorder %s33, 3
      %p443 = por %p441, %p442
      %p444 = scmp.ne.s32.totalorder %s436, %s439
      %p445 = scmp.eq.s32.totalorder %s33, 0
      %p446 = por %p444, %p445
      %p447 = scmp.ne.s32.totalorder %s436, %s439
      %p448 = scmp.eq.s32.totalorder %s38, 3
      %p449 = por %p447, %p448
      %p450 = scmp.ne.s32.totalorder %s439, %s440
      %p451 = scmp.eq.s32.totalorder %s38, 0
      %p452 = por %p450, %p451
      %p453 = scmp.ne.s32.totalorder %s439, %s440
      %p454 = scmp.eq.s32.totalorder %s39, 3
      %p455 = por %p453, %p454
      %p457 = scmp.ne.s32.totalorder %s440, %s456
      %p458 = scmp.eq.s32.totalorder %s39, 0
      %p459 = por %p457, %p458
      %s460 = ssub.s32 %s41, %s48
      %p461 = scmp.eq.s32.totalorder %s460, 0
      %s463 = sadd.s32 %s462, 1
      %s464 = scalar_select %p461, %s462, %s463
      %p467 = pneg %p461
      %p468 = scmp.eq.s32.totalorder %s33, 3
      %p469 = por %p467, %p468
      %p470 = scmp.ne.s32.totalorder %s462, %s465
      %p471 = scmp.eq.s32.totalorder %s33, 0
      %p472 = por %p470, %p471
      %p473 = scmp.ne.s32.totalorder %s462, %s465
      %p474 = scmp.eq.s32.totalorder %s38, 3
      %p475 = por %p473, %p474
      %p476 = scmp.ne.s32.totalorder %s465, %s466
      %p477 = scmp.eq.s32.totalorder %s38, 0
      %p478 = por %p476, %p477
      %p479 = scmp.ne.s32.totalorder %s465, %s466
      %p480 = scmp.eq.s32.totalorder %s39, 3
      %p481 = por %p479, %p480
      %p483 = scmp.ne.s32.totalorder %s466, %s482
      %p484 = scmp.eq.s32.totalorder %s39, 0
      %p485 = por %p483, %p484
      %s486 = ssub.s32 %s41, %s48
      %p487 = scmp.eq.s32.totalorder %s486, 0
      %s489 = sadd.s32 %s488, 1
      %s490 = scalar_select %p487, %s488, %s489
      %p493 = pneg %p487
      %p494 = scmp.eq.s32.totalorder %s33, 3
      %p495 = por %p493, %p494
      %p496 = scmp.ne.s32.totalorder %s488, %s491
      %p497 = scmp.eq.s32.totalorder %s33, 0
      %p498 = por %p496, %p497
      %p499 = scmp.ne.s32.totalorder %s488, %s491
      %p500 = scmp.eq.s32.totalorder %s38, 3
      %p501 = por %p499, %p500
      %p502 = scmp.ne.s32.totalorder %s491, %s492
      %p503 = scmp.eq.s32.totalorder %s38, 0
      %p504 = por %p502, %p503
      %p505 = scmp.ne.s32.totalorder %s491, %s492
      %p506 = scmp.eq.s32.totalorder %s39, 3
      %p507 = por %p505, %p506
      %p509 = scmp.ne.s32.totalorder %s492, %s508
      %p510 = scmp.eq.s32.totalorder %s39, 0
      %p511 = por %p509, %p510
      %s512 = ssub.s32 %s41, %s48
      %p513 = scmp.eq.s32.totalorder %s512, 0
      %s515 = sadd.s32 %s514, 1
      %s516 = scalar_select %p513, %s514, %s515
      %p519 = pneg %p513
      %p520 = scmp.eq.s32.totalorder %s33, 3
      %p521 = por %p519, %p520
      %p522 = scmp.ne.s32.totalorder %s514, %s517
      %p523 = scmp.eq.s32.totalorder %s33, 0
      %p524 = por %p522, %p523
      %p525 = scmp.ne.s32.totalorder %s514, %s517
      %p526 = scmp.eq.s32.totalorder %s38, 3
      %p527 = por %p525, %p526
      %p528 = scmp.ne.s32.totalorder %s517, %s518
      %p529 = scmp.eq.s32.totalorder %s38, 0
      %p530 = por %p528, %p529
      %p531 = scmp.ne.s32.totalorder %s517, %s518
      %p532 = scmp.eq.s32.totalorder %s39, 3
      %p533 = por %p531, %p532
      %p535 = scmp.ne.s32.totalorder %s518, %s534
      %p536 = scmp.eq.s32.totalorder %s39, 0
      %p537 = por %p535, %p536
      %s539 = sadd.s32 %s538, 1
      %p542 = scmp.eq.s32.totalorder %s33, 3
      %p543 = scmp.ne.s32.totalorder %s538, %s540
      %p544 = scmp.eq.s32.totalorder %s33, 0
      %p545 = por %p543, %p544
      %p546 = scmp.ne.s32.totalorder %s538, %s540
      %p547 = scmp.eq.s32.totalorder %s38, 3
      %p548 = por %p546, %p547
      %p549 = scmp.ne.s32.totalorder %s540, %s541
      %p550 = scmp.eq.s32.totalorder %s38, 0
      %p551 = por %p549, %p550
      %p552 = scmp.ne.s32.totalorder %s540, %s541
      %p553 = scmp.eq.s32.totalorder %s39, 3
      %p554 = por %p552, %p553
      %p556 = scmp.ne.s32.totalorder %s541, %s555
      %p557 = scmp.eq.s32.totalorder %s39, 0
      %p558 = por %p556, %p557
      %s560 = sadd.s32 %s559, 1
      %p563 = scmp.eq.s32.totalorder %s33, 3
      %p564 = scmp.ne.s32.totalorder %s559, %s561
      %p565 = scmp.eq.s32.totalorder %s33, 0
      %p566 = por %p564, %p565
      %p567 = scmp.ne.s32.totalorder %s559, %s561
      %p568 = scmp.eq.s32.totalorder %s38, 3
      %p569 = por %p567, %p568
      %p570 = scmp.ne.s32.totalorder %s561, %s562
      %p571 = scmp.eq.s32.totalorder %s38, 0
      %p572 = por %p570, %p571
      %p573 = scmp.ne.s32.totalorder %s561, %s562
      %p574 = scmp.eq.s32.totalorder %s39, 3
      %p575 = por %p573, %p574
      %p577 = scmp.ne.s32.totalorder %s562, %s576
      %p578 = scmp.eq.s32.totalorder %s39, 0
      %p579 = por %p577, %p578
      %s581 = sadd.s32 %s580, 1
      %p584 = scmp.eq.s32.totalorder %s33, 3
      %p585 = scmp.ne.s32.totalorder %s580, %s582
      %p586 = scmp.eq.s32.totalorder %s33, 0
      %p587 = por %p585, %p586
      %p588 = scmp.ne.s32.totalorder %s580, %s582
      %p589 = scmp.eq.s32.totalorder %s38, 3
      %p590 = por %p588, %p589
      %p591 = scmp.ne.s32.totalorder %s582, %s583
      %p592 = scmp.eq.s32.totalorder %s38, 0
      %p593 = por %p591, %p592
      %p594 = scmp.ne.s32.totalorder %s582, %s583
      %p595 = scmp.eq.s32.totalorder %s39, 3
      %p596 = por %p594, %p595
      %p598 = scmp.ne.s32.totalorder %s583, %s597
      %p599 = scmp.eq.s32.totalorder %s39, 0
      %p600 = por %p598, %p599
      %s602 = sadd.s32 %s601, 1
      %p605 = scmp.eq.s32.totalorder %s33, 3
      %p606 = scmp.ne.s32.totalorder %s601, %s603
      %p607 = scmp.eq.s32.totalorder %s33, 0
      %p608 = por %p606, %p607
      %p609 = scmp.ne.s32.totalorder %s601, %s603
      %p610 = scmp.eq.s32.totalorder %s38, 3
      %p611 = por %p609, %p610
      %p612 = scmp.ne.s32.totalorder %s603, %s604
      %p613 = scmp.eq.s32.totalorder %s38, 0
      %p614 = por %p612, %p613
      %p615 = scmp.ne.s32.totalorder %s603, %s604
      %p616 = scmp.eq.s32.totalorder %s39, 3
      %p617 = por %p615, %p616
      %p619 = scmp.ne.s32.totalorder %s604, %s618
      %p620 = scmp.eq.s32.totalorder %s39, 0
      %p621 = por %p619, %p620
      %s622 = ssub.s32 %s40, %s52
      %p623 = scmp.eq.s32.totalorder %s622, 0
      %s625 = sadd.s32 %s624, 1
      %s626 = scalar_select %p623, %s624, %s625
      %p629 = pneg %p623
      %p630 = scmp.eq.s32.totalorder %s33, 3
      %p631 = por %p629, %p630
      %p632 = scmp.ne.s32.totalorder %s624, %s627
      %p633 = scmp.eq.s32.totalorder %s33, 0
      %p634 = por %p632, %p633
      %p635 = scmp.ne.s32.totalorder %s624, %s627
      %p636 = scmp.eq.s32.totalorder %s38, 3
      %p637 = por %p635, %p636
      %p638 = scmp.ne.s32.totalorder %s627, %s628
      %p639 = scmp.eq.s32.totalorder %s38, 0
      %p640 = por %p638, %p639
      %p641 = scmp.ne.s32.totalorder %s627, %s628
      %p642 = scmp.eq.s32.totalorder %s39, 3
      %p643 = por %p641, %p642
      %p645 = scmp.ne.s32.totalorder %s628, %s644
      %p646 = scmp.eq.s32.totalorder %s39, 0
      %p647 = por %p645, %p646
      %p648 = scmp.le.s32.totalorder 1, %s33
      %p649 = scmp.lt.s32.totalorder %s33, 5
      %p650 = pnand %p648, %p649
      %p651 = pneg %p650
      // Predicated region
      $region9: #{_lambda_.1} parent=5 // pred_check
        _
      $region10: #{_lambda_.1} parent=5 // pred_check_branch
        %653 = sbr.rel (%p650) target = $region12
      $region11: #{_lambda_.1} parent=5 // pred_region
        %s654 = ssub.s32 %s33, 1
        // Predicated region
        $region13: #{_lambda_.1} parent=11 // pred_check
          %p655 = pneg %p144
        $region14: #{_lambda_.1} parent=11 // pred_check_branch
          %657 = sbr.rel (%p655) target = $region16
        $region15: #{_lambda_.1} parent=11 // pred_region
          _
        $region16: #{_lambda_.1} parent=11 // pred_fallthru
          _
        // Predicated region
        $region17: #{_lambda_.1} parent=11 // pred_check
          %p658 = pneg %p165
        $region18: #{_lambda_.1} parent=11 // pred_check_branch
          %660 = sbr.rel (%p658) target = $region20
        $region19: #{_lambda_.1} parent=11 // pred_region
          _
        $region20: #{_lambda_.1} parent=11 // pred_fallthru
          _
        // Predicated region
        $region21: #{_lambda_.1} parent=11 // pred_check
          %p661 = pneg %p186
        $region22: #{_lambda_.1} parent=11 // pred_check_branch
          %663 = sbr.rel (%p661) target = $region24
        $region23: #{_lambda_.1} parent=11 // pred_region
          _
        $region24: #{_lambda_.1} parent=11 // pred_fallthru
          _
        // Predicated region
        $region25: #{_lambda_.1} parent=11 // pred_check
          %p664 = pneg %p207
        $region26: #{_lambda_.1} parent=11 // pred_check_branch
          %666 = sbr.rel (%p664) target = $region28
        $region27: #{_lambda_.1} parent=11 // pred_region
          _
        $region28: #{_lambda_.1} parent=11 // pred_fallthru
          _
        // Predicated region
        $region29: #{_lambda_.1} parent=11 // pred_check
          %p667 = pneg %p228
        $region30: #{_lambda_.1} parent=11 // pred_check_branch
          %669 = sbr.rel (%p667) target = $region32
        $region31: #{_lambda_.1} parent=11 // pred_region
          _
        $region32: #{_lambda_.1} parent=11 // pred_fallthru
          _
        // Predicated region
        $region33: #{_lambda_.1} parent=11 // pred_check
          %p670 = pneg %p249
        $region34: #{_lambda_.1} parent=11 // pred_check_branch
          %672 = sbr.rel (%p670) target = $region36
        $region35: #{_lambda_.1} parent=11 // pred_region
          _
        $region36: #{_lambda_.1} parent=11 // pred_fallthru
          _
        // Predicated region
        $region37: #{_lambda_.1} parent=11 // pred_check
          %p673 = pneg %p270
        $region38: #{_lambda_.1} parent=11 // pred_check_branch
          %675 = sbr.rel (%p673) target = $region40
        $region39: #{_lambda_.1} parent=11 // pred_region
          _
        $region40: #{_lambda_.1} parent=11 // pred_fallthru
          _
        // Predicated region
        $region41: #{_lambda_.1} parent=11 // pred_check
          %p676 = pneg %p551
        $region42: #{_lambda_.1} parent=11 // pred_check_branch
          %678 = sbr.rel (%p676) target = $region44
        $region43: #{_lambda_.1} parent=11 // pred_region
          _
        $region44: #{_lambda_.1} parent=11 // pred_fallthru
          _
        // Predicated region
        $region45: #{_lambda_.1} parent=11 // pred_check
          %p679 = pneg %p572
        $region46: #{_lambda_.1} parent=11 // pred_check_branch
          %681 = sbr.rel (%p679) target = $region48
        $region47: #{_lambda_.1} parent=11 // pred_region
          _
        $region48: #{_lambda_.1} parent=11 // pred_fallthru
          _
        // Predicated region
        $region49: #{_lambda_.1} parent=11 // pred_check
          %p682 = pneg %p593
        $region50: #{_lambda_.1} parent=11 // pred_check_branch
          %684 = sbr.rel (%p682) target = $region52
        $region51: #{_lambda_.1} parent=11 // pred_region
          _
        $region52: #{_lambda_.1} parent=11 // pred_fallthru
          _
        // Predicated region
        $region53: #{_lambda_.1} parent=11 // pred_check
          %p685 = pneg %p614
        $region54: #{_lambda_.1} parent=11 // pred_check_branch
          %687 = sbr.rel (%p685) target = $region56
        $region55: #{_lambda_.1} parent=11 // pred_region
          _
        $region56: #{_lambda_.1} parent=11 // pred_fallthru
          _
      $region12: #{_lambda_.1} parent=5 // pred_fallthru
        _
      %p688 = scmp.lt.s32.totalorder %s33, 4
      // Predicated region
      $region57: #{_lambda_.1} parent=5 // pred_check
        %p689 = pneg %p688
      $region58: #{_lambda_.1} parent=5 // pred_check_branch
        %691 = sbr.rel (%p689) target = $region60
      $region59: #{_lambda_.1} parent=5 // pred_region
        // Predicated region
        $region61: #{_lambda_.1} parent=59 // pred_check
          %p692 = pneg %p65
        $region62: #{_lambda_.1} parent=59 // pred_check_branch
          %694 = sbr.rel (%p692) target = $region64
        $region63: #{_lambda_.1} parent=59 // pred_region
          %p695 = scmp.lt.s32.totalorder %s40, 1
          %s696 = scalar_select %p695, %s40, 1
          %s697 = smul.addr %s696, 8
          %s698 = scalar_lea.vmem %s0, %s697
        $region64: #{_lambda_.1} parent=59 // pred_fallthru
          _
        // Predicated region
        $region65: #{_lambda_.1} parent=59 // pred_check
          %p699 = pneg %p91
        $region66: #{_lambda_.1} parent=59 // pred_check_branch
          %701 = sbr.rel (%p699) target = $region68
        $region67: #{_lambda_.1} parent=59 // pred_region
          %p702 = scmp.lt.s32.totalorder %s40, 1
          %s703 = scalar_select %p702, %s40, 1
          %s704 = smul.addr %s703, 8
          %s705 = scalar_lea.vmem %s1, %s704
        $region68: #{_lambda_.1} parent=59 // pred_fallthru
          _
        // Predicated region
        $region69: #{_lambda_.1} parent=59 // pred_check
          %p706 = pneg %p117
        $region70: #{_lambda_.1} parent=59 // pred_check_branch
          %708 = sbr.rel (%p706) target = $region72
        $region71: #{_lambda_.1} parent=59 // pred_region
          %p709 = scmp.lt.s32.totalorder %s40, 1
          %s710 = scalar_select %p709, %s40, 1
          %s711 = smul.addr %s710, 8
          %s712 = scalar_lea.vmem %s2, %s711
        $region72: #{_lambda_.1} parent=59 // pred_fallthru
          _
        // Predicated region
        $region73: #{_lambda_.1} parent=59 // pred_check
          %p713 = pneg %p290
        $region74: #{_lambda_.1} parent=59 // pred_check_branch
          %715 = sbr.rel (%p713) target = $region76
        $region75: #{_lambda_.1} parent=59 // pred_region
          %p716 = scmp.lt.s32.totalorder %s41, 1
          %s717 = scalar_select %p716, %s41, 1
          %s718 = smul.addr %s717, 4
          %s719 = scalar_lea.vmem %s10, %s718
        $region76: #{_lambda_.1} parent=59 // pred_fallthru
          _
        // Predicated region
        $region77: #{_lambda_.1} parent=59 // pred_check
          %p720 = pneg %p316
        $region78: #{_lambda_.1} parent=59 // pred_check_branch
          %722 = sbr.rel (%p720) target = $region80
        $region79: #{_lambda_.1} parent=59 // pred_region
          %p723 = scmp.lt.s32.totalorder %s41, 1
          %s724 = scalar_select %p723, %s41, 1
          %s725 = scalar_lea.vmem %s11, %s724
        $region80: #{_lambda_.1} parent=59 // pred_fallthru
          _
        // Predicated region
        $region81: #{_lambda_.1} parent=59 // pred_check
          %p726 = pneg %p342
        $region82: #{_lambda_.1} parent=59 // pred_check_branch
          %728 = sbr.rel (%p726) target = $region84
        $region83: #{_lambda_.1} parent=59 // pred_region
          %p729 = scmp.lt.s32.totalorder %s41, 1
          %s730 = scalar_select %p729, %s41, 1
          %s731 = smul.addr %s730, 4
          %s732 = smul.addr %s731, 4
          %s733 = scalar_lea.vmem %s12, %s732
        $region84: #{_lambda_.1} parent=59 // pred_fallthru
          _
        // Predicated region
        $region85: #{_lambda_.1} parent=59 // pred_check
          %p734 = pneg %p368
        $region86: #{_lambda_.1} parent=59 // pred_check_branch
          %736 = sbr.rel (%p734) target = $region88
        $region87: #{_lambda_.1} parent=59 // pred_region
          %p737 = scmp.lt.s32.totalorder %s41, 1
          %s738 = scalar_select %p737, %s41, 1
          %s739 = scalar_lea.vmem %s13, %s738
        $region88: #{_lambda_.1} parent=59 // pred_fallthru
          _
        // Predicated region
        $region89: #{_lambda_.1} parent=59 // pred_check
          %p740 = pneg %p394
        $region90: #{_lambda_.1} parent=59 // pred_check_branch
          %742 = sbr.rel (%p740) target = $region92
        $region91: #{_lambda_.1} parent=59 // pred_region
          %p743 = scmp.lt.s32.totalorder %s41, 1
          %s744 = scalar_select %p743, %s41, 1
          %s745 = smul.addr %s744, 4
          %s746 = smul.addr %s745, 4
          %s747 = scalar_lea.vmem %s14, %s746
        $region92: #{_lambda_.1} parent=59 // pred_fallthru
          _
        // Predicated region
        $region93: #{_lambda_.1} parent=59 // pred_check
          %p748 = pneg %p420
        $region94: #{_lambda_.1} parent=59 // pred_check_branch
          %750 = sbr.rel (%p748) target = $region96
        $region95: #{_lambda_.1} parent=59 // pred_region
          %p751 = scmp.lt.s32.totalorder %s41, 1
          %s752 = scalar_select %p751, %s41, 1
          %s753 = scalar_lea.vmem %s15, %s752
        $region96: #{_lambda_.1} parent=59 // pred_fallthru
          _
        // Predicated region
        $region97: #{_lambda_.1} parent=59 // pred_check
          %p754 = pneg %p446
        $region98: #{_lambda_.1} parent=59 // pred_check_branch
          %756 = sbr.rel (%p754) target = $region100
        $region99: #{_lambda_.1} parent=59 // pred_region
          %p757 = scmp.lt.s32.totalorder %s41, 1
          %s758 = scalar_select %p757, %s41, 1
          %s759 = smul.addr %s758, 4
          %s760 = smul.addr %s759, 4
          %s761 = scalar_lea.vmem %s16, %s760
        $region100: #{_lambda_.1} parent=59 // pred_fallthru
          _
        // Predicated region
        $region101: #{_lambda_.1} parent=59 // pred_check
          %p762 = pneg %p472
        $region102: #{_lambda_.1} parent=59 // pred_check_branch
          %764 = sbr.rel (%p762) target = $region104
        $region103: #{_lambda_.1} parent=59 // pred_region
          %p765 = scmp.lt.s32.totalorder %s41, 1
          %s766 = scalar_select %p765, %s41, 1
          %s767 = scalar_lea.vmem %s17, %s766
        $region104: #{_lambda_.1} parent=59 // pred_fallthru
          _
        // Predicated region
        $region105: #{_lambda_.1} parent=59 // pred_check
          %p768 = pneg %p498
        $region106: #{_lambda_.1} parent=59 // pred_check_branch
          %770 = sbr.rel (%p768) target = $region108
        $region107: #{_lambda_.1} parent=59 // pred_region
          %p771 = scmp.lt.s32.totalorder %s41, 1
          %s772 = scalar_select %p771, %s41, 1
          %s773 = smul.addr %s772, 16
          %s774 = smul.addr %s773, 4
          %s775 = scalar_lea.vmem %s18, %s774
        $region108: #{_lambda_.1} parent=59 // pred_fallthru
          _
        // Predicated region
        $region109: #{_lambda_.1} parent=59 // pred_check
          %p776 = pneg %p524
        $region110: #{_lambda_.1} parent=59 // pred_check_branch
          %778 = sbr.rel (%p776) target = $region112
        $region111: #{_lambda_.1} parent=59 // pred_region
          %p779 = scmp.lt.s32.totalorder %s41, 1
          %s780 = scalar_select %p779, %s41, 1
          %s781 = scalar_lea.vmem %s19, %s780
        $region112: #{_lambda_.1} parent=59 // pred_fallthru
          _
      $region60: #{_lambda_.1} parent=5 // pred_fallthru
        _
      %p782 = scmp.le.s32.totalorder 1, %s33
      %p783 = scmp.lt.s32.totalorder %s33, 5
      %p784 = pnand %p782, %p783
      %p785 = pneg %p784
      // Predicated region
      $region113: #{_lambda_.1} parent=5 // pred_check
        _
      $region114: #{_lambda_.1} parent=5 // pred_check_branch
        %787 = sbr.rel (%p784) target = $region116
      $region115: #{_lambda_.1} parent=5 // pred_region
        %s788 = ssub.s32 %s33, 1
        %p789 = scmp.lt.s32.totalorder %s42, 1
        %s790 = scalar_select %p789, %s42, 1
        %s791 = smul.addr %s790, 8
        %s792 = scalar_lea.vmem %s0, %s791
        %p793 = pneg %p71
        %p794 = pneg %p68
        %p795 = scmp.lt.s32.totalorder %s42, 1
        %s796 = scalar_select %p795, %s42, 1
        %s797 = smul.addr %s796, 8
        %s798 = scalar_lea.vmem %s1, %s797
        %p799 = pneg %p97
        %p800 = pneg %p94
        %p801 = scmp.lt.s32.totalorder %s42, 1
        %s802 = scalar_select %p801, %s42, 1
        %s803 = smul.addr %s802, 8
        %s804 = scalar_lea.vmem %s2, %s803
        %p805 = pneg %p123
        %p806 = pneg %p120
        %p807 = pneg %p144
        %p808 = pneg %p141
        %p809 = pneg %p165
        %p810 = pneg %p162
        %p811 = pneg %p186
        %p812 = pneg %p183
        %p813 = pneg %p207
        %p814 = pneg %p204
        %p815 = pneg %p228
        %p816 = pneg %p225
        %p817 = pneg %p249
        %p818 = pneg %p246
        %p819 = pneg %p270
        %p820 = pneg %p267
        %p821 = scmp.lt.s32.totalorder %s43, 1
        %s822 = scalar_select %p821, %s43, 1
        %s823 = smul.addr %s822, 4
        %s824 = scalar_lea.vmem %s10, %s823
        %p825 = pneg %p296
        %p826 = pneg %p293
        %p827 = scmp.lt.s32.totalorder %s43, 1
        %s828 = scalar_select %p827, %s43, 1
        %s829 = scalar_lea.vmem %s11, %s828
        %p830 = pneg %p322
        %p831 = pneg %p319
        %p832 = scmp.lt.s32.totalorder %s43, 1
        %s833 = scalar_select %p832, %s43, 1
        %s834 = smul.addr %s833, 4
        %s835 = smul.addr %s834, 4
        %s836 = scalar_lea.vmem %s12, %s835
        %p837 = pneg %p348
        %p838 = pneg %p345
        %p839 = scmp.lt.s32.totalorder %s43, 1
        %s840 = scalar_select %p839, %s43, 1
        %s841 = scalar_lea.vmem %s13, %s840
        %p842 = pneg %p374
        %p843 = pneg %p371
        %p844 = scmp.lt.s32.totalorder %s43, 1
        %s845 = scalar_select %p844, %s43, 1
        %s846 = smul.addr %s845, 4
        %s847 = smul.addr %s846, 4
        %s848 = scalar_lea.vmem %s14, %s847
        %p849 = pneg %p400
        %p850 = pneg %p397
        %p851 = scmp.lt.s32.totalorder %s43, 1
        %s852 = scalar_select %p851, %s43, 1
        %s853 = scalar_lea.vmem %s15, %s852
        %p854 = pneg %p426
        %p855 = pneg %p423
        %p856 = scmp.lt.s32.totalorder %s43, 1
        %s857 = scalar_select %p856, %s43, 1
        %s858 = smul.addr %s857, 4
        %s859 = smul.addr %s858, 4
        %s860 = scalar_lea.vmem %s16, %s859
        %p861 = pneg %p452
        %p862 = pneg %p449
        %p863 = scmp.lt.s32.totalorder %s43, 1
        %s864 = scalar_select %p863, %s43, 1
        %s865 = scalar_lea.vmem %s17, %s864
        %p866 = pneg %p478
        %p867 = pneg %p475
        %p868 = scmp.lt.s32.totalorder %s43, 1
        %s869 = scalar_select %p868, %s43, 1
        %s870 = smul.addr %s869, 16
        %s871 = smul.addr %s870, 4
        %s872 = scalar_lea.vmem %s18, %s871
        %p873 = pneg %p504
        %p874 = pneg %p501
        %p875 = scmp.lt.s32.totalorder %s43, 1
        %s876 = scalar_select %p875, %s43, 1
        %s877 = scalar_lea.vmem %s19, %s876
        %p878 = pneg %p530
        %p879 = pneg %p527
        %p880 = pneg %p551
        %p881 = pneg %p548
        %p882 = pneg %p572
        %p883 = pneg %p569
        %p884 = pneg %p593
        %p885 = pneg %p590
        %p886 = pneg %p614
        %p887 = pneg %p611
        %p888 = pneg %p640
        %p889 = pneg %p637
        %s890 = sand.u32 %s627, 1
        %s891 = scalar_lea.sflag [#allocation5], %s890
        %s892 = sand.u32 %s627, 1
        %s893 = smul.addr %s892, 8
        %s894 = scalar_lea.vmem [#allocation4], %s893
        %p895 = scmp.lt.s32.totalorder %s42, 1
        %s896 = scalar_select %p895, %s42, 1
        %s897 = smul.addr %s896, 8
        %s898 = scalar_lea.vmem %s0, %s897
        %p899 = scmp.lt.s32.totalorder %s42, 1
        %s900 = scalar_select %p899, %s42, 1
        %s901 = smul.addr %s900, 8
        %s902 = scalar_lea.vmem %s1, %s901
        %p903 = scmp.lt.s32.totalorder %s42, 1
        %s904 = scalar_select %p903, %s42, 1
        %s905 = smul.addr %s904, 8
        %s906 = scalar_lea.vmem %s2, %s905
        %p907 = scmp.lt.s32.totalorder %s43, 1
        %s908 = scalar_select %p907, %s43, 1
        %s909 = smul.addr %s908, 4
        %s910 = scalar_lea.vmem %s10, %s909
        %p911 = scmp.lt.s32.totalorder %s43, 1
        %s912 = scalar_select %p911, %s43, 1
        %s913 = scalar_lea.vmem %s11, %s912
        %p914 = scmp.lt.s32.totalorder %s43, 1
        %s915 = scalar_select %p914, %s43, 1
        %s916 = smul.addr %s915, 4
        %s917 = smul.addr %s916, 4
        %s918 = scalar_lea.vmem %s12, %s917
        %p919 = scmp.lt.s32.totalorder %s43, 1
        %s920 = scalar_select %p919, %s43, 1
        %s921 = scalar_lea.vmem %s13, %s920
        %p922 = scmp.lt.s32.totalorder %s43, 1
        %s923 = scalar_select %p922, %s43, 1
        %s924 = smul.addr %s923, 4
        %s925 = smul.addr %s924, 4
        %s926 = scalar_lea.vmem %s14, %s925
        %p927 = scmp.lt.s32.totalorder %s43, 1
        %s928 = scalar_select %p927, %s43, 1
        %s929 = scalar_lea.vmem %s15, %s928
        %p930 = scmp.lt.s32.totalorder %s43, 1
        %s931 = scalar_select %p930, %s43, 1
        %s932 = smul.addr %s931, 4
        %s933 = smul.addr %s932, 4
        %s934 = scalar_lea.vmem %s16, %s933
        %p935 = scmp.lt.s32.totalorder %s43, 1
        %s936 = scalar_select %p935, %s43, 1
        %s937 = scalar_lea.vmem %s17, %s936
        %p938 = scmp.lt.s32.totalorder %s43, 1
        %s939 = scalar_select %p938, %s43, 1
        %s940 = smul.addr %s939, 16
        %s941 = smul.addr %s940, 4
        %s942 = scalar_lea.vmem %s18, %s941
        %p943 = scmp.lt.s32.totalorder %s43, 1
        %s944 = scalar_select %p943, %s43, 1
        %s945 = scalar_lea.vmem %s19, %s944
        %p947 = scmp.eq.s32.totalorder %s43, 0
        // Predicated region
        $region117: #{_lambda_.1} parent=115 // pred_check
          %p948 = pneg %p947
        $region118: #{_lambda_.1} parent=115 // pred_check_branch
          %950 = sbr.rel (%p948) target = $region120
        $region119: #{_lambda_.1} parent=115 // pred_region
          %v951 = vld [vmem:[%s902] sm:$0xff]
          %v952 = vld [vmem:[%s6] sm:$0x3]
          %v953 = vpack.c.bf16 %v951, %v951
          %v954 = vld [vmem:[%s7] sm:$0x1]
          %v956 = vlaneseq
          %v957 = vshrl.u32 %v956, 7
          %v958 = vsub.s32 0, %v957
          %v959 = vrot.slane %v954, %v958
          %vm961 = vcmask 23552
          %v963 = vsel %vm961, %v953, 0
          %vm965 = vcmask 1040384
          %vm966 = vcmask 1041408
          %v967 = vsel %vm965, 4294967295, 65535
          %v968 = vsel %vm966, %v967, 0
          %v970 = vand.u32 %v952, %v968
          %972 = vmatprep.subr.bf16.mxu0 0
          %973 = vmatpush1.bf16.msra.mxu0 0
          %974 = vmatprep.subr.bf16.mxu0 0
          %975 = vmatpush1.bf16.msra.mxu0 0
          %976 = vmatprep.subr.bf16.mxu0 0
          %977 = vmatpush1.bf16.msra.mxu0 0
          %978 = vmatprep.subr.bf16.mxu0 0
          %979 = vmatpush1.bf16.msra.mxu0 0
          %980 = vmatprep.subr.bf16.mxu0 0
          %981 = vmatpush1.bf16.msra.mxu0 0
          %982 = vmatprep.subr.bf16.mxu0 0
          %983 = vmatpush1.bf16.msra.mxu0 0
          %984 = vmatprep.subr.bf16.mxu0 0
          %985 = vmatpush1.bf16.msra.mxu0 0
          %986 = vmatprep.subr.bf16.mxu0 0
          %987 = vmatpush1.bf16.msra.mxu0 %v970
          %988 = vmatprep.subr.bf16.mxu0 0
          %989 = vmatpush2.bf16.msra.mxu0 0
          %990 = vmatprep.subr.bf16.mxu0 0
          %991 = vmatpush2.bf16.msra.mxu0 0
          %992 = vmatprep.subr.bf16.mxu0 0
          %993 = vmatpush2.bf16.msra.mxu0 0
          %994 = vmatprep.subr.bf16.mxu0 0
          %995 = vmatpush2.bf16.msra.mxu0 0
          %996 = vmatprep.subr.bf16.mxu0 0
          %997 = vmatpush2.bf16.msra.mxu0 0
          %998 = vmatprep.subr.bf16.mxu0 0
          %999 = vmatpush2.bf16.msra.mxu0 0
          %1000 = vmatprep.subr.bf16.mxu0 0
          %1001 = vmatpush2.bf16.msra.mxu0 0
          %1002 = vmatprep.subr.bf16.mxu0 0
          %1003 = vmatpush2.bf16.msra.mxu0 0
          %1004 = vmatprep.mubr.bf16.mxu0 0
          %1005 = vmatmul.mubr.bf16.gmra.mxu0 %v963
          %v1006 = vpop.f32.mrf.mxu0
          %v1007 = vadd.f32 %v959, %v1006
          %v1008 = vpop.f32.mrf.mxu0
          %v1009 = vpop.f32.mrf.mxu0
          %v1010 = vpop.f32.mrf.mxu0
          %1011 = vdwg.mxu0
          %v1012 = vmax.f32 %v1007, 0.0
          %v1013 = vld [vmem:[%s8] sm:$0xf]
          %v1014 = vld [vmem:[%s8 + $0x4] sm:$0xf]
          %v1015 = vld [vmem:[%s8 + $0x8] sm:$0xf]
          %v1016 = vld [vmem:[%s8 + $0xc] sm:$0xf]
          %v1017 = vpack.c.bf16 %v1012, %v1012
          %v1018 = vld [vmem:[%s9] sm:$0x1]
          %v1020 = vlaneseq
          %v1021 = vshrl.u32 %v1020, 7
          %v1022 = vsub.s32 0, %v1021
          %v1023 = vrot.slane %v1018, %v1022
          %v1029 = vunpack.c.l.b16 %v1013
          %v1030 = vunpack.c.l.b16 %v1014
          %v1031 = vunpack.c.l.b16 %v1015
          %v1032 = vunpack.c.l.b16 %v1016
          %v1033 = vpack.c.b16 %v1030, %v1029
          %v1034 = vpack.c.b16 %v1032, %v1031
          %vm1037 = vcmask 261120
          %v1039 = vsel %vm1037, %v1017, 0
          %1041 = vmatprep.subr.bf16.mxu0 0
          %1042 = vmatpush1.bf16.msra.mxu0 0
          %1043 = vmatprep.subr.bf16.mxu0 0
          %1044 = vmatpush1.bf16.msra.mxu0 0
          %1045 = vmatprep.subr.bf16.mxu0 0
          %1046 = vmatpush1.bf16.msra.mxu0 0
          %1047 = vmatprep.subr.bf16.mxu0 0
          %1048 = vmatpush1.bf16.msra.mxu0 0
          %1049 = vmatprep.subr.bf16.mxu0 0
          %1050 = vmatpush1.bf16.msra.mxu0 0
          %1051 = vmatprep.subr.bf16.mxu0 0
          %1052 = vmatpush1.bf16.msra.mxu0 0
          %1053 = vmatprep.subr.bf16.mxu0 0
          %1054 = vmatpush1.bf16.msra.mxu0 %v1034
          %1055 = vmatprep.subr.bf16.mxu0 0
          %1056 = vmatpush1.bf16.msra.mxu0 %v1033
          %1057 = vmatprep.subr.bf16.mxu0 0
          %1058 = vmatpush2.bf16.msra.mxu0 0
          %1059 = vmatprep.subr.bf16.mxu0 0
          %1060 = vmatpush2.bf16.msra.mxu0 0
          %1061 = vmatprep.subr.bf16.mxu0 0
          %1062 = vmatpush2.bf16.msra.mxu0 0
          %1063 = vmatprep.subr.bf16.mxu0 0
          %1064 = vmatpush2.bf16.msra.mxu0 0
          %1065 = vmatprep.subr.bf16.mxu0 0
          %1066 = vmatpush2.bf16.msra.mxu0 0
          %1067 = vmatprep.subr.bf16.mxu0 0
          %1068 = vmatpush2.bf16.msra.mxu0 0
          %1069 = vmatprep.subr.bf16.mxu0 0
          %1070 = vmatpush2.bf16.msra.mxu0 0
          %1071 = vmatprep.subr.bf16.mxu0 0
          %1072 = vmatpush2.bf16.msra.mxu0 0
          %1073 = vmatprep.mubr.bf16.mxu0 0
          %1074 = vmatmul.mubr.bf16.gmra.mxu0 %v1039
          %v1075 = vpop.f32.mrf.mxu0
          %v1076 = vadd.f32 %v1023, %v1075
          %v1077 = vpop.f32.mrf.mxu0
          %v1078 = vpop.f32.mrf.mxu0
          %v1079 = vpop.f32.mrf.mxu0
          %1080 = vdwg.mxu0
          %1081 = vst.msk [vmem:[#allocation2] sm:$0xff] %vm1037, %v1076
          %v1082 = vld [vmem:[%s898] sm:$0xff]
          %v1084 = vsel %vm961, %v1082, 0
          %1086 = vmatprep.subr.mxu0 0.0
          %1087 = vmatpush1.xpose.msra.mxu0 0.0
          %1088 = vmatprep.subr.mxu0 0.0
          %1089 = vmatpush1.xpose.msra.mxu0 0.0
          %1090 = vmatprep.subr.mxu0 0.0
          %1091 = vmatpush1.xpose.msra.mxu0 0.0
          %1092 = vmatprep.subr.mxu0 0.0
          %1093 = vmatpush1.xpose.msra.mxu0 0.0
          %1094 = vmatprep.subr.mxu0 0.0
          %1095 = vmatpush1.xpose.msra.mxu0 0.0
          %1096 = vmatprep.subr.mxu0 0.0
          %1097 = vmatpush1.xpose.msra.mxu0 0.0
          %1098 = vmatprep.subr.mxu0 0.0
          %1099 = vmatpush1.xpose.msra.mxu0 0.0
          %1100 = vmatprep.subr.mxu0 0.0
          %1101 = vmatpush1.xpose.msra.mxu0 0.0
          %1102 = vmatprep.subr.mxu0 0.0
          %1103 = vmatpush1.xpose.msra.mxu0 0.0
          %1104 = vmatprep.subr.mxu0 0.0
          %1105 = vmatpush1.xpose.msra.mxu0 0.0
          %1106 = vmatprep.subr.mxu0 0.0
          %1107 = vmatpush1.xpose.msra.mxu0 0.0
          %1108 = vmatprep.subr.mxu0 0.0
          %1109 = vmatpush1.xpose.msra.mxu0 0.0
          %1110 = vmatprep.subr.mxu0 0.0
          %1111 = vmatpush1.xpose.msra.mxu0 0.0
          %1112 = vmatprep.subr.mxu0 0.0
          %1113 = vmatpush1.xpose.msra.mxu0 0.0
          %1114 = vmatprep.subr.mxu0 0.0
          %1115 = vmatpush1.xpose.msra.mxu0 0.0
          %1116 = vmatprep.subr.mxu0 0.0
          %1117 = vmatpush1.xpose.msra.mxu0 %v1084
          %1118 = vmatprep.subr.mxu0 0.0
          %1119 = vmatpush2.xpose.msra.mxu0 0.0
          %1120 = vmatprep.subr.mxu0 0.0
          %1121 = vmatpush2.xpose.msra.mxu0 0.0
          %1122 = vmatprep.subr.mxu0 0.0
          %1123 = vmatpush2.xpose.msra.mxu0 0.0
          %1124 = vmatprep.subr.mxu0 0.0
          %1125 = vmatpush2.xpose.msra.mxu0 0.0
          %1126 = vmatprep.subr.mxu0 0.0
          %1127 = vmatpush2.xpose.msra.mxu0 0.0
          %1128 = vmatprep.subr.mxu0 0.0
          %1129 = vmatpush2.xpose.msra.mxu0 0.0
          %1130 = vmatprep.subr.mxu0 0.0
          %1131 = vmatpush2.xpose.msra.mxu0 0.0
          %1132 = vmatprep.subr.mxu0 0.0
          %1133 = vmatpush2.xpose.msra.mxu0 0.0
          %1134 = vmatprep.subr.mxu0 0.0
          %1135 = vmatpush2.xpose.msra.mxu0 0.0
          %1136 = vmatprep.subr.mxu0 0.0
          %1137 = vmatpush2.xpose.msra.mxu0 0.0
          %1138 = vmatprep.subr.mxu0 0.0
          %1139 = vmatpush2.xpose.msra.mxu0 0.0
          %1140 = vmatprep.subr.mxu0 0.0
          %1141 = vmatpush2.xpose.msra.mxu0 0.0
          %1142 = vmatprep.subr.mxu0 0.0
          %1143 = vmatpush2.xpose.msra.mxu0 0.0
          %1144 = vmatprep.subr.mxu0 0.0
          %1145 = vmatpush2.xpose.msra.mxu0 0.0
          %1146 = vmatprep.subr.mxu0 0.0
          %1147 = vmatpush2.xpose.msra.mxu0 0.0
          %1148 = vmatprep.subr.mxu0 0.0
          %1149 = vmatpush2.xpose.msra.mxu0 0.0
          %1150 = vmatprep.mubr.f32.mxu0 0.0
          %1151 = vmatmul.mubr.f32.gmra.mxu0 %v1084
          %v1152 = vpop.f32.mrf.mxu0
          %v1153 = vadd.f32 0.0, %v1152
          %v1154 = vpop.f32.mrf.mxu0
          %1155 = vdwg.mxu0
          %v1156 = vlaneseq
          %v1157 = vshrl.u32 %v1156, 7
          %v1158 = vlaneseq
          %v1159 = vand.u32 %v1158, 127
          %vm1160 = vcmp.eq.s32.totalorder %v1157, %v1159
          %v1161 = vsel %vm1160, %v1153, 0.0
          %vm1162 = vcmask 64512
          %v1163 = vsel %vm1162, %v1161, 0.0
          %1164 = vadd.xlane.f32.xlu0 %v1163
          %v1165 = vpop.xlane.xlu0 %1164
          %v1166 = vrot.slane %v1163, 4
          %v1167 = vadd.f32 %v1163, %v1166
          %v1168 = vrot.slane %v1167, 2
          %v1169 = vadd.f32 %v1167, %v1168
          %v1170 = vrot.slane %v1169, 1
          %v1171 = vadd.f32 %v1169, %v1170
          %v1172 = vadd.f32 %v1165, %v1171
          %v1173 = vmul.f32 %v1153, 2.0
          %v1174 = vsub.f32 %v1172, %v1173
          %v1175 = vmax.f32 %v1174, 0.0
          %v1176 = vrsqrt.pop %v1175
          %v1177 = vmul.f32 %v1175, %v1176
          %vm1178 = vcmp.eq.f32.partialorder %v1175, inf
          %v1179 = vsel %vm1178, %v1175, %v1177
          %vm1180 = vcmp.eq.f32.partialorder %v1175, 0.0
          %v1181 = vand.u32 %v1175, 2147483648
          %v1182 = vsel %vm1180, %v1181, %v1179
          %v1183 = vld [vmem:[%s3] sm:$0xff]
          %v1184 = vld [vmem:[%s3 + $0x8] sm:$0xff]
          %v1185 = vld [vmem:[%s3 + $0x10] sm:$0xff]
          %v1186 = vld [vmem:[%s3 + $0x18] sm:$0xff]
          %v1187 = vld [vmem:[%s4] sm:$0xff]
          %v1188 = vlaneseq
          %v1189 = vshrl.u32 %v1188, 7
          %v1190 = vsub.s32 0, %v1189
          %v1191 = vrot.slane %v1182, %v1190
          %1193 = vset.pattern.permute.xlu0 0
          %1194 = vperm.xlu0 %1193, %v1183
          %v1195 = vpop.permute.xlu0 %1194
          %1198 = vset.pattern.permute.xlu0 0
          %1199 = vperm.xlu0 %1198, %v1184
          %v1200 = vpop.permute.xlu0 %1199
          %1203 = vset.pattern.permute.xlu0 0
          %1204 = vperm.xlu0 %1203, %v1185
          %v1205 = vpop.permute.xlu0 %1204
          %1208 = vset.pattern.permute.xlu0 0
          %1209 = vperm.xlu0 %1208, %v1186
          %v1210 = vpop.permute.xlu0 %1209
          %v1212 = vsub.f32 %v1191, %v1195
          %v1213 = vsub.f32 %v1191, %v1200
          %v1214 = vsub.f32 %v1191, %v1205
          %v1215 = vsub.f32 %v1191, %v1210
          %v1216 = vmul.f32 %v1212, -4.8050003
          %v1217 = vmul.f32 %v1213, -4.8050003
          %v1218 = vmul.f32 %v1214, -4.8050003
          %v1219 = vmul.f32 %v1215, -4.8050003
          %v1220 = vmul.f32 %v1216, %v1212
          %v1221 = vmul.f32 %v1217, %v1213
          %v1222 = vmul.f32 %v1218, %v1214
          %v1223 = vmul.f32 %v1219, %v1215
          %v1224 = vmul.f32 %v1220, 1.442695
          %v1225 = vpow.pop %v1224
          %v1226 = vmul.f32 %v1221, 1.442695
          %v1227 = vpow.pop %v1226
          %v1228 = vmul.f32 %v1222, 1.442695
          %v1229 = vpow.pop %v1228
          %v1230 = vmul.f32 %v1223, 1.442695
          %v1231 = vpow.pop %v1230
          %v1232 = vld [vmem:[%s5] sm:$0x1]
          %v1233 = vld [vmem:[%s5 + $0x8] sm:$0x1]
          %v1234 = vld [vmem:[%s5 + $0x10] sm:$0x1]
          %v1235 = vld [vmem:[%s5 + $0x18] sm:$0x1]
          %v1236 = vld [vmem:[%s5 + $0x20] sm:$0x1]
          %v1237 = vld [vmem:[%s5 + $0x28] sm:$0x1]
          %v1238 = vld [vmem:[%s5 + $0x30] sm:$0x1]
          %v1239 = vld [vmem:[%s5 + $0x38] sm:$0x1]
          %v1248 = vrot.slane %v1233, 7
          %vm1249 = vcmask 1041409
          %v1250 = vsel %vm1249, %v1248, %v1232
          %v1251 = vrot.slane %v1234, 6
          %vm1252 = vcmask 1042434
          %v1253 = vsel %vm1252, %v1251, %v1250
          %v1254 = vrot.slane %v1235, 5
          %vm1255 = vcmask 1043459
          %v1256 = vsel %vm1255, %v1254, %v1253
          %v1257 = vrot.slane %v1236, 4
          %vm1258 = vcmask 1044484
          %v1259 = vsel %vm1258, %v1257, %v1256
          %v1260 = vrot.slane %v1237, 3
          %vm1261 = vcmask 1045509
          %v1262 = vsel %vm1261, %v1260, %v1259
          %v1263 = vrot.slane %v1238, 2
          %vm1264 = vcmask 1046534
          %v1265 = vsel %vm1264, %v1263, %v1262
          %v1266 = vrot.slane %v1239, 1
          %vm1267 = vcmask 1047559
          %v1268 = vsel %vm1267, %v1266, %v1265
          %v1271 = vsel %vm1037, %v1187, 0
          %1273 = vmatprep.subr.mxu0 0.0
          %1274 = vmatpush1.msra.mxu0 0.0
          %1275 = vmatprep.subr.mxu0 0.0
          %1276 = vmatpush1.msra.mxu0 0.0
          %1277 = vmatprep.subr.mxu0 0.0
          %1278 = vmatpush1.msra.mxu0 0.0
          %1279 = vmatprep.subr.mxu0 0.0
          %1280 = vmatpush1.msra.mxu0 0.0
          %1281 = vmatprep.subr.mxu0 0.0
          %1282 = vmatpush1.msra.mxu0 0.0
          %1283 = vmatprep.subr.mxu0 0.0
          %1284 = vmatpush1.msra.mxu0 0.0
          %1285 = vmatprep.subr.mxu0 0.0
          %1286 = vmatpush1.msra.mxu0 0.0
          %1287 = vmatprep.subr.mxu0 0.0
          %1288 = vmatpush1.msra.mxu0 0.0
          %1289 = vmatprep.subr.mxu0 0.0
          %1290 = vmatpush1.msra.mxu0 0.0
          %1291 = vmatprep.subr.mxu0 0.0
          %1292 = vmatpush1.msra.mxu0 0.0
          %1293 = vmatprep.subr.mxu0 0.0
          %1294 = vmatpush1.msra.mxu0 0.0
          %1295 = vmatprep.subr.mxu0 0.0
          %1296 = vmatpush1.msra.mxu0 0.0
          %1297 = vmatprep.subr.mxu0 0.0
          %1298 = vmatpush1.msra.mxu0 %v1231
          %1299 = vmatprep.subr.mxu0 0.0
          %1300 = vmatpush1.msra.mxu0 %v1229
          %1301 = vmatprep.subr.mxu0 0.0
          %1302 = vmatpush1.msra.mxu0 %v1227
          %1303 = vmatprep.subr.mxu0 0.0
          %1304 = vmatpush1.msra.mxu0 %v1225
          %1305 = vmatprep.subr.mxu0 0.0
          %1306 = vmatpush2.msra.mxu0 0.0
          %1307 = vmatprep.subr.mxu0 0.0
          %1308 = vmatpush2.msra.mxu0 0.0
          %1309 = vmatprep.subr.mxu0 0.0
          %1310 = vmatpush2.msra.mxu0 0.0
          %1311 = vmatprep.subr.mxu0 0.0
          %1312 = vmatpush2.msra.mxu0 0.0
          %1313 = vmatprep.subr.mxu0 0.0
          %1314 = vmatpush2.msra.mxu0 0.0
          %1315 = vmatprep.subr.mxu0 0.0
          %1316 = vmatpush2.msra.mxu0 0.0
          %1317 = vmatprep.subr.mxu0 0.0
          %1318 = vmatpush2.msra.mxu0 0.0
          %1319 = vmatprep.subr.mxu0 0.0
          %1320 = vmatpush2.msra.mxu0 0.0
          %1321 = vmatprep.subr.mxu0 0.0
          %1322 = vmatpush2.msra.mxu0 0.0
          %1323 = vmatprep.subr.mxu0 0.0
          %1324 = vmatpush2.msra.mxu0 0.0
          %1325 = vmatprep.subr.mxu0 0.0
          %1326 = vmatpush2.msra.mxu0 0.0
          %1327 = vmatprep.subr.mxu0 0.0
          %1328 = vmatpush2.msra.mxu0 0.0
          %1329 = vmatprep.subr.mxu0 0.0
          %1330 = vmatpush2.msra.mxu0 0.0
          %1331 = vmatprep.subr.mxu0 0.0
          %1332 = vmatpush2.msra.mxu0 0.0
          %1333 = vmatprep.subr.mxu0 0.0
          %1334 = vmatpush2.msra.mxu0 0.0
          %1335 = vmatprep.subr.mxu0 0.0
          %1336 = vmatpush2.msra.mxu0 0.0
          %1337 = vmatprep.mubr.f32.mxu0 0.0
          %1338 = vmatmul.mubr.f32.gmra.mxu0 %v1271
          %v1339 = vpop.f32.mrf.mxu0
          %v1340 = vadd.f32 %v1268, %v1339
          %v1341 = vpop.f32.mrf.mxu0
          %1342 = vdwg.mxu0
          %v1344 = vcombine.high %v1340, %v1340
          %v1346 = vunpack.c.l.s4 1966171168
          %v1347 = vunpack.c.0.s8 %v1346
          %v1348 = vlaneseq
          %v1349 = vshrl.u32 %v1348, 7
          %v1350 = vsub.s32 %v1347, %v1349
          %v1351 = vrot.slane %v1340, %v1350
          %v1353 = vunpack.c.l.s4 1966171168
          %v1354 = vunpack.c.0.s8 %v1353
          %v1355 = vlaneseq
          %v1356 = vshrl.u32 %v1355, 7
          %v1357 = vsub.s32 %v1354, %v1356
          %v1358 = vrot.slane %v1344, %v1357
          %v1359 = vcombine.high %v1351, %v1351
          %v1360 = vcombine.high %v1358, %v1358
          %v1362 = vunpack.c.l.s4 1966171168
          %v1363 = vunpack.c.0.s8 %v1362
          %v1364 = vlaneseq
          %v1365 = vshrl.u32 %v1364, 7
          %v1366 = vsub.s32 %v1363, %v1365
          %v1367 = vrot.slane %v1351, %v1366
          %v1369 = vunpack.c.l.s4 1966171168
          %v1370 = vunpack.c.0.s8 %v1369
          %v1371 = vlaneseq
          %v1372 = vshrl.u32 %v1371, 7
          %v1373 = vsub.s32 %v1370, %v1372
          %v1374 = vrot.slane %v1358, %v1373
          %v1376 = vunpack.c.l.s4 1966171168
          %v1377 = vunpack.c.0.s8 %v1376
          %v1378 = vlaneseq
          %v1379 = vshrl.u32 %v1378, 7
          %v1380 = vsub.s32 %v1377, %v1379
          %v1381 = vrot.slane %v1359, %v1380
          %v1383 = vunpack.c.l.s4 1966171168
          %v1384 = vunpack.c.0.s8 %v1383
          %v1385 = vlaneseq
          %v1386 = vshrl.u32 %v1385, 7
          %v1387 = vsub.s32 %v1384, %v1386
          %v1388 = vrot.slane %v1360, %v1387
          %v1389 = vcombine.high %v1367, %v1367
          %v1390 = vcombine.high %v1374, %v1374
          %v1391 = vcombine.high %v1381, %v1381
          %v1392 = vcombine.high %v1388, %v1388
          %vm1401 = vcmask 57344
          %1402 = vst.msk [vmem:[#allocation3] sm:$0x1] %vm1401, %v1367
          %1403 = vst.msk [vmem:[#allocation3 + $0x8] sm:$0x1] %vm1401, %v1381
          %1404 = vst.msk [vmem:[#allocation3 + $0x10] sm:$0x1] %vm1401, %v1389
          %1405 = vst.msk [vmem:[#allocation3 + $0x18] sm:$0x1] %vm1401, %v1391
          %1406 = vst.msk [vmem:[#allocation3 + $0x20] sm:$0x1] %vm1401, %v1374
          %1407 = vst.msk [vmem:[#allocation3 + $0x28] sm:$0x1] %vm1401, %v1388
          %1408 = vst.msk [vmem:[#allocation3 + $0x30] sm:$0x1] %vm1401, %v1390
          %1409 = vst.msk [vmem:[#allocation3 + $0x38] sm:$0x1] %vm1401, %v1392
          %v1410 = vlaneseq
          %v1411 = vshrl.u32 %v1410, 7
          %v1412 = vsub.s32 1, %v1411
          %v1413 = vrot.slane %v1182, %v1412
          %v1414 = vsub.f32 %v1413, %v1195
          %v1415 = vsub.f32 %v1413, %v1200
          %v1416 = vsub.f32 %v1413, %v1205
          %v1417 = vsub.f32 %v1413, %v1210
          %v1418 = vmul.f32 %v1414, -4.8050003
          %v1419 = vmul.f32 %v1415, -4.8050003
          %v1420 = vmul.f32 %v1416, -4.8050003
          %v1421 = vmul.f32 %v1417, -4.8050003
          %v1422 = vmul.f32 %v1418, %v1414
          %v1423 = vmul.f32 %v1419, %v1415
          %v1424 = vmul.f32 %v1420, %v1416
          %v1425 = vmul.f32 %v1421, %v1417
          %v1426 = vmul.f32 %v1422, 1.442695
          %v1427 = vpow.pop %v1426
          %v1428 = vmul.f32 %v1423, 1.442695
          %v1429 = vpow.pop %v1428
          %v1430 = vmul.f32 %v1424, 1.442695
          %v1431 = vpow.pop %v1430
          %v1432 = vmul.f32 %v1425, 1.442695
          %v1433 = vpow.pop %v1432
          %v1434 = vld [vmem:[%s5 + $0x1] sm:$0x1]
          %v1435 = vld [vmem:[%s5 + $0x9] sm:$0x1]
          %v1436 = vld [vmem:[%s5 + $0x11] sm:$0x1]
          %v1437 = vld [vmem:[%s5 + $0x19] sm:$0x1]
          %v1438 = vld [vmem:[%s5 + $0x21] sm:$0x1]
          %v1439 = vld [vmem:[%s5 + $0x29] sm:$0x1]
          %v1440 = vld [vmem:[%s5 + $0x31] sm:$0x1]
          %v1441 = vld [vmem:[%s5 + $0x39] sm:$0x1]
          %v1450 = vrot.slane %v1435, 7
          %v1451 = vsel %vm1249, %v1450, %v1434
          %v1452 = vrot.slane %v1436, 6
          %v1453 = vsel %vm1252, %v1452, %v1451
          %v1454 = vrot.slane %v1437, 5
          %v1455 = vsel %vm1255, %v1454, %v1453
          %v1456 = vrot.slane %v1438, 4
          %v1457 = vsel %vm1258, %v1456, %v1455
          %v1458 = vrot.slane %v1439, 3
          %v1459 = vsel %vm1261, %v1458, %v1457
          %v1460 = vrot.slane %v1440, 2
          %v1461 = vsel %vm1264, %v1460, %v1459
          %v1462 = vrot.slane %v1441, 1
          %v1463 = vsel %vm1267, %v1462, %v1461
          %1465 = vmatprep.subr.mxu0 0.0
          %1466 = vmatpush1.msra.mxu0 0.0
          %1467 = vmatprep.subr.mxu0 0.0
          %1468 = vmatpush1.msra.mxu0 0.0
          %1469 = vmatprep.subr.mxu0 0.0
          %1470 = vmatpush1.msra.mxu0 0.0
          %1471 = vmatprep.subr.mxu0 0.0
          %1472 = vmatpush1.msra.mxu0 0.0
          %1473 = vmatprep.subr.mxu0 0.0
          %1474 = vmatpush1.msra.mxu0 0.0
          %1475 = vmatprep.subr.mxu0 0.0
          %1476 = vmatpush1.msra.mxu0 0.0
          %1477 = vmatprep.subr.mxu0 0.0
          %1478 = vmatpush1.msra.mxu0 0.0
          %1479 = vmatprep.subr.mxu0 0.0
          %1480 = vmatpush1.msra.mxu0 0.0
          %1481 = vmatprep.subr.mxu0 0.0
          %1482 = vmatpush1.msra.mxu0 0.0
          %1483 = vmatprep.subr.mxu0 0.0
          %1484 = vmatpush1.msra.mxu0 0.0
          %1485 = vmatprep.subr.mxu0 0.0
          %1486 = vmatpush1.msra.mxu0 0.0
          %1487 = vmatprep.subr.mxu0 0.0
          %1488 = vmatpush1.msra.mxu0 0.0
          %1489 = vmatprep.subr.mxu0 0.0
          %1490 = vmatpush1.msra.mxu0 %v1433
          %1491 = vmatprep.subr.mxu0 0.0
          %1492 = vmatpush1.msra.mxu0 %v1431
          %1493 = vmatprep.subr.mxu0 0.0
          %1494 = vmatpush1.msra.mxu0 %v1429
          %1495 = vmatprep.subr.mxu0 0.0
          %1496 = vmatpush1.msra.mxu0 %v1427
          %1497 = vmatprep.subr.mxu0 0.0
          %1498 = vmatpush2.msra.mxu0 0.0
          %1499 = vmatprep.subr.mxu0 0.0
          %1500 = vmatpush2.msra.mxu0 0.0
          %1501 = vmatprep.subr.mxu0 0.0
          %1502 = vmatpush2.msra.mxu0 0.0
          %1503 = vmatprep.subr.mxu0 0.0
          %1504 = vmatpush2.msra.mxu0 0.0
          %1505 = vmatprep.subr.mxu0 0.0
          %1506 = vmatpush2.msra.mxu0 0.0
          %1507 = vmatprep.subr.mxu0 0.0
          %1508 = vmatpush2.msra.mxu0 0.0
          %1509 = vmatprep.subr.mxu0 0.0
          %1510 = vmatpush2.msra.mxu0 0.0
          %1511 = vmatprep.subr.mxu0 0.0
          %1512 = vmatpush2.msra.mxu0 0.0
          %1513 = vmatprep.subr.mxu0 0.0
          %1514 = vmatpush2.msra.mxu0 0.0
          %1515 = vmatprep.subr.mxu0 0.0
          %1516 = vmatpush2.msra.mxu0 0.0
          %1517 = vmatprep.subr.mxu0 0.0
          %1518 = vmatpush2.msra.mxu0 0.0
          %1519 = vmatprep.subr.mxu0 0.0
          %1520 = vmatpush2.msra.mxu0 0.0
          %1521 = vmatprep.subr.mxu0 0.0
          %1522 = vmatpush2.msra.mxu0 0.0
          %1523 = vmatprep.subr.mxu0 0.0
          %1524 = vmatpush2.msra.mxu0 0.0
          %1525 = vmatprep.subr.mxu0 0.0
          %1526 = vmatpush2.msra.mxu0 0.0
          %1527 = vmatprep.subr.mxu0 0.0
          %1528 = vmatpush2.msra.mxu0 0.0
          %1529 = vmatprep.mubr.f32.mxu0 0.0
          %1530 = vmatmul.mubr.f32.gmra.mxu0 %v1271
          %v1531 = vpop.f32.mrf.mxu0
          %v1532 = vadd.f32 %v1463, %v1531
          %v1533 = vpop.f32.mrf.mxu0
          %1534 = vdwg.mxu0
          %v1536 = vcombine.high %v1532, %v1532
          %v1538 = vunpack.c.l.s4 1966171168
          %v1539 = vunpack.c.0.s8 %v1538
          %v1540 = vlaneseq
          %v1541 = vshrl.u32 %v1540, 7
          %v1542 = vsub.s32 %v1539, %v1541
          %v1543 = vrot.slane %v1532, %v1542
          %v1545 = vunpack.c.l.s4 1966171168
          %v1546 = vunpack.c.0.s8 %v1545
          %v1547 = vlaneseq
          %v1548 = vshrl.u32 %v1547, 7
          %v1549 = vsub.s32 %v1546, %v1548
          %v1550 = vrot.slane %v1536, %v1549
          %v1551 = vcombine.high %v1543, %v1543
          %v1552 = vcombine.high %v1550, %v1550
          %v1554 = vunpack.c.l.s4 1966171168
          %v1555 = vunpack.c.0.s8 %v1554
          %v1556 = vlaneseq
          %v1557 = vshrl.u32 %v1556, 7
          %v1558 = vsub.s32 %v1555, %v1557
          %v1559 = vrot.slane %v1543, %v1558
          %v1561 = vunpack.c.l.s4 1966171168
          %v1562 = vunpack.c.0.s8 %v1561
          %v1563 = vlaneseq
          %v1564 = vshrl.u32 %v1563, 7
          %v1565 = vsub.s32 %v1562, %v1564
          %v1566 = vrot.slane %v1550, %v1565
          %v1568 = vunpack.c.l.s4 1966171168
          %v1569 = vunpack.c.0.s8 %v1568
          %v1570 = vlaneseq
          %v1571 = vshrl.u32 %v1570, 7
          %v1572 = vsub.s32 %v1569, %v1571
          %v1573 = vrot.slane %v1551, %v1572
          %v1575 = vunpack.c.l.s4 1966171168
          %v1576 = vunpack.c.0.s8 %v1575
          %v1577 = vlaneseq
          %v1578 = vshrl.u32 %v1577, 7
          %v1579 = vsub.s32 %v1576, %v1578
          %v1580 = vrot.slane %v1552, %v1579
          %v1581 = vcombine.high %v1559, %v1559
          %v1582 = vcombine.high %v1566, %v1566
          %v1583 = vcombine.high %v1573, %v1573
          %v1584 = vcombine.high %v1580, %v1580
          %1593 = vst.msk [vmem:[#allocation3 + $0x1] sm:$0x1] %vm1401, %v1559
          %1594 = vst.msk [vmem:[#allocation3 + $0x9] sm:$0x1] %vm1401, %v1573
          %1595 = vst.msk [vmem:[#allocation3 + $0x11] sm:$0x1] %vm1401, %v1581
          %1596 = vst.msk [vmem:[#allocation3 + $0x19] sm:$0x1] %vm1401, %v1583
          %1597 = vst.msk [vmem:[#allocation3 + $0x21] sm:$0x1] %vm1401, %v1566
          %1598 = vst.msk [vmem:[#allocation3 + $0x29] sm:$0x1] %vm1401, %v1580
          %1599 = vst.msk [vmem:[#allocation3 + $0x31] sm:$0x1] %vm1401, %v1582
          %1600 = vst.msk [vmem:[#allocation3 + $0x39] sm:$0x1] %vm1401, %v1584
          %v1601 = vlaneseq
          %v1602 = vshrl.u32 %v1601, 7
          %v1603 = vsub.s32 2, %v1602
          %v1604 = vrot.slane %v1182, %v1603
          %v1605 = vsub.f32 %v1604, %v1195
          %v1606 = vsub.f32 %v1604, %v1200
          %v1607 = vsub.f32 %v1604, %v1205
          %v1608 = vsub.f32 %v1604, %v1210
          %v1609 = vmul.f32 %v1605, -4.8050003
          %v1610 = vmul.f32 %v1606, -4.8050003
          %v1611 = vmul.f32 %v1607, -4.8050003
          %v1612 = vmul.f32 %v1608, -4.8050003
          %v1613 = vmul.f32 %v1609, %v1605
          %v1614 = vmul.f32 %v1610, %v1606
          %v1615 = vmul.f32 %v1611, %v1607
          %v1616 = vmul.f32 %v1612, %v1608
          %v1617 = vmul.f32 %v1613, 1.442695
          %v1618 = vpow.pop %v1617
          %v1619 = vmul.f32 %v1614, 1.442695
          %v1620 = vpow.pop %v1619
          %v1621 = vmul.f32 %v1615, 1.442695
          %v1622 = vpow.pop %v1621
          %v1623 = vmul.f32 %v1616, 1.442695
          %v1624 = vpow.pop %v1623
          %v1625 = vld [vmem:[%s5 + $0x2] sm:$0x1]
          %v1626 = vld [vmem:[%s5 + $0xa] sm:$0x1]
          %v1627 = vld [vmem:[%s5 + $0x12] sm:$0x1]
          %v1628 = vld [vmem:[%s5 + $0x1a] sm:$0x1]
          %v1629 = vld [vmem:[%s5 + $0x22] sm:$0x1]
          %v1630 = vld [vmem:[%s5 + $0x2a] sm:$0x1]
          %v1631 = vld [vmem:[%s5 + $0x32] sm:$0x1]
          %v1632 = vld [vmem:[%s5 + $0x3a] sm:$0x1]
          %v1641 = vrot.slane %v1626, 7
          %v1642 = vsel %vm1249, %v1641, %v1625
          %v1643 = vrot.slane %v1627, 6
          %v1644 = vsel %vm1252, %v1643, %v1642
          %v1645 = vrot.slane %v1628, 5
          %v1646 = vsel %vm1255, %v1645, %v1644
          %v1647 = vrot.slane %v1629, 4
          %v1648 = vsel %vm1258, %v1647, %v1646
          %v1649 = vrot.slane %v1630, 3
          %v1650 = vsel %vm1261, %v1649, %v1648
          %v1651 = vrot.slane %v1631, 2
          %v1652 = vsel %vm1264, %v1651, %v1650
          %v1653 = vrot.slane %v1632, 1
          %v1654 = vsel %vm1267, %v1653, %v1652
          %1656 = vmatprep.subr.mxu0 0.0
          %1657 = vmatpush1.msra.mxu0 0.0
          %1658 = vmatprep.subr.mxu0 0.0
          %1659 = vmatpush1.msra.mxu0 0.0
          %1660 = vmatprep.subr.mxu0 0.0
          %1661 = vmatpush1.msra.mxu0 0.0
          %1662 = vmatprep.subr.mxu0 0.0
          %1663 = vmatpush1.msra.mxu0 0.0
          %1664 = vmatprep.subr.mxu0 0.0
          %1665 = vmatpush1.msra.mxu0 0.0
          %1666 = vmatprep.subr.mxu0 0.0
          %1667 = vmatpush1.msra.mxu0 0.0
          %1668 = vmatprep.subr.mxu0 0.0
          %1669 = vmatpush1.msra.mxu0 0.0
          %1670 = vmatprep.subr.mxu0 0.0
          %1671 = vmatpush1.msra.mxu0 0.0
          %1672 = vmatprep.subr.mxu0 0.0
          %1673 = vmatpush1.msra.mxu0 0.0
          %1674 = vmatprep.subr.mxu0 0.0
          %1675 = vmatpush1.msra.mxu0 0.0
          %1676 = vmatprep.subr.mxu0 0.0
          %1677 = vmatpush1.msra.mxu0 0.0
          %1678 = vmatprep.subr.mxu0 0.0
          %1679 = vmatpush1.msra.mxu0 0.0
          %1680 = vmatprep.subr.mxu0 0.0
          %1681 = vmatpush1.msra.mxu0 %v1624
          %1682 = vmatprep.subr.mxu0 0.0
          %1683 = vmatpush1.msra.mxu0 %v1622
          %1684 = vmatprep.subr.mxu0 0.0
          %1685 = vmatpush1.msra.mxu0 %v1620
          %1686 = vmatprep.subr.mxu0 0.0
          %1687 = vmatpush1.msra.mxu0 %v1618
          %1688 = vmatprep.subr.mxu0 0.0
          %1689 = vmatpush2.msra.mxu0 0.0
          %1690 = vmatprep.subr.mxu0 0.0
          %1691 = vmatpush2.msra.mxu0 0.0
          %1692 = vmatprep.subr.mxu0 0.0
          %1693 = vmatpush2.msra.mxu0 0.0
          %1694 = vmatprep.subr.mxu0 0.0
          %1695 = vmatpush2.msra.mxu0 0.0
          %1696 = vmatprep.subr.mxu0 0.0
          %1697 = vmatpush2.msra.mxu0 0.0
          %1698 = vmatprep.subr.mxu0 0.0
          %1699 = vmatpush2.msra.mxu0 0.0
          %1700 = vmatprep.subr.mxu0 0.0
          %1701 = vmatpush2.msra.mxu0 0.0
          %1702 = vmatprep.subr.mxu0 0.0
          %1703 = vmatpush2.msra.mxu0 0.0
          %1704 = vmatprep.subr.mxu0 0.0
          %1705 = vmatpush2.msra.mxu0 0.0
          %1706 = vmatprep.subr.mxu0 0.0
          %1707 = vmatpush2.msra.mxu0 0.0
          %1708 = vmatprep.subr.mxu0 0.0
          %1709 = vmatpush2.msra.mxu0 0.0
          %1710 = vmatprep.subr.mxu0 0.0
          %1711 = vmatpush2.msra.mxu0 0.0
          %1712 = vmatprep.subr.mxu0 0.0
          %1713 = vmatpush2.msra.mxu0 0.0
          %1714 = vmatprep.subr.mxu0 0.0
          %1715 = vmatpush2.msra.mxu0 0.0
          %1716 = vmatprep.subr.mxu0 0.0
          %1717 = vmatpush2.msra.mxu0 0.0
          %1718 = vmatprep.subr.mxu0 0.0
          %1719 = vmatpush2.msra.mxu0 0.0
          %1720 = vmatprep.mubr.f32.mxu0 0.0
          %1721 = vmatmul.mubr.f32.gmra.mxu0 %v1271
          %v1722 = vpop.f32.mrf.mxu0
          %v1723 = vadd.f32 %v1654, %v1722
          %v1724 = vpop.f32.mrf.mxu0
          %1725 = vdwg.mxu0
          %v1727 = vcombine.high %v1723, %v1723
          %v1729 = vunpack.c.l.s4 1966171168
          %v1730 = vunpack.c.0.s8 %v1729
          %v1731 = vlaneseq
          %v1732 = vshrl.u32 %v1731, 7
          %v1733 = vsub.s32 %v1730, %v1732
          %v1734 = vrot.slane %v1723, %v1733
          %v1736 = vunpack.c.l.s4 1966171168
          %v1737 = vunpack.c.0.s8 %v1736
          %v1738 = vlaneseq
          %v1739 = vshrl.u32 %v1738, 7
          %v1740 = vsub.s32 %v1737, %v1739
          %v1741 = vrot.slane %v1727, %v1740
          %v1742 = vcombine.high %v1734, %v1734
          %v1743 = vcombine.high %v1741, %v1741
          %v1745 = vunpack.c.l.s4 1966171168
          %v1746 = vunpack.c.0.s8 %v1745
          %v1747 = vlaneseq
          %v1748 = vshrl.u32 %v1747, 7
          %v1749 = vsub.s32 %v1746, %v1748
          %v1750 = vrot.slane %v1734, %v1749
          %v1752 = vunpack.c.l.s4 1966171168
          %v1753 = vunpack.c.0.s8 %v1752
          %v1754 = vlaneseq
          %v1755 = vshrl.u32 %v1754, 7
          %v1756 = vsub.s32 %v1753, %v1755
          %v1757 = vrot.slane %v1741, %v1756
          %v1759 = vunpack.c.l.s4 1966171168
          %v1760 = vunpack.c.0.s8 %v1759
          %v1761 = vlaneseq
          %v1762 = vshrl.u32 %v1761, 7
          %v1763 = vsub.s32 %v1760, %v1762
          %v1764 = vrot.slane %v1742, %v1763
          %v1766 = vunpack.c.l.s4 1966171168
          %v1767 = vunpack.c.0.s8 %v1766
          %v1768 = vlaneseq
          %v1769 = vshrl.u32 %v1768, 7
          %v1770 = vsub.s32 %v1767, %v1769
          %v1771 = vrot.slane %v1743, %v1770
          %v1772 = vcombine.high %v1750, %v1750
          %v1773 = vcombine.high %v1757, %v1757
          %v1774 = vcombine.high %v1764, %v1764
          %v1775 = vcombine.high %v1771, %v1771
          %1784 = vst.msk [vmem:[#allocation3 + $0x2] sm:$0x1] %vm1401, %v1750
          %1785 = vst.msk [vmem:[#allocation3 + $0xa] sm:$0x1] %vm1401, %v1764
          %1786 = vst.msk [vmem:[#allocation3 + $0x12] sm:$0x1] %vm1401, %v1772
          %1787 = vst.msk [vmem:[#allocation3 + $0x1a] sm:$0x1] %vm1401, %v1774
          %1788 = vst.msk [vmem:[#allocation3 + $0x22] sm:$0x1] %vm1401, %v1757
          %1789 = vst.msk [vmem:[#allocation3 + $0x2a] sm:$0x1] %vm1401, %v1771
          %1790 = vst.msk [vmem:[#allocation3 + $0x32] sm:$0x1] %vm1401, %v1773
          %1791 = vst.msk [vmem:[#allocation3 + $0x3a] sm:$0x1] %vm1401, %v1775
          %v1792 = vlaneseq
          %v1793 = vshrl.u32 %v1792, 7
          %v1794 = vsub.s32 3, %v1793
          %v1795 = vrot.slane %v1182, %v1794
          %v1796 = vsub.f32 %v1795, %v1195
          %v1797 = vsub.f32 %v1795, %v1200
          %v1798 = vsub.f32 %v1795, %v1205
          %v1799 = vsub.f32 %v1795, %v1210
          %v1800 = vmul.f32 %v1796, -4.8050003
          %v1801 = vmul.f32 %v1797, -4.8050003
          %v1802 = vmul.f32 %v1798, -4.8050003
          %v1803 = vmul.f32 %v1799, -4.8050003
          %v1804 = vmul.f32 %v1800, %v1796
          %v1805 = vmul.f32 %v1801, %v1797
          %v1806 = vmul.f32 %v1802, %v1798
          %v1807 = vmul.f32 %v1803, %v1799
          %v1808 = vmul.f32 %v1804, 1.442695
          %v1809 = vpow.pop %v1808
          %v1810 = vmul.f32 %v1805, 1.442695
          %v1811 = vpow.pop %v1810
          %v1812 = vmul.f32 %v1806, 1.442695
          %v1813 = vpow.pop %v1812
          %v1814 = vmul.f32 %v1807, 1.442695
          %v1815 = vpow.pop %v1814
          %v1816 = vld [vmem:[%s5 + $0x3] sm:$0x1]
          %v1817 = vld [vmem:[%s5 + $0xb] sm:$0x1]
          %v1818 = vld [vmem:[%s5 + $0x13] sm:$0x1]
          %v1819 = vld [vmem:[%s5 + $0x1b] sm:$0x1]
          %v1820 = vld [vmem:[%s5 + $0x23] sm:$0x1]
          %v1821 = vld [vmem:[%s5 + $0x2b] sm:$0x1]
          %v1822 = vld [vmem:[%s5 + $0x33] sm:$0x1]
          %v1823 = vld [vmem:[%s5 + $0x3b] sm:$0x1]
          %v1832 = vrot.slane %v1817, 7
          %v1833 = vsel %vm1249, %v1832, %v1816
          %v1834 = vrot.slane %v1818, 6
          %v1835 = vsel %vm1252, %v1834, %v1833
          %v1836 = vrot.slane %v1819, 5
          %v1837 = vsel %vm1255, %v1836, %v1835
          %v1838 = vrot.slane %v1820, 4
          %v1839 = vsel %vm1258, %v1838, %v1837
          %v1840 = vrot.slane %v1821, 3
          %v1841 = vsel %vm1261, %v1840, %v1839
          %v1842 = vrot.slane %v1822, 2
          %v1843 = vsel %vm1264, %v1842, %v1841
          %v1844 = vrot.slane %v1823, 1
          %v1845 = vsel %vm1267, %v1844, %v1843
          %1847 = vmatprep.subr.mxu0 0.0
          %1848 = vmatpush1.msra.mxu0 0.0
          %1849 = vmatprep.subr.mxu0 0.0
          %1850 = vmatpush1.msra.mxu0 0.0
          %1851 = vmatprep.subr.mxu0 0.0
          %1852 = vmatpush1.msra.mxu0 0.0
          %1853 = vmatprep.subr.mxu0 0.0
          %1854 = vmatpush1.msra.mxu0 0.0
          %1855 = vmatprep.subr.mxu0 0.0
          %1856 = vmatpush1.msra.mxu0 0.0
          %1857 = vmatprep.subr.mxu0 0.0
          %1858 = vmatpush1.msra.mxu0 0.0
          %1859 = vmatprep.subr.mxu0 0.0
          %1860 = vmatpush1.msra.mxu0 0.0
          %1861 = vmatprep.subr.mxu0 0.0
          %1862 = vmatpush1.msra.mxu0 0.0
          %1863 = vmatprep.subr.mxu0 0.0
          %1864 = vmatpush1.msra.mxu0 0.0
          %1865 = vmatprep.subr.mxu0 0.0
          %1866 = vmatpush1.msra.mxu0 0.0
          %1867 = vmatprep.subr.mxu0 0.0
          %1868 = vmatpush1.msra.mxu0 0.0
          %1869 = vmatprep.subr.mxu0 0.0
          %1870 = vmatpush1.msra.mxu0 0.0
          %1871 = vmatprep.subr.mxu0 0.0
          %1872 = vmatpush1.msra.mxu0 %v1815
          %1873 = vmatprep.subr.mxu0 0.0
          %1874 = vmatpush1.msra.mxu0 %v1813
          %1875 = vmatprep.subr.mxu0 0.0
          %1876 = vmatpush1.msra.mxu0 %v1811
          %1877 = vmatprep.subr.mxu0 0.0
          %1878 = vmatpush1.msra.mxu0 %v1809
          %1879 = vmatprep.subr.mxu0 0.0
          %1880 = vmatpush2.msra.mxu0 0.0
          %1881 = vmatprep.subr.mxu0 0.0
          %1882 = vmatpush2.msra.mxu0 0.0
          %1883 = vmatprep.subr.mxu0 0.0
          %1884 = vmatpush2.msra.mxu0 0.0
          %1885 = vmatprep.subr.mxu0 0.0
          %1886 = vmatpush2.msra.mxu0 0.0
          %1887 = vmatprep.subr.mxu0 0.0
          %1888 = vmatpush2.msra.mxu0 0.0
          %1889 = vmatprep.subr.mxu0 0.0
          %1890 = vmatpush2.msra.mxu0 0.0
          %1891 = vmatprep.subr.mxu0 0.0
          %1892 = vmatpush2.msra.mxu0 0.0
          %1893 = vmatprep.subr.mxu0 0.0
          %1894 = vmatpush2.msra.mxu0 0.0
          %1895 = vmatprep.subr.mxu0 0.0
          %1896 = vmatpush2.msra.mxu0 0.0
          %1897 = vmatprep.subr.mxu0 0.0
          %1898 = vmatpush2.msra.mxu0 0.0
          %1899 = vmatprep.subr.mxu0 0.0
          %1900 = vmatpush2.msra.mxu0 0.0
          %1901 = vmatprep.subr.mxu0 0.0
          %1902 = vmatpush2.msra.mxu0 0.0
          %1903 = vmatprep.subr.mxu0 0.0
          %1904 = vmatpush2.msra.mxu0 0.0
          %1905 = vmatprep.subr.mxu0 0.0
          %1906 = vmatpush2.msra.mxu0 0.0
          %1907 = vmatprep.subr.mxu0 0.0
          %1908 = vmatpush2.msra.mxu0 0.0
          %1909 = vmatprep.subr.mxu0 0.0
          %1910 = vmatpush2.msra.mxu0 0.0
          %1911 = vmatprep.mubr.f32.mxu0 0.0
          %1912 = vmatmul.mubr.f32.gmra.mxu0 %v1271
          %v1913 = vpop.f32.mrf.mxu0
          %v1914 = vadd.f32 %v1845, %v1913
          %v1915 = vpop.f32.mrf.mxu0
          %1916 = vdwg.mxu0
          %v1918 = vcombine.high %v1914, %v1914
          %v1920 = vunpack.c.l.s4 1966171168
          %v1921 = vunpack.c.0.s8 %v1920
          %v1922 = vlaneseq
          %v1923 = vshrl.u32 %v1922, 7
          %v1924 = vsub.s32 %v1921, %v1923
          %v1925 = vrot.slane %v1914, %v1924
          %v1927 = vunpack.c.l.s4 1966171168
          %v1928 = vunpack.c.0.s8 %v1927
          %v1929 = vlaneseq
          %v1930 = vshrl.u32 %v1929, 7
          %v1931 = vsub.s32 %v1928, %v1930
          %v1932 = vrot.slane %v1918, %v1931
          %v1933 = vcombine.high %v1925, %v1925
          %v1934 = vcombine.high %v1932, %v1932
          %v1936 = vunpack.c.l.s4 1966171168
          %v1937 = vunpack.c.0.s8 %v1936
          %v1938 = vlaneseq
          %v1939 = vshrl.u32 %v1938, 7
          %v1940 = vsub.s32 %v1937, %v1939
          %v1941 = vrot.slane %v1925, %v1940
          %v1943 = vunpack.c.l.s4 1966171168
          %v1944 = vunpack.c.0.s8 %v1943
          %v1945 = vlaneseq
          %v1946 = vshrl.u32 %v1945, 7
          %v1947 = vsub.s32 %v1944, %v1946
          %v1948 = vrot.slane %v1932, %v1947
          %v1950 = vunpack.c.l.s4 1966171168
          %v1951 = vunpack.c.0.s8 %v1950
          %v1952 = vlaneseq
          %v1953 = vshrl.u32 %v1952, 7
          %v1954 = vsub.s32 %v1951, %v1953
          %v1955 = vrot.slane %v1933, %v1954
          %v1957 = vunpack.c.l.s4 1966171168
          %v1958 = vunpack.c.0.s8 %v1957
          %v1959 = vlaneseq
          %v1960 = vshrl.u32 %v1959, 7
          %v1961 = vsub.s32 %v1958, %v1960
          %v1962 = vrot.slane %v1934, %v1961
          %v1963 = vcombine.high %v1941, %v1941
          %v1964 = vcombine.high %v1948, %v1948
          %v1965 = vcombine.high %v1955, %v1955
          %v1966 = vcombine.high %v1962, %v1962
          %1975 = vst.msk [vmem:[#allocation3 + $0x3] sm:$0x1] %vm1401, %v1941
          %1976 = vst.msk [vmem:[#allocation3 + $0xb] sm:$0x1] %vm1401, %v1955
          %1977 = vst.msk [vmem:[#allocation3 + $0x13] sm:$0x1] %vm1401, %v1963
          %1978 = vst.msk [vmem:[#allocation3 + $0x1b] sm:$0x1] %vm1401, %v1965
          %1979 = vst.msk [vmem:[#allocation3 + $0x23] sm:$0x1] %vm1401, %v1948
          %1980 = vst.msk [vmem:[#allocation3 + $0x2b] sm:$0x1] %vm1401, %v1962
          %1981 = vst.msk [vmem:[#allocation3 + $0x33] sm:$0x1] %vm1401, %v1964
          %1982 = vst.msk [vmem:[#allocation3 + $0x3b] sm:$0x1] %vm1401, %v1966
          %v1983 = vlaneseq
          %v1984 = vshrl.u32 %v1983, 7
          %v1985 = vsub.s32 4, %v1984
          %v1986 = vrot.slane %v1182, %v1985
          %v1987 = vsub.f32 %v1986, %v1195
          %v1988 = vsub.f32 %v1986, %v1200
          %v1989 = vsub.f32 %v1986, %v1205
          %v1990 = vsub.f32 %v1986, %v1210
          %v1991 = vmul.f32 %v1987, -4.8050003
          %v1992 = vmul.f32 %v1988, -4.8050003
          %v1993 = vmul.f32 %v1989, -4.8050003
          %v1994 = vmul.f32 %v1990, -4.8050003
          %v1995 = vmul.f32 %v1991, %v1987
          %v1996 = vmul.f32 %v1992, %v1988
          %v1997 = vmul.f32 %v1993, %v1989
          %v1998 = vmul.f32 %v1994, %v1990
          %v1999 = vmul.f32 %v1995, 1.442695
          %v2000 = vpow.pop %v1999
          %v2001 = vmul.f32 %v1996, 1.442695
          %v2002 = vpow.pop %v2001
          %v2003 = vmul.f32 %v1997, 1.442695
          %v2004 = vpow.pop %v2003
          %v2005 = vmul.f32 %v1998, 1.442695
          %v2006 = vpow.pop %v2005
          %v2007 = vld [vmem:[%s5 + $0x4] sm:$0x1]
          %v2008 = vld [vmem:[%s5 + $0xc] sm:$0x1]
          %v2009 = vld [vmem:[%s5 + $0x14] sm:$0x1]
          %v2010 = vld [vmem:[%s5 + $0x1c] sm:$0x1]
          %v2011 = vld [vmem:[%s5 + $0x24] sm:$0x1]
          %v2012 = vld [vmem:[%s5 + $0x2c] sm:$0x1]
          %v2013 = vld [vmem:[%s5 + $0x34] sm:$0x1]
          %v2014 = vld [vmem:[%s5 + $0x3c] sm:$0x1]
          %v2023 = vrot.slane %v2008, 7
          %v2024 = vsel %vm1249, %v2023, %v2007
          %v2025 = vrot.slane %v2009, 6
          %v2026 = vsel %vm1252, %v2025, %v2024
          %v2027 = vrot.slane %v2010, 5
          %v2028 = vsel %vm1255, %v2027, %v2026
          %v2029 = vrot.slane %v2011, 4
          %v2030 = vsel %vm1258, %v2029, %v2028
          %v2031 = vrot.slane %v2012, 3
          %v2032 = vsel %vm1261, %v2031, %v2030
          %v2033 = vrot.slane %v2013, 2
          %v2034 = vsel %vm1264, %v2033, %v2032
          %v2035 = vrot.slane %v2014, 1
          %v2036 = vsel %vm1267, %v2035, %v2034
          %2038 = vmatprep.subr.mxu0 0.0
          %2039 = vmatpush1.msra.mxu0 0.0
          %2040 = vmatprep.subr.mxu0 0.0
          %2041 = vmatpush1.msra.mxu0 0.0
          %2042 = vmatprep.subr.mxu0 0.0
          %2043 = vmatpush1.msra.mxu0 0.0
          %2044 = vmatprep.subr.mxu0 0.0
          %2045 = vmatpush1.msra.mxu0 0.0
          %2046 = vmatprep.subr.mxu0 0.0
          %2047 = vmatpush1.msra.mxu0 0.0
          %2048 = vmatprep.subr.mxu0 0.0
          %2049 = vmatpush1.msra.mxu0 0.0
          %2050 = vmatprep.subr.mxu0 0.0
          %2051 = vmatpush1.msra.mxu0 0.0
          %2052 = vmatprep.subr.mxu0 0.0
          %2053 = vmatpush1.msra.mxu0 0.0
          %2054 = vmatprep.subr.mxu0 0.0
          %2055 = vmatpush1.msra.mxu0 0.0
          %2056 = vmatprep.subr.mxu0 0.0
          %2057 = vmatpush1.msra.mxu0 0.0
          %2058 = vmatprep.subr.mxu0 0.0
          %2059 = vmatpush1.msra.mxu0 0.0
          %2060 = vmatprep.subr.mxu0 0.0
          %2061 = vmatpush1.msra.mxu0 0.0
          %2062 = vmatprep.subr.mxu0 0.0
          %2063 = vmatpush1.msra.mxu0 %v2006
          %2064 = vmatprep.subr.mxu0 0.0
          %2065 = vmatpush1.msra.mxu0 %v2004
          %2066 = vmatprep.subr.mxu0 0.0
          %2067 = vmatpush1.msra.mxu0 %v2002
          %2068 = vmatprep.subr.mxu0 0.0
          %2069 = vmatpush1.msra.mxu0 %v2000
          %2070 = vmatprep.subr.mxu0 0.0
          %2071 = vmatpush2.msra.mxu0 0.0
          %2072 = vmatprep.subr.mxu0 0.0
          %2073 = vmatpush2.msra.mxu0 0.0
          %2074 = vmatprep.subr.mxu0 0.0
          %2075 = vmatpush2.msra.mxu0 0.0
          %2076 = vmatprep.subr.mxu0 0.0
          %2077 = vmatpush2.msra.mxu0 0.0
          %2078 = vmatprep.subr.mxu0 0.0
          %2079 = vmatpush2.msra.mxu0 0.0
          %2080 = vmatprep.subr.mxu0 0.0
          %2081 = vmatpush2.msra.mxu0 0.0
          %2082 = vmatprep.subr.mxu0 0.0
          %2083 = vmatpush2.msra.mxu0 0.0
          %2084 = vmatprep.subr.mxu0 0.0
          %2085 = vmatpush2.msra.mxu0 0.0
          %2086 = vmatprep.subr.mxu0 0.0
          %2087 = vmatpush2.msra.mxu0 0.0
          %2088 = vmatprep.subr.mxu0 0.0
          %2089 = vmatpush2.msra.mxu0 0.0
          %2090 = vmatprep.subr.mxu0 0.0
          %2091 = vmatpush2.msra.mxu0 0.0
          %2092 = vmatprep.subr.mxu0 0.0
          %2093 = vmatpush2.msra.mxu0 0.0
          %2094 = vmatprep.subr.mxu0 0.0
          %2095 = vmatpush2.msra.mxu0 0.0
          %2096 = vmatprep.subr.mxu0 0.0
          %2097 = vmatpush2.msra.mxu0 0.0
          %2098 = vmatprep.subr.mxu0 0.0
          %2099 = vmatpush2.msra.mxu0 0.0
          %2100 = vmatprep.subr.mxu0 0.0
          %2101 = vmatpush2.msra.mxu0 0.0
          %2102 = vmatprep.mubr.f32.mxu0 0.0
          %2103 = vmatmul.mubr.f32.gmra.mxu0 %v1271
          %v2104 = vpop.f32.mrf.mxu0
          %v2105 = vadd.f32 %v2036, %v2104
          %v2106 = vpop.f32.mrf.mxu0
          %2107 = vdwg.mxu0
          %v2109 = vcombine.high %v2105, %v2105
          %v2111 = vunpack.c.l.s4 1966171168
          %v2112 = vunpack.c.0.s8 %v2111
          %v2113 = vlaneseq
          %v2114 = vshrl.u32 %v2113, 7
          %v2115 = vsub.s32 %v2112, %v2114
          %v2116 = vrot.slane %v2105, %v2115
          %v2118 = vunpack.c.l.s4 1966171168
          %v2119 = vunpack.c.0.s8 %v2118
          %v2120 = vlaneseq
          %v2121 = vshrl.u32 %v2120, 7
          %v2122 = vsub.s32 %v2119, %v2121
          %v2123 = vrot.slane %v2109, %v2122
          %v2124 = vcombine.high %v2116, %v2116
          %v2125 = vcombine.high %v2123, %v2123
          %v2127 = vunpack.c.l.s4 1966171168
          %v2128 = vunpack.c.0.s8 %v2127
          %v2129 = vlaneseq
          %v2130 = vshrl.u32 %v2129, 7
          %v2131 = vsub.s32 %v2128, %v2130
          %v2132 = vrot.slane %v2116, %v2131
          %v2134 = vunpack.c.l.s4 1966171168
          %v2135 = vunpack.c.0.s8 %v2134
          %v2136 = vlaneseq
          %v2137 = vshrl.u32 %v2136, 7
          %v2138 = vsub.s32 %v2135, %v2137
          %v2139 = vrot.slane %v2123, %v2138
          %v2141 = vunpack.c.l.s4 1966171168
          %v2142 = vunpack.c.0.s8 %v2141
          %v2143 = vlaneseq
          %v2144 = vshrl.u32 %v2143, 7
          %v2145 = vsub.s32 %v2142, %v2144
          %v2146 = vrot.slane %v2124, %v2145
          %v2148 = vunpack.c.l.s4 1966171168
          %v2149 = vunpack.c.0.s8 %v2148
          %v2150 = vlaneseq
          %v2151 = vshrl.u32 %v2150, 7
          %v2152 = vsub.s32 %v2149, %v2151
          %v2153 = vrot.slane %v2125, %v2152
          %v2154 = vcombine.high %v2132, %v2132
          %v2155 = vcombine.high %v2139, %v2139
          %v2156 = vcombine.high %v2146, %v2146
          %v2157 = vcombine.high %v2153, %v2153
          %2166 = vst.msk [vmem:[#allocation3 + $0x4] sm:$0x1] %vm1401, %v2132
          %2167 = vst.msk [vmem:[#allocation3 + $0xc] sm:$0x1] %vm1401, %v2146
          %2168 = vst.msk [vmem:[#allocation3 + $0x14] sm:$0x1] %vm1401, %v2154
          %2169 = vst.msk [vmem:[#allocation3 + $0x1c] sm:$0x1] %vm1401, %v2156
          %2170 = vst.msk [vmem:[#allocation3 + $0x24] sm:$0x1] %vm1401, %v2139
          %2171 = vst.msk [vmem:[#allocation3 + $0x2c] sm:$0x1] %vm1401, %v2153
          %2172 = vst.msk [vmem:[#allocation3 + $0x34] sm:$0x1] %vm1401, %v2155
          %2173 = vst.msk [vmem:[#allocation3 + $0x3c] sm:$0x1] %vm1401, %v2157
          %v2174 = vlaneseq
          %v2175 = vshrl.u32 %v2174, 7
          %v2176 = vsub.s32 5, %v2175
          %v2177 = vrot.slane %v1182, %v2176
          %v2178 = vsub.f32 %v2177, %v1195
          %v2179 = vsub.f32 %v2177, %v1200
          %v2180 = vsub.f32 %v2177, %v1205
          %v2181 = vsub.f32 %v2177, %v1210
          %v2182 = vmul.f32 %v2178, -4.8050003
          %v2183 = vmul.f32 %v2179, -4.8050003
          %v2184 = vmul.f32 %v2180, -4.8050003
          %v2185 = vmul.f32 %v2181, -4.8050003
          %v2186 = vmul.f32 %v2182, %v2178
          %v2187 = vmul.f32 %v2183, %v2179
          %v2188 = vmul.f32 %v2184, %v2180
          %v2189 = vmul.f32 %v2185, %v2181
          %v2190 = vmul.f32 %v2186, 1.442695
          %v2191 = vpow.pop %v2190
          %v2192 = vmul.f32 %v2187, 1.442695
          %v2193 = vpow.pop %v2192
          %v2194 = vmul.f32 %v2188, 1.442695
          %v2195 = vpow.pop %v2194
          %v2196 = vmul.f32 %v2189, 1.442695
          %v2197 = vpow.pop %v2196
          %v2198 = vld [vmem:[%s5 + $0x5] sm:$0x1]
          %v2199 = vld [vmem:[%s5 + $0xd] sm:$0x1]
          %v2200 = vld [vmem:[%s5 + $0x15] sm:$0x1]
          %v2201 = vld [vmem:[%s5 + $0x1d] sm:$0x1]
          %v2202 = vld [vmem:[%s5 + $0x25] sm:$0x1]
          %v2203 = vld [vmem:[%s5 + $0x2d] sm:$0x1]
          %v2204 = vld [vmem:[%s5 + $0x35] sm:$0x1]
          %v2205 = vld [vmem:[%s5 + $0x3d] sm:$0x1]
          %v2214 = vrot.slane %v2199, 7
          %v2215 = vsel %vm1249, %v2214, %v2198
          %v2216 = vrot.slane %v2200, 6
          %v2217 = vsel %vm1252, %v2216, %v2215
          %v2218 = vrot.slane %v2201, 5
          %v2219 = vsel %vm1255, %v2218, %v2217
          %v2220 = vrot.slane %v2202, 4
          %v2221 = vsel %vm1258, %v2220, %v2219
          %v2222 = vrot.slane %v2203, 3
          %v2223 = vsel %vm1261, %v2222, %v2221
          %v2224 = vrot.slane %v2204, 2
          %v2225 = vsel %vm1264, %v2224, %v2223
          %v2226 = vrot.slane %v2205, 1
          %v2227 = vsel %vm1267, %v2226, %v2225
          %2229 = vmatprep.subr.mxu0 0.0
          %2230 = vmatpush1.msra.mxu0 0.0
          %2231 = vmatprep.subr.mxu0 0.0
          %2232 = vmatpush1.msra.mxu0 0.0
          %2233 = vmatprep.subr.mxu0 0.0
          %2234 = vmatpush1.msra.mxu0 0.0
          %2235 = vmatprep.subr.mxu0 0.0
          %2236 = vmatpush1.msra.mxu0 0.0
          %2237 = vmatprep.subr.mxu0 0.0
          %2238 = vmatpush1.msra.mxu0 0.0
          %2239 = vmatprep.subr.mxu0 0.0
          %2240 = vmatpush1.msra.mxu0 0.0
          %2241 = vmatprep.subr.mxu0 0.0
          %2242 = vmatpush1.msra.mxu0 0.0
          %2243 = vmatprep.subr.mxu0 0.0
          %2244 = vmatpush1.msra.mxu0 0.0
          %2245 = vmatprep.subr.mxu0 0.0
          %2246 = vmatpush1.msra.mxu0 0.0
          %2247 = vmatprep.subr.mxu0 0.0
          %2248 = vmatpush1.msra.mxu0 0.0
          %2249 = vmatprep.subr.mxu0 0.0
          %2250 = vmatpush1.msra.mxu0 0.0
          %2251 = vmatprep.subr.mxu0 0.0
          %2252 = vmatpush1.msra.mxu0 0.0
          %2253 = vmatprep.subr.mxu0 0.0
          %2254 = vmatpush1.msra.mxu0 %v2197
          %2255 = vmatprep.subr.mxu0 0.0
          %2256 = vmatpush1.msra.mxu0 %v2195
          %2257 = vmatprep.subr.mxu0 0.0
          %2258 = vmatpush1.msra.mxu0 %v2193
          %2259 = vmatprep.subr.mxu0 0.0
          %2260 = vmatpush1.msra.mxu0 %v2191
          %2261 = vmatprep.subr.mxu0 0.0
          %2262 = vmatpush2.msra.mxu0 0.0
          %2263 = vmatprep.subr.mxu0 0.0
          %2264 = vmatpush2.msra.mxu0 0.0
          %2265 = vmatprep.subr.mxu0 0.0
          %2266 = vmatpush2.msra.mxu0 0.0
          %2267 = vmatprep.subr.mxu0 0.0
          %2268 = vmatpush2.msra.mxu0 0.0
          %2269 = vmatprep.subr.mxu0 0.0
          %2270 = vmatpush2.msra.mxu0 0.0
          %2271 = vmatprep.subr.mxu0 0.0
          %2272 = vmatpush2.msra.mxu0 0.0
          %2273 = vmatprep.subr.mxu0 0.0
          %2274 = vmatpush2.msra.mxu0 0.0
          %2275 = vmatprep.subr.mxu0 0.0
          %2276 = vmatpush2.msra.mxu0 0.0
          %2277 = vmatprep.subr.mxu0 0.0
          %2278 = vmatpush2.msra.mxu0 0.0
          %2279 = vmatprep.subr.mxu0 0.0
          %2280 = vmatpush2.msra.mxu0 0.0
          %2281 = vmatprep.subr.mxu0 0.0
          %2282 = vmatpush2.msra.mxu0 0.0
          %2283 = vmatprep.subr.mxu0 0.0
          %2284 = vmatpush2.msra.mxu0 0.0
          %2285 = vmatprep.subr.mxu0 0.0
          %2286 = vmatpush2.msra.mxu0 0.0
          %2287 = vmatprep.subr.mxu0 0.0
          %2288 = vmatpush2.msra.mxu0 0.0
          %2289 = vmatprep.subr.mxu0 0.0
          %2290 = vmatpush2.msra.mxu0 0.0
          %2291 = vmatprep.subr.mxu0 0.0
          %2292 = vmatpush2.msra.mxu0 0.0
          %2293 = vmatprep.mubr.f32.mxu0 0.0
          %2294 = vmatmul.mubr.f32.gmra.mxu0 %v1271
          %v2295 = vpop.f32.mrf.mxu0
          %v2296 = vadd.f32 %v2227, %v2295
          %v2297 = vpop.f32.mrf.mxu0
          %2298 = vdwg.mxu0
          %v2300 = vcombine.high %v2296, %v2296
          %v2302 = vunpack.c.l.s4 1966171168
          %v2303 = vunpack.c.0.s8 %v2302
          %v2304 = vlaneseq
          %v2305 = vshrl.u32 %v2304, 7
          %v2306 = vsub.s32 %v2303, %v2305
          %v2307 = vrot.slane %v2296, %v2306
          %v2309 = vunpack.c.l.s4 1966171168
          %v2310 = vunpack.c.0.s8 %v2309
          %v2311 = vlaneseq
          %v2312 = vshrl.u32 %v2311, 7
          %v2313 = vsub.s32 %v2310, %v2312
          %v2314 = vrot.slane %v2300, %v2313
          %v2315 = vcombine.high %v2307, %v2307
          %v2316 = vcombine.high %v2314, %v2314
          %v2318 = vunpack.c.l.s4 1966171168
          %v2319 = vunpack.c.0.s8 %v2318
          %v2320 = vlaneseq
          %v2321 = vshrl.u32 %v2320, 7
          %v2322 = vsub.s32 %v2319, %v2321
          %v2323 = vrot.slane %v2307, %v2322
          %v2325 = vunpack.c.l.s4 1966171168
          %v2326 = vunpack.c.0.s8 %v2325
          %v2327 = vlaneseq
          %v2328 = vshrl.u32 %v2327, 7
          %v2329 = vsub.s32 %v2326, %v2328
          %v2330 = vrot.slane %v2314, %v2329
          %v2332 = vunpack.c.l.s4 1966171168
          %v2333 = vunpack.c.0.s8 %v2332
          %v2334 = vlaneseq
          %v2335 = vshrl.u32 %v2334, 7
          %v2336 = vsub.s32 %v2333, %v2335
          %v2337 = vrot.slane %v2315, %v2336
          %v2339 = vunpack.c.l.s4 1966171168
          %v2340 = vunpack.c.0.s8 %v2339
          %v2341 = vlaneseq
          %v2342 = vshrl.u32 %v2341, 7
          %v2343 = vsub.s32 %v2340, %v2342
          %v2344 = vrot.slane %v2316, %v2343
          %v2345 = vcombine.high %v2323, %v2323
          %v2346 = vcombine.high %v2330, %v2330
          %v2347 = vcombine.high %v2337, %v2337
          %v2348 = vcombine.high %v2344, %v2344
          %2357 = vst.msk [vmem:[#allocation3 + $0x5] sm:$0x1] %vm1401, %v2323
          %2358 = vst.msk [vmem:[#allocation3 + $0xd] sm:$0x1] %vm1401, %v2337
          %2359 = vst.msk [vmem:[#allocation3 + $0x15] sm:$0x1] %vm1401, %v2345
          %2360 = vst.msk [vmem:[#allocation3 + $0x1d] sm:$0x1] %vm1401, %v2347
          %2361 = vst.msk [vmem:[#allocation3 + $0x25] sm:$0x1] %vm1401, %v2330
          %2362 = vst.msk [vmem:[#allocation3 + $0x2d] sm:$0x1] %vm1401, %v2344
          %2363 = vst.msk [vmem:[#allocation3 + $0x35] sm:$0x1] %vm1401, %v2346
          %2364 = vst.msk [vmem:[#allocation3 + $0x3d] sm:$0x1] %vm1401, %v2348
          %v2365 = vlaneseq
          %v2366 = vshrl.u32 %v2365, 7
          %v2367 = vsub.s32 6, %v2366
          %v2368 = vrot.slane %v1182, %v2367
          %v2369 = vsub.f32 %v2368, %v1195
          %v2370 = vsub.f32 %v2368, %v1200
          %v2371 = vsub.f32 %v2368, %v1205
          %v2372 = vsub.f32 %v2368, %v1210
          %v2373 = vmul.f32 %v2369, -4.8050003
          %v2374 = vmul.f32 %v2370, -4.8050003
          %v2375 = vmul.f32 %v2371, -4.8050003
          %v2376 = vmul.f32 %v2372, -4.8050003
          %v2377 = vmul.f32 %v2373, %v2369
          %v2378 = vmul.f32 %v2374, %v2370
          %v2379 = vmul.f32 %v2375, %v2371
          %v2380 = vmul.f32 %v2376, %v2372
          %v2381 = vmul.f32 %v2377, 1.442695
          %v2382 = vpow.pop %v2381
          %v2383 = vmul.f32 %v2378, 1.442695
          %v2384 = vpow.pop %v2383
          %v2385 = vmul.f32 %v2379, 1.442695
          %v2386 = vpow.pop %v2385
          %v2387 = vmul.f32 %v2380, 1.442695
          %v2388 = vpow.pop %v2387
          %v2389 = vld [vmem:[%s5 + $0x6] sm:$0x1]
          %v2390 = vld [vmem:[%s5 + $0xe] sm:$0x1]
          %v2391 = vld [vmem:[%s5 + $0x16] sm:$0x1]
          %v2392 = vld [vmem:[%s5 + $0x1e] sm:$0x1]
          %v2393 = vld [vmem:[%s5 + $0x26] sm:$0x1]
          %v2394 = vld [vmem:[%s5 + $0x2e] sm:$0x1]
          %v2395 = vld [vmem:[%s5 + $0x36] sm:$0x1]
          %v2396 = vld [vmem:[%s5 + $0x3e] sm:$0x1]
          %v2405 = vrot.slane %v2390, 7
          %v2406 = vsel %vm1249, %v2405, %v2389
          %v2407 = vrot.slane %v2391, 6
          %v2408 = vsel %vm1252, %v2407, %v2406
          %v2409 = vrot.slane %v2392, 5
          %v2410 = vsel %vm1255, %v2409, %v2408
          %v2411 = vrot.slane %v2393, 4
          %v2412 = vsel %vm1258, %v2411, %v2410
          %v2413 = vrot.slane %v2394, 3
          %v2414 = vsel %vm1261, %v2413, %v2412
          %v2415 = vrot.slane %v2395, 2
          %v2416 = vsel %vm1264, %v2415, %v2414
          %v2417 = vrot.slane %v2396, 1
          %v2418 = vsel %vm1267, %v2417, %v2416
          %2420 = vmatprep.subr.mxu0 0.0
          %2421 = vmatpush1.msra.mxu0 0.0
          %2422 = vmatprep.subr.mxu0 0.0
          %2423 = vmatpush1.msra.mxu0 0.0
          %2424 = vmatprep.subr.mxu0 0.0
          %2425 = vmatpush1.msra.mxu0 0.0
          %2426 = vmatprep.subr.mxu0 0.0
          %2427 = vmatpush1.msra.mxu0 0.0
          %2428 = vmatprep.subr.mxu0 0.0
          %2429 = vmatpush1.msra.mxu0 0.0
          %2430 = vmatprep.subr.mxu0 0.0
          %2431 = vmatpush1.msra.mxu0 0.0
          %2432 = vmatprep.subr.mxu0 0.0
          %2433 = vmatpush1.msra.mxu0 0.0
          %2434 = vmatprep.subr.mxu0 0.0
          %2435 = vmatpush1.msra.mxu0 0.0
          %2436 = vmatprep.subr.mxu0 0.0
          %2437 = vmatpush1.msra.mxu0 0.0
          %2438 = vmatprep.subr.mxu0 0.0
          %2439 = vmatpush1.msra.mxu0 0.0
          %2440 = vmatprep.subr.mxu0 0.0
          %2441 = vmatpush1.msra.mxu0 0.0
          %2442 = vmatprep.subr.mxu0 0.0
          %2443 = vmatpush1.msra.mxu0 0.0
          %2444 = vmatprep.subr.mxu0 0.0
          %2445 = vmatpush1.msra.mxu0 %v2388
          %2446 = vmatprep.subr.mxu0 0.0
          %2447 = vmatpush1.msra.mxu0 %v2386
          %2448 = vmatprep.subr.mxu0 0.0
          %2449 = vmatpush1.msra.mxu0 %v2384
          %2450 = vmatprep.subr.mxu0 0.0
          %2451 = vmatpush1.msra.mxu0 %v2382
          %2452 = vmatprep.subr.mxu0 0.0
          %2453 = vmatpush2.msra.mxu0 0.0
          %2454 = vmatprep.subr.mxu0 0.0
          %2455 = vmatpush2.msra.mxu0 0.0
          %2456 = vmatprep.subr.mxu0 0.0
          %2457 = vmatpush2.msra.mxu0 0.0
          %2458 = vmatprep.subr.mxu0 0.0
          %2459 = vmatpush2.msra.mxu0 0.0
          %2460 = vmatprep.subr.mxu0 0.0
          %2461 = vmatpush2.msra.mxu0 0.0
          %2462 = vmatprep.subr.mxu0 0.0
          %2463 = vmatpush2.msra.mxu0 0.0
          %2464 = vmatprep.subr.mxu0 0.0
          %2465 = vmatpush2.msra.mxu0 0.0
          %2466 = vmatprep.subr.mxu0 0.0
          %2467 = vmatpush2.msra.mxu0 0.0
          %2468 = vmatprep.subr.mxu0 0.0
          %2469 = vmatpush2.msra.mxu0 0.0
          %2470 = vmatprep.subr.mxu0 0.0
          %2471 = vmatpush2.msra.mxu0 0.0
          %2472 = vmatprep.subr.mxu0 0.0
          %2473 = vmatpush2.msra.mxu0 0.0
          %2474 = vmatprep.subr.mxu0 0.0
          %2475 = vmatpush2.msra.mxu0 0.0
          %2476 = vmatprep.subr.mxu0 0.0
          %2477 = vmatpush2.msra.mxu0 0.0
          %2478 = vmatprep.subr.mxu0 0.0
          %2479 = vmatpush2.msra.mxu0 0.0
          %2480 = vmatprep.subr.mxu0 0.0
          %2481 = vmatpush2.msra.mxu0 0.0
          %2482 = vmatprep.subr.mxu0 0.0
          %2483 = vmatpush2.msra.mxu0 0.0
          %2484 = vmatprep.mubr.f32.mxu0 0.0
          %2485 = vmatmul.mubr.f32.gmra.mxu0 %v1271
          %v2486 = vpop.f32.mrf.mxu0
          %v2487 = vadd.f32 %v2418, %v2486
          %v2488 = vpop.f32.mrf.mxu0
          %2489 = vdwg.mxu0
          %v2491 = vcombine.high %v2487, %v2487
          %v2493 = vunpack.c.l.s4 1966171168
          %v2494 = vunpack.c.0.s8 %v2493
          %v2495 = vlaneseq
          %v2496 = vshrl.u32 %v2495, 7
          %v2497 = vsub.s32 %v2494, %v2496
          %v2498 = vrot.slane %v2487, %v2497
          %v2500 = vunpack.c.l.s4 1966171168
          %v2501 = vunpack.c.0.s8 %v2500
          %v2502 = vlaneseq
          %v2503 = vshrl.u32 %v2502, 7
          %v2504 = vsub.s32 %v2501, %v2503
          %v2505 = vrot.slane %v2491, %v2504
          %v2506 = vcombine.high %v2498, %v2498
          %v2507 = vcombine.high %v2505, %v2505
          %v2509 = vunpack.c.l.s4 1966171168
          %v2510 = vunpack.c.0.s8 %v2509
          %v2511 = vlaneseq
          %v2512 = vshrl.u32 %v2511, 7
          %v2513 = vsub.s32 %v2510, %v2512
          %v2514 = vrot.slane %v2498, %v2513
          %v2516 = vunpack.c.l.s4 1966171168
          %v2517 = vunpack.c.0.s8 %v2516
          %v2518 = vlaneseq
          %v2519 = vshrl.u32 %v2518, 7
          %v2520 = vsub.s32 %v2517, %v2519
          %v2521 = vrot.slane %v2505, %v2520
          %v2523 = vunpack.c.l.s4 1966171168
          %v2524 = vunpack.c.0.s8 %v2523
          %v2525 = vlaneseq
          %v2526 = vshrl.u32 %v2525, 7
          %v2527 = vsub.s32 %v2524, %v2526
          %v2528 = vrot.slane %v2506, %v2527
          %v2530 = vunpack.c.l.s4 1966171168
          %v2531 = vunpack.c.0.s8 %v2530
          %v2532 = vlaneseq
          %v2533 = vshrl.u32 %v2532, 7
          %v2534 = vsub.s32 %v2531, %v2533
          %v2535 = vrot.slane %v2507, %v2534
          %v2536 = vcombine.high %v2514, %v2514
          %v2537 = vcombine.high %v2521, %v2521
          %v2538 = vcombine.high %v2528, %v2528
          %v2539 = vcombine.high %v2535, %v2535
          %2548 = vst.msk [vmem:[#allocation3 + $0x6] sm:$0x1] %vm1401, %v2514
          %2549 = vst.msk [vmem:[#allocation3 + $0xe] sm:$0x1] %vm1401, %v2528
          %2550 = vst.msk [vmem:[#allocation3 + $0x16] sm:$0x1] %vm1401, %v2536
          %2551 = vst.msk [vmem:[#allocation3 + $0x1e] sm:$0x1] %vm1401, %v2538
          %2552 = vst.msk [vmem:[#allocation3 + $0x26] sm:$0x1] %vm1401, %v2521
          %2553 = vst.msk [vmem:[#allocation3 + $0x2e] sm:$0x1] %vm1401, %v2535
          %2554 = vst.msk [vmem:[#allocation3 + $0x36] sm:$0x1] %vm1401, %v2537
          %2555 = vst.msk [vmem:[#allocation3 + $0x3e] sm:$0x1] %vm1401, %v2539
          %v2556 = vlaneseq
          %v2557 = vshrl.u32 %v2556, 7
          %v2558 = vsub.s32 7, %v2557
          %v2559 = vrot.slane %v1182, %v2558
          %v2560 = vsub.f32 %v2559, %v1195
          %v2561 = vsub.f32 %v2559, %v1200
          %v2562 = vsub.f32 %v2559, %v1205
          %v2563 = vsub.f32 %v2559, %v1210
          %v2564 = vmul.f32 %v2560, -4.8050003
          %v2565 = vmul.f32 %v2561, -4.8050003
          %v2566 = vmul.f32 %v2562, -4.8050003
          %v2567 = vmul.f32 %v2563, -4.8050003
          %v2568 = vmul.f32 %v2564, %v2560
          %v2569 = vmul.f32 %v2565, %v2561
          %v2570 = vmul.f32 %v2566, %v2562
          %v2571 = vmul.f32 %v2567, %v2563
          %v2572 = vmul.f32 %v2568, 1.442695
          %v2573 = vpow.pop %v2572
          %v2574 = vmul.f32 %v2569, 1.442695
          %v2575 = vpow.pop %v2574
          %v2576 = vmul.f32 %v2570, 1.442695
          %v2577 = vpow.pop %v2576
          %v2578 = vmul.f32 %v2571, 1.442695
          %v2579 = vpow.pop %v2578
          %v2580 = vld [vmem:[%s5 + $0x7] sm:$0x1]
          %v2581 = vld [vmem:[%s5 + $0xf] sm:$0x1]
          %v2582 = vld [vmem:[%s5 + $0x17] sm:$0x1]
          %v2583 = vld [vmem:[%s5 + $0x1f] sm:$0x1]
          %v2584 = vld [vmem:[%s5 + $0x27] sm:$0x1]
          %v2585 = vld [vmem:[%s5 + $0x2f] sm:$0x1]
          %v2586 = vld [vmem:[%s5 + $0x37] sm:$0x1]
          %v2587 = vld [vmem:[%s5 + $0x3f] sm:$0x1]
          %v2596 = vrot.slane %v2581, 7
          %v2597 = vsel %vm1249, %v2596, %v2580
          %v2598 = vrot.slane %v2582, 6
          %v2599 = vsel %vm1252, %v2598, %v2597
          %v2600 = vrot.slane %v2583, 5
          %v2601 = vsel %vm1255, %v2600, %v2599
          %v2602 = vrot.slane %v2584, 4
          %v2603 = vsel %vm1258, %v2602, %v2601
          %v2604 = vrot.slane %v2585, 3
          %v2605 = vsel %vm1261, %v2604, %v2603
          %v2606 = vrot.slane %v2586, 2
          %v2607 = vsel %vm1264, %v2606, %v2605
          %v2608 = vrot.slane %v2587, 1
          %v2609 = vsel %vm1267, %v2608, %v2607
          %2611 = vmatprep.subr.mxu0 0.0
          %2612 = vmatpush1.msra.mxu0 0.0
          %2613 = vmatprep.subr.mxu0 0.0
          %2614 = vmatpush1.msra.mxu0 0.0
          %2615 = vmatprep.subr.mxu0 0.0
          %2616 = vmatpush1.msra.mxu0 0.0
          %2617 = vmatprep.subr.mxu0 0.0
          %2618 = vmatpush1.msra.mxu0 0.0
          %2619 = vmatprep.subr.mxu0 0.0
          %2620 = vmatpush1.msra.mxu0 0.0
          %2621 = vmatprep.subr.mxu0 0.0
          %2622 = vmatpush1.msra.mxu0 0.0
          %2623 = vmatprep.subr.mxu0 0.0
          %2624 = vmatpush1.msra.mxu0 0.0
          %2625 = vmatprep.subr.mxu0 0.0
          %2626 = vmatpush1.msra.mxu0 0.0
          %2627 = vmatprep.subr.mxu0 0.0
          %2628 = vmatpush1.msra.mxu0 0.0
          %2629 = vmatprep.subr.mxu0 0.0
          %2630 = vmatpush1.msra.mxu0 0.0
          %2631 = vmatprep.subr.mxu0 0.0
          %2632 = vmatpush1.msra.mxu0 0.0
          %2633 = vmatprep.subr.mxu0 0.0
          %2634 = vmatpush1.msra.mxu0 0.0
          %2635 = vmatprep.subr.mxu0 0.0
          %2636 = vmatpush1.msra.mxu0 %v2579
          %2637 = vmatprep.subr.mxu0 0.0
          %2638 = vmatpush1.msra.mxu0 %v2577
          %2639 = vmatprep.subr.mxu0 0.0
          %2640 = vmatpush1.msra.mxu0 %v2575
          %2641 = vmatprep.subr.mxu0 0.0
          %2642 = vmatpush1.msra.mxu0 %v2573
          %2643 = vmatprep.subr.mxu0 0.0
          %2644 = vmatpush2.msra.mxu0 0.0
          %2645 = vmatprep.subr.mxu0 0.0
          %2646 = vmatpush2.msra.mxu0 0.0
          %2647 = vmatprep.subr.mxu0 0.0
          %2648 = vmatpush2.msra.mxu0 0.0
          %2649 = vmatprep.subr.mxu0 0.0
          %2650 = vmatpush2.msra.mxu0 0.0
          %2651 = vmatprep.subr.mxu0 0.0
          %2652 = vmatpush2.msra.mxu0 0.0
          %2653 = vmatprep.subr.mxu0 0.0
          %2654 = vmatpush2.msra.mxu0 0.0
          %2655 = vmatprep.subr.mxu0 0.0
          %2656 = vmatpush2.msra.mxu0 0.0
          %2657 = vmatprep.subr.mxu0 0.0
          %2658 = vmatpush2.msra.mxu0 0.0
          %2659 = vmatprep.subr.mxu0 0.0
          %2660 = vmatpush2.msra.mxu0 0.0
          %2661 = vmatprep.subr.mxu0 0.0
          %2662 = vmatpush2.msra.mxu0 0.0
          %2663 = vmatprep.subr.mxu0 0.0
          %2664 = vmatpush2.msra.mxu0 0.0
          %2665 = vmatprep.subr.mxu0 0.0
          %2666 = vmatpush2.msra.mxu0 0.0
          %2667 = vmatprep.subr.mxu0 0.0
          %2668 = vmatpush2.msra.mxu0 0.0
          %2669 = vmatprep.subr.mxu0 0.0
          %2670 = vmatpush2.msra.mxu0 0.0
          %2671 = vmatprep.subr.mxu0 0.0
          %2672 = vmatpush2.msra.mxu0 0.0
          %2673 = vmatprep.subr.mxu0 0.0
          %2674 = vmatpush2.msra.mxu0 0.0
          %2675 = vmatprep.mubr.f32.mxu0 0.0
          %2676 = vmatmul.mubr.f32.gmra.mxu0 %v1271
          %v2677 = vpop.f32.mrf.mxu0
          %v2678 = vadd.f32 %v2609, %v2677
          %v2679 = vpop.f32.mrf.mxu0
          %2680 = vdwg.mxu0
          %v2682 = vcombine.high %v2678, %v2678
          %v2684 = vunpack.c.l.s4 1966171168
          %v2685 = vunpack.c.0.s8 %v2684
          %v2686 = vlaneseq
          %v2687 = vshrl.u32 %v2686, 7
          %v2688 = vsub.s32 %v2685, %v2687
          %v2689 = vrot.slane %v2678, %v2688
          %v2691 = vunpack.c.l.s4 1966171168
          %v2692 = vunpack.c.0.s8 %v2691
          %v2693 = vlaneseq
          %v2694 = vshrl.u32 %v2693, 7
          %v2695 = vsub.s32 %v2692, %v2694
          %v2696 = vrot.slane %v2682, %v2695
          %v2697 = vcombine.high %v2689, %v2689
          %v2698 = vcombine.high %v2696, %v2696
          %v2700 = vunpack.c.l.s4 1966171168
          %v2701 = vunpack.c.0.s8 %v2700
          %v2702 = vlaneseq
          %v2703 = vshrl.u32 %v2702, 7
          %v2704 = vsub.s32 %v2701, %v2703
          %v2705 = vrot.slane %v2689, %v2704
          %v2707 = vunpack.c.l.s4 1966171168
          %v2708 = vunpack.c.0.s8 %v2707
          %v2709 = vlaneseq
          %v2710 = vshrl.u32 %v2709, 7
          %v2711 = vsub.s32 %v2708, %v2710
          %v2712 = vrot.slane %v2696, %v2711
          %v2714 = vunpack.c.l.s4 1966171168
          %v2715 = vunpack.c.0.s8 %v2714
          %v2716 = vlaneseq
          %v2717 = vshrl.u32 %v2716, 7
          %v2718 = vsub.s32 %v2715, %v2717
          %v2719 = vrot.slane %v2697, %v2718
          %v2721 = vunpack.c.l.s4 1966171168
          %v2722 = vunpack.c.0.s8 %v2721
          %v2723 = vlaneseq
          %v2724 = vshrl.u32 %v2723, 7
          %v2725 = vsub.s32 %v2722, %v2724
          %v2726 = vrot.slane %v2698, %v2725
          %v2727 = vcombine.high %v2705, %v2705
          %v2728 = vcombine.high %v2712, %v2712
          %v2729 = vcombine.high %v2719, %v2719
          %v2730 = vcombine.high %v2726, %v2726
          %2739 = vst.msk [vmem:[#allocation3 + $0x7] sm:$0x1] %vm1401, %v2705
          %2740 = vst.msk [vmem:[#allocation3 + $0xf] sm:$0x1] %vm1401, %v2719
          %2741 = vst.msk [vmem:[#allocation3 + $0x17] sm:$0x1] %vm1401, %v2727
          %2742 = vst.msk [vmem:[#allocation3 + $0x1f] sm:$0x1] %vm1401, %v2729
          %2743 = vst.msk [vmem:[#allocation3 + $0x27] sm:$0x1] %vm1401, %v2712
          %2744 = vst.msk [vmem:[#allocation3 + $0x2f] sm:$0x1] %vm1401, %v2726
          %2745 = vst.msk [vmem:[#allocation3 + $0x37] sm:$0x1] %vm1401, %v2728
          %2746 = vst.msk [vmem:[#allocation3 + $0x3f] sm:$0x1] %vm1401, %v2730
        $region120: #{_lambda_.1} parent=115 // pred_fallthru
          _
        %v2747 = vld [vmem:[%s906] sm:$0xff]
        %v2748 = vld [vmem:[%s910] sm:$0xf]
        %v2749 = vpack.c.bf16 %v2747, %v2747
        %v2750 = vld [vmem:[%s913] sm:$0x1]
        %v2752 = vlaneseq
        %v2753 = vshrl.u32 %v2752, 7
        %v2754 = vsub.s32 0, %v2753
        %v2755 = vrot.slane %v2750, %v2754
        %vm2757 = vcmask 64512
        %v2759 = vsel %vm2757, %v2749, 0
        %vm2761 = vcmask 1043456
        %v2763 = vsel %vm2761, %v2748, 0
        %2765 = vmatprep.subr.bf16.mxu0 0
        %2766 = vmatpush1.bf16.msra.mxu0 0
        %2767 = vmatprep.subr.bf16.mxu0 0
        %2768 = vmatpush1.bf16.msra.mxu0 0
        %2769 = vmatprep.subr.bf16.mxu0 0
        %2770 = vmatpush1.bf16.msra.mxu0 0
        %2771 = vmatprep.subr.bf16.mxu0 0
        %2772 = vmatpush1.bf16.msra.mxu0 0
        %2773 = vmatprep.subr.bf16.mxu0 0
        %2774 = vmatpush1.bf16.msra.mxu0 0
        %2775 = vmatprep.subr.bf16.mxu0 0
        %2776 = vmatpush1.bf16.msra.mxu0 0
        %2777 = vmatprep.subr.bf16.mxu0 0
        %2778 = vmatpush1.bf16.msra.mxu0 0
        %2779 = vmatprep.subr.bf16.mxu0 0
        %2780 = vmatpush1.bf16.msra.mxu0 %v2763
        %2781 = vmatprep.subr.bf16.mxu0 0
        %2782 = vmatpush2.bf16.msra.mxu0 0
        %2783 = vmatprep.subr.bf16.mxu0 0
        %2784 = vmatpush2.bf16.msra.mxu0 0
        %2785 = vmatprep.subr.bf16.mxu0 0
        %2786 = vmatpush2.bf16.msra.mxu0 0
        %2787 = vmatprep.subr.bf16.mxu0 0
        %2788 = vmatpush2.bf16.msra.mxu0 0
        %2789 = vmatprep.subr.bf16.mxu0 0
        %2790 = vmatpush2.bf16.msra.mxu0 0
        %2791 = vmatprep.subr.bf16.mxu0 0
        %2792 = vmatpush2.bf16.msra.mxu0 0
        %2793 = vmatprep.subr.bf16.mxu0 0
        %2794 = vmatpush2.bf16.msra.mxu0 0
        %2795 = vmatprep.subr.bf16.mxu0 0
        %2796 = vmatpush2.bf16.msra.mxu0 0
        %2797 = vmatprep.mubr.bf16.mxu0 0
        %2798 = vmatmul.mubr.bf16.gmra.mxu0 %v2759
        %v2799 = vpop.f32.mrf.mxu0
        %v2800 = vadd.f32 %v2755, %v2799
        %v2801 = vpop.f32.mrf.mxu0
        %v2802 = vpop.f32.mrf.mxu0
        %v2803 = vpop.f32.mrf.mxu0
        %2804 = vdwg.mxu0
        %v2805 = vadd.f32 %v2800, 1.0
        %v2806 = vld [vmem:[#allocation2] sm:$0xff]
        %vm2807 = vcmask 261120
        %v2808 = vsel %vm2807, %v2806, 0.0
        %2809 = vadd.xlane.f32.xlu0 %v2808
        %v2810 = vpop.xlane.xlu0 %2809
        %v2811 = vrcp.pop 32.0
        %v2812 = vmul.f32 %v2810, %v2811
        %v2813 = vsub.f32 %v2806, %v2812
        %v2814 = vmul.f32 %v2813, %v2813
        %v2815 = vsel %vm2807, %v2814, 0.0
        %2816 = vadd.xlane.f32.xlu0 %v2815
        %v2817 = vpop.xlane.xlu0 %2816
        %v2818 = vmul.f32 %v2817, %v2811
        %v2819 = vadd.f32 %v2818, 1e-05
        %v2820 = vrsqrt.pop %v2819
        %v2821 = vmul.f32 %v2813, %v2820
        %v2822 = vmul.f32 %v2821, %v2805
        %2824 = vrot.lane.b32.xlu0 %v2800, 96
        %v2825 = vpop.permute.xlu0 %2824
        %v2827 = vadd.f32 %v2822, %v2825
        %v2828 = vld [vmem:[%s918] sm:$0xf]
        %v2829 = vld [vmem:[%s918 + $0x4] sm:$0xf]
        %v2830 = vld [vmem:[%s918 + $0x8] sm:$0xf]
        %v2831 = vld [vmem:[%s918 + $0xc] sm:$0xf]
        %v2832 = vpack.c.bf16 %v2827, %v2827
        %v2833 = vld [vmem:[%s921] sm:$0x1]
        %v2835 = vlaneseq
        %v2836 = vshrl.u32 %v2835, 7
        %v2837 = vsub.s32 0, %v2836
        %v2838 = vrot.slane %v2833, %v2837
        %v2844 = vunpack.c.l.b16 %v2828
        %v2845 = vunpack.c.l.b16 %v2829
        %v2846 = vunpack.c.l.b16 %v2830
        %v2847 = vunpack.c.l.b16 %v2831
        %v2848 = vpack.c.b16 %v2845, %v2844
        %v2849 = vpack.c.b16 %v2847, %v2846
        %v2853 = vsel %vm2807, %v2832, 0
        %2855 = vmatprep.subr.bf16.mxu0 0
        %2856 = vmatpush1.bf16.msra.mxu0 0
        %2857 = vmatprep.subr.bf16.mxu0 0
        %2858 = vmatpush1.bf16.msra.mxu0 0
        %2859 = vmatprep.subr.bf16.mxu0 0
        %2860 = vmatpush1.bf16.msra.mxu0 0
        %2861 = vmatprep.subr.bf16.mxu0 0
        %2862 = vmatpush1.bf16.msra.mxu0 0
        %2863 = vmatprep.subr.bf16.mxu0 0
        %2864 = vmatpush1.bf16.msra.mxu0 0
        %2865 = vmatprep.subr.bf16.mxu0 0
        %2866 = vmatpush1.bf16.msra.mxu0 0
        %2867 = vmatprep.subr.bf16.mxu0 0
        %2868 = vmatpush1.bf16.msra.mxu0 %v2849
        %2869 = vmatprep.subr.bf16.mxu0 0
        %2870 = vmatpush1.bf16.msra.mxu0 %v2848
        %2871 = vmatprep.subr.bf16.mxu0 0
        %2872 = vmatpush2.bf16.msra.mxu0 0
        %2873 = vmatprep.subr.bf16.mxu0 0
        %2874 = vmatpush2.bf16.msra.mxu0 0
        %2875 = vmatprep.subr.bf16.mxu0 0
        %2876 = vmatpush2.bf16.msra.mxu0 0
        %2877 = vmatprep.subr.bf16.mxu0 0
        %2878 = vmatpush2.bf16.msra.mxu0 0
        %2879 = vmatprep.subr.bf16.mxu0 0
        %2880 = vmatpush2.bf16.msra.mxu0 0
        %2881 = vmatprep.subr.bf16.mxu0 0
        %2882 = vmatpush2.bf16.msra.mxu0 0
        %2883 = vmatprep.subr.bf16.mxu0 0
        %2884 = vmatpush2.bf16.msra.mxu0 0
        %2885 = vmatprep.subr.bf16.mxu0 0
        %2886 = vmatpush2.bf16.msra.mxu0 0
        %2887 = vmatprep.mubr.bf16.mxu0 0
        %2888 = vmatmul.mubr.bf16.gmra.mxu0 %v2853
        %v2889 = vpop.f32.mrf.mxu0
        %v2890 = vadd.f32 %v2838, %v2889
        %v2891 = vpop.f32.mrf.mxu0
        %v2892 = vpop.f32.mrf.mxu0
        %v2893 = vpop.f32.mrf.mxu0
        %2894 = vdwg.mxu0
        %v2895 = vld [vmem:[%s926] sm:$0xf]
        %v2896 = vld [vmem:[%s926 + $0x4] sm:$0xf]
        %v2897 = vld [vmem:[%s926 + $0x8] sm:$0xf]
        %v2898 = vld [vmem:[%s926 + $0xc] sm:$0xf]
        %v2899 = vpack.c.bf16 %v2890, %v2890
        %2901 = vrot.lane.b32.xlu0 %v2899, 96
        %v2902 = vpop.permute.xlu0 %2901
        %v2904 = vsel %vm2757, %v2899, 0
        %v2907 = vsel %vm2757, %v2902, 0
        %2909 = vmatprep.subr.bf16.mxu0 0
        %2910 = vmatpush1.bf16.xpose.msra.mxu0 0
        %2911 = vmatprep.subr.bf16.mxu0 0
        %2912 = vmatpush1.bf16.xpose.msra.mxu0 0
        %2913 = vmatprep.subr.bf16.mxu0 0
        %2914 = vmatpush1.bf16.xpose.msra.mxu0 0
        %2915 = vmatprep.subr.bf16.mxu0 0
        %2916 = vmatpush1.bf16.xpose.msra.mxu0 0
        %2917 = vmatprep.subr.bf16.mxu0 0
        %2918 = vmatpush1.bf16.xpose.msra.mxu0 0
        %2919 = vmatprep.subr.bf16.mxu0 0
        %2920 = vmatpush1.bf16.xpose.msra.mxu0 0
        %2921 = vmatprep.subr.bf16.mxu0 0
        %2922 = vmatpush1.bf16.xpose.msra.mxu0 0
        %2923 = vmatprep.subr.bf16.mxu0 0
        %2924 = vmatpush1.bf16.xpose.msra.mxu0 %v2907
        %2925 = vmatprep.subr.bf16.mxu0 0
        %2926 = vmatpush2.bf16.xpose.msra.mxu0 0
        %2927 = vmatprep.subr.bf16.mxu0 0
        %2928 = vmatpush2.bf16.xpose.msra.mxu0 0
        %2929 = vmatprep.subr.bf16.mxu0 0
        %2930 = vmatpush2.bf16.xpose.msra.mxu0 0
        %2931 = vmatprep.subr.bf16.mxu0 0
        %2932 = vmatpush2.bf16.xpose.msra.mxu0 0
        %2933 = vmatprep.subr.bf16.mxu0 0
        %2934 = vmatpush2.bf16.xpose.msra.mxu0 0
        %2935 = vmatprep.subr.bf16.mxu0 0
        %2936 = vmatpush2.bf16.xpose.msra.mxu0 0
        %2937 = vmatprep.subr.bf16.mxu0 0
        %2938 = vmatpush2.bf16.xpose.msra.mxu0 0
        %2939 = vmatprep.subr.bf16.mxu0 0
        %2940 = vmatpush2.bf16.xpose.msra.mxu0 0
        %2941 = vmatprep.mubr.bf16.mxu0 0
        %2942 = vmatmul.mubr.bf16.gmra.mxu0 %v2904
        %v2943 = vpop.f32.mrf.mxu0
        %v2944 = vadd.f32 0.0, %v2943
        %v2945 = vpop.f32.mrf.mxu0
        %v2946 = vpop.f32.mrf.mxu0
        %v2947 = vpop.f32.mrf.mxu0
        %2948 = vdwg.mxu0
        %v2949 = vmul.f32 %v2944, 0.35355338
        %s2950 = smul.u32 %s43, 4
        %s2951 = smul.u32 %s2950, 8
        %s2952 = scalar_lea.vmem [#allocation3], %s2951
        %v2953 = vld [vmem:[%s2952] sm:$0xff]
        %v2954 = vadd.f32 %v2949, %v2953
        %v2955 = vsel %vm2757, %v2954, -inf
        %2956 = vmax.xlane.f32.xlu0 %v2955
        %v2957 = vpop.xlane.xlu0 %2956
        %v2958 = vsub.f32 %v2954, %v2957
        %v2959 = vmul.f32 %v2958, 1.442695
        %v2960 = vpow.pop %v2959
        %v2961 = vsel %vm2757, %v2960, 0.0
        %2962 = vadd.xlane.f32.xlu0 %v2961
        %v2963 = vpop.xlane.xlu0 %2962
        %v2964 = vrcp.pop %v2963
        %v2965 = vmul.f32 1.0, %v2964
        %2966 = vrot.lane.b32.xlu0 %v2899, 64
        %v2967 = vpop.permute.xlu0 %2966
        %v2969 = vsel %vm2757, %v2967, 0
        %v2972 = vsel %vm2761, %v2895, 0
        %2974 = vmatprep.subr.bf16.mxu0 0
        %2975 = vmatpush1.bf16.msra.mxu0 0
        %2976 = vmatprep.subr.bf16.mxu0 0
        %2977 = vmatpush1.bf16.msra.mxu0 0
        %2978 = vmatprep.subr.bf16.mxu0 0
        %2979 = vmatpush1.bf16.msra.mxu0 0
        %2980 = vmatprep.subr.bf16.mxu0 0
        %2981 = vmatpush1.bf16.msra.mxu0 0
        %2982 = vmatprep.subr.bf16.mxu0 0
        %2983 = vmatpush1.bf16.msra.mxu0 0
        %2984 = vmatprep.subr.bf16.mxu0 0
        %2985 = vmatpush1.bf16.msra.mxu0 0
        %2986 = vmatprep.subr.bf16.mxu0 0
        %2987 = vmatpush1.bf16.msra.mxu0 0
        %2988 = vmatprep.subr.bf16.mxu0 0
        %2989 = vmatpush1.bf16.msra.mxu0 %v2972
        %2990 = vmatprep.subr.bf16.mxu0 0
        %2991 = vmatpush2.bf16.msra.mxu0 0
        %2992 = vmatprep.subr.bf16.mxu0 0
        %2993 = vmatpush2.bf16.msra.mxu0 0
        %2994 = vmatprep.subr.bf16.mxu0 0
        %2995 = vmatpush2.bf16.msra.mxu0 0
        %2996 = vmatprep.subr.bf16.mxu0 0
        %2997 = vmatpush2.bf16.msra.mxu0 0
        %2998 = vmatprep.subr.bf16.mxu0 0
        %2999 = vmatpush2.bf16.msra.mxu0 0
        %3000 = vmatprep.subr.bf16.mxu0 0
        %3001 = vmatpush2.bf16.msra.mxu0 0
        %3002 = vmatprep.subr.bf16.mxu0 0
        %3003 = vmatpush2.bf16.msra.mxu0 0
        %3004 = vmatprep.subr.bf16.mxu0 0
        %3005 = vmatpush2.bf16.msra.mxu0 0
        %3006 = vmatprep.mubr.bf16.mxu0 0
        %3007 = vmatmul.mubr.bf16.gmra.mxu0 %v2969
        %v3008 = vpop.f32.mrf.mxu0
        %v3009 = vadd.f32 0.0, %v3008
        %v3010 = vpop.f32.mrf.mxu0
        %v3011 = vpop.f32.mrf.mxu0
        %v3012 = vpop.f32.mrf.mxu0
        %3013 = vdwg.mxu0
        %v3014 = vpack.c.bf16 %v3009, %v3009
        %v3015 = vpack.c.bf16 %v2960, %v2960
        %v3017 = vsel %vm2757, %v3015, 0
        %v3020 = vsel %vm2761, %v3014, 0
        %3022 = vmatprep.subr.bf16.mxu0 0
        %3023 = vmatpush1.bf16.msra.mxu0 0
        %3024 = vmatprep.subr.bf16.mxu0 0
        %3025 = vmatpush1.bf16.msra.mxu0 0
        %3026 = vmatprep.subr.bf16.mxu0 0
        %3027 = vmatpush1.bf16.msra.mxu0 0
        %3028 = vmatprep.subr.bf16.mxu0 0
        %3029 = vmatpush1.bf16.msra.mxu0 0
        %3030 = vmatprep.subr.bf16.mxu0 0
        %3031 = vmatpush1.bf16.msra.mxu0 0
        %3032 = vmatprep.subr.bf16.mxu0 0
        %3033 = vmatpush1.bf16.msra.mxu0 0
        %3034 = vmatprep.subr.bf16.mxu0 0
        %3035 = vmatpush1.bf16.msra.mxu0 0
        %3036 = vmatprep.subr.bf16.mxu0 0
        %3037 = vmatpush1.bf16.msra.mxu0 %v3020
        %3038 = vmatprep.subr.bf16.mxu0 0
        %3039 = vmatpush2.bf16.msra.mxu0 0
        %3040 = vmatprep.subr.bf16.mxu0 0
        %3041 = vmatpush2.bf16.msra.mxu0 0
        %3042 = vmatprep.subr.bf16.mxu0 0
        %3043 = vmatpush2.bf16.msra.mxu0 0
        %3044 = vmatprep.subr.bf16.mxu0 0
        %3045 = vmatpush2.bf16.msra.mxu0 0
        %3046 = vmatprep.subr.bf16.mxu0 0
        %3047 = vmatpush2.bf16.msra.mxu0 0
        %3048 = vmatprep.subr.bf16.mxu0 0
        %3049 = vmatpush2.bf16.msra.mxu0 0
        %3050 = vmatprep.subr.bf16.mxu0 0
        %3051 = vmatpush2.bf16.msra.mxu0 0
        %3052 = vmatprep.subr.bf16.mxu0 0
        %3053 = vmatpush2.bf16.msra.mxu0 0
        %3054 = vmatprep.mubr.bf16.mxu0 0
        %3055 = vmatmul.mubr.bf16.gmra.mxu0 %v3017
        %v3056 = vpop.f32.mrf.mxu0
        %v3057 = vadd.f32 0.0, %v3056
        %v3058 = vpop.f32.mrf.mxu0
        %v3059 = vpop.f32.mrf.mxu0
        %v3060 = vpop.f32.mrf.mxu0
        %3061 = vdwg.mxu0
        %v3062 = vmul.f32 %v3057, %v2965
        %v3063 = vadd.f32 %v3062, 0.0
        %3064 = vrot.lane.b32.xlu0 %v2899, 120
        %v3065 = vpop.permute.xlu0 %3064
        %3066 = vrot.lane.b32.xlu0 %v2899, 88
        %v3067 = vpop.permute.xlu0 %3066
        %v3069 = vsel %vm2757, %v3065, 0
        %v3072 = vsel %vm2757, %v3067, 0
        %3074 = vmatprep.subr.bf16.mxu0 0
        %3075 = vmatpush1.bf16.xpose.msra.mxu0 0
        %3076 = vmatprep.subr.bf16.mxu0 0
        %3077 = vmatpush1.bf16.xpose.msra.mxu0 0
        %3078 = vmatprep.subr.bf16.mxu0 0
        %3079 = vmatpush1.bf16.xpose.msra.mxu0 0
        %3080 = vmatprep.subr.bf16.mxu0 0
        %3081 = vmatpush1.bf16.xpose.msra.mxu0 0
        %3082 = vmatprep.subr.bf16.mxu0 0
        %3083 = vmatpush1.bf16.xpose.msra.mxu0 0
        %3084 = vmatprep.subr.bf16.mxu0 0
        %3085 = vmatpush1.bf16.xpose.msra.mxu0 0
        %3086 = vmatprep.subr.bf16.mxu0 0
        %3087 = vmatpush1.bf16.xpose.msra.mxu0 0
        %3088 = vmatprep.subr.bf16.mxu0 0
        %3089 = vmatpush1.bf16.xpose.msra.mxu0 %v3072
        %3090 = vmatprep.subr.bf16.mxu0 0
        %3091 = vmatpush2.bf16.xpose.msra.mxu0 0
        %3092 = vmatprep.subr.bf16.mxu0 0
        %3093 = vmatpush2.bf16.xpose.msra.mxu0 0
        %3094 = vmatprep.subr.bf16.mxu0 0
        %3095 = vmatpush2.bf16.xpose.msra.mxu0 0
        %3096 = vmatprep.subr.bf16.mxu0 0
        %3097 = vmatpush2.bf16.xpose.msra.mxu0 0
        %3098 = vmatprep.subr.bf16.mxu0 0
        %3099 = vmatpush2.bf16.xpose.msra.mxu0 0
        %3100 = vmatprep.subr.bf16.mxu0 0
        %3101 = vmatpush2.bf16.xpose.msra.mxu0 0
        %3102 = vmatprep.subr.bf16.mxu0 0
        %3103 = vmatpush2.bf16.xpose.msra.mxu0 0
        %3104 = vmatprep.subr.bf16.mxu0 0
        %3105 = vmatpush2.bf16.xpose.msra.mxu0 0
        %3106 = vmatprep.mubr.bf16.mxu0 0
        %3107 = vmatmul.mubr.bf16.gmra.mxu0 %v3069
        %v3108 = vpop.f32.mrf.mxu0
        %v3109 = vadd.f32 0.0, %v3108
        %v3110 = vpop.f32.mrf.mxu0
        %v3111 = vpop.f32.mrf.mxu0
        %v3112 = vpop.f32.mrf.mxu0
        %3113 = vdwg.mxu0
        %v3114 = vmul.f32 %v3109, 0.35355338
        %s3115 = sadd.s32 %s2950, 1
        %s3116 = smul.u32 %s3115, 8
        %s3117 = scalar_lea.vmem [#allocation3], %s3116
        %v3118 = vld [vmem:[%s3117] sm:$0xff]
        %v3119 = vadd.f32 %v3114, %v3118
        %v3120 = vsel %vm2757, %v3119, -inf
        %3121 = vmax.xlane.f32.xlu0 %v3120
        %v3122 = vpop.xlane.xlu0 %3121
        %v3123 = vsub.f32 %v3119, %v3122
        %v3124 = vmul.f32 %v3123, 1.442695
        %v3125 = vpow.pop %v3124
        %v3126 = vsel %vm2757, %v3125, 0.0
        %3127 = vadd.xlane.f32.xlu0 %v3126
        %v3128 = vpop.xlane.xlu0 %3127
        %v3129 = vrcp.pop %v3128
        %v3130 = vmul.f32 1.0, %v3129
        %3131 = vrot.lane.b32.xlu0 %v2899, 56
        %v3132 = vpop.permute.xlu0 %3131
        %v3134 = vsel %vm2757, %v3132, 0
        %v3137 = vsel %vm2761, %v2896, 0
        %3139 = vmatprep.subr.bf16.mxu0 0
        %3140 = vmatpush1.bf16.msra.mxu0 0
        %3141 = vmatprep.subr.bf16.mxu0 0
        %3142 = vmatpush1.bf16.msra.mxu0 0
        %3143 = vmatprep.subr.bf16.mxu0 0
        %3144 = vmatpush1.bf16.msra.mxu0 0
        %3145 = vmatprep.subr.bf16.mxu0 0
        %3146 = vmatpush1.bf16.msra.mxu0 0
        %3147 = vmatprep.subr.bf16.mxu0 0
        %3148 = vmatpush1.bf16.msra.mxu0 0
        %3149 = vmatprep.subr.bf16.mxu0 0
        %3150 = vmatpush1.bf16.msra.mxu0 0
        %3151 = vmatprep.subr.bf16.mxu0 0
        %3152 = vmatpush1.bf16.msra.mxu0 0
        %3153 = vmatprep.subr.bf16.mxu0 0
        %3154 = vmatpush1.bf16.msra.mxu0 %v3137
        %3155 = vmatprep.subr.bf16.mxu0 0
        %3156 = vmatpush2.bf16.msra.mxu0 0
        %3157 = vmatprep.subr.bf16.mxu0 0
        %3158 = vmatpush2.bf16.msra.mxu0 0
        %3159 = vmatprep.subr.bf16.mxu0 0
        %3160 = vmatpush2.bf16.msra.mxu0 0
        %3161 = vmatprep.subr.bf16.mxu0 0
        %3162 = vmatpush2.bf16.msra.mxu0 0
        %3163 = vmatprep.subr.bf16.mxu0 0
        %3164 = vmatpush2.bf16.msra.mxu0 0
        %3165 = vmatprep.subr.bf16.mxu0 0
        %3166 = vmatpush2.bf16.msra.mxu0 0
        %3167 = vmatprep.subr.bf16.mxu0 0
        %3168 = vmatpush2.bf16.msra.mxu0 0
        %3169 = vmatprep.subr.bf16.mxu0 0
        %3170 = vmatpush2.bf16.msra.mxu0 0
        %3171 = vmatprep.mubr.bf16.mxu0 0
        %3172 = vmatmul.mubr.bf16.gmra.mxu0 %v3134
        %v3173 = vpop.f32.mrf.mxu0
        %v3174 = vadd.f32 0.0, %v3173
        %v3175 = vpop.f32.mrf.mxu0
        %v3176 = vpop.f32.mrf.mxu0
        %v3177 = vpop.f32.mrf.mxu0
        %3178 = vdwg.mxu0
        %v3179 = vpack.c.bf16 %v3174, %v3174
        %v3180 = vpack.c.bf16 %v3125, %v3125
        %v3182 = vsel %vm2757, %v3180, 0
        %v3185 = vsel %vm2761, %v3179, 0
        %3187 = vmatprep.subr.bf16.mxu0 0
        %3188 = vmatpush1.bf16.msra.mxu0 0
        %3189 = vmatprep.subr.bf16.mxu0 0
        %3190 = vmatpush1.bf16.msra.mxu0 0
        %3191 = vmatprep.subr.bf16.mxu0 0
        %3192 = vmatpush1.bf16.msra.mxu0 0
        %3193 = vmatprep.subr.bf16.mxu0 0
        %3194 = vmatpush1.bf16.msra.mxu0 0
        %3195 = vmatprep.subr.bf16.mxu0 0
        %3196 = vmatpush1.bf16.msra.mxu0 0
        %3197 = vmatprep.subr.bf16.mxu0 0
        %3198 = vmatpush1.bf16.msra.mxu0 0
        %3199 = vmatprep.subr.bf16.mxu0 0
        %3200 = vmatpush1.bf16.msra.mxu0 0
        %3201 = vmatprep.subr.bf16.mxu0 0
        %3202 = vmatpush1.bf16.msra.mxu0 %v3185
        %3203 = vmatprep.subr.bf16.mxu0 0
        %3204 = vmatpush2.bf16.msra.mxu0 0
        %3205 = vmatprep.subr.bf16.mxu0 0
        %3206 = vmatpush2.bf16.msra.mxu0 0
        %3207 = vmatprep.subr.bf16.mxu0 0
        %3208 = vmatpush2.bf16.msra.mxu0 0
        %3209 = vmatprep.subr.bf16.mxu0 0
        %3210 = vmatpush2.bf16.msra.mxu0 0
        %3211 = vmatprep.subr.bf16.mxu0 0
        %3212 = vmatpush2.bf16.msra.mxu0 0
        %3213 = vmatprep.subr.bf16.mxu0 0
        %3214 = vmatpush2.bf16.msra.mxu0 0
        %3215 = vmatprep.subr.bf16.mxu0 0
        %3216 = vmatpush2.bf16.msra.mxu0 0
        %3217 = vmatprep.subr.bf16.mxu0 0
        %3218 = vmatpush2.bf16.msra.mxu0 0
        %3219 = vmatprep.mubr.bf16.mxu0 0
        %3220 = vmatmul.mubr.bf16.gmra.mxu0 %v3182
        %v3221 = vpop.f32.mrf.mxu0
        %v3222 = vadd.f32 0.0, %v3221
        %v3223 = vpop.f32.mrf.mxu0
        %v3224 = vpop.f32.mrf.mxu0
        %v3225 = vpop.f32.mrf.mxu0
        %3226 = vdwg.mxu0
        %v3227 = vmul.f32 %v3222, %v3130
        %v3228 = vadd.f32 %v3063, %v3227
        %3229 = vrot.lane.b32.xlu0 %v2899, 112
        %v3230 = vpop.permute.xlu0 %3229
        %3231 = vrot.lane.b32.xlu0 %v2899, 80
        %v3232 = vpop.permute.xlu0 %3231
        %v3234 = vsel %vm2757, %v3230, 0
        %v3237 = vsel %vm2757, %v3232, 0
        %3239 = vmatprep.subr.bf16.mxu0 0
        %3240 = vmatpush1.bf16.xpose.msra.mxu0 0
        %3241 = vmatprep.subr.bf16.mxu0 0
        %3242 = vmatpush1.bf16.xpose.msra.mxu0 0
        %3243 = vmatprep.subr.bf16.mxu0 0
        %3244 = vmatpush1.bf16.xpose.msra.mxu0 0
        %3245 = vmatprep.subr.bf16.mxu0 0
        %3246 = vmatpush1.bf16.xpose.msra.mxu0 0
        %3247 = vmatprep.subr.bf16.mxu0 0
        %3248 = vmatpush1.bf16.xpose.msra.mxu0 0
        %3249 = vmatprep.subr.bf16.mxu0 0
        %3250 = vmatpush1.bf16.xpose.msra.mxu0 0
        %3251 = vmatprep.subr.bf16.mxu0 0
        %3252 = vmatpush1.bf16.xpose.msra.mxu0 0
        %3253 = vmatprep.subr.bf16.mxu0 0
        %3254 = vmatpush1.bf16.xpose.msra.mxu0 %v3237
        %3255 = vmatprep.subr.bf16.mxu0 0
        %3256 = vmatpush2.bf16.xpose.msra.mxu0 0
        %3257 = vmatprep.subr.bf16.mxu0 0
        %3258 = vmatpush2.bf16.xpose.msra.mxu0 0
        %3259 = vmatprep.subr.bf16.mxu0 0
        %3260 = vmatpush2.bf16.xpose.msra.mxu0 0
        %3261 = vmatprep.subr.bf16.mxu0 0
        %3262 = vmatpush2.bf16.xpose.msra.mxu0 0
        %3263 = vmatprep.subr.bf16.mxu0 0
        %3264 = vmatpush2.bf16.xpose.msra.mxu0 0
        %3265 = vmatprep.subr.bf16.mxu0 0
        %3266 = vmatpush2.bf16.xpose.msra.mxu0 0
        %3267 = vmatprep.subr.bf16.mxu0 0
        %3268 = vmatpush2.bf16.xpose.msra.mxu0 0
        %3269 = vmatprep.subr.bf16.mxu0 0
        %3270 = vmatpush2.bf16.xpose.msra.mxu0 0
        %3271 = vmatprep.mubr.bf16.mxu0 0
        %3272 = vmatmul.mubr.bf16.gmra.mxu0 %v3234
        %v3273 = vpop.f32.mrf.mxu0
        %v3274 = vadd.f32 0.0, %v3273
        %v3275 = vpop.f32.mrf.mxu0
        %v3276 = vpop.f32.mrf.mxu0
        %v3277 = vpop.f32.mrf.mxu0
        %3278 = vdwg.mxu0
        %v3279 = vmul.f32 %v3274, 0.35355338
        %s3280 = sadd.s32 %s2950, 2
        %s3281 = smul.u32 %s3280, 8
        %s3282 = scalar_lea.vmem [#allocation3], %s3281
        %v3283 = vld [vmem:[%s3282] sm:$0xff]
        %v3284 = vadd.f32 %v3279, %v3283
        %v3285 = vsel %vm2757, %v3284, -inf
        %3286 = vmax.xlane.f32.xlu0 %v3285
        %v3287 = vpop.xlane.xlu0 %3286
        %v3288 = vsub.f32 %v3284, %v3287
        %v3289 = vmul.f32 %v3288, 1.442695
        %v3290 = vpow.pop %v3289
        %v3291 = vsel %vm2757, %v3290, 0.0
        %3292 = vadd.xlane.f32.xlu0 %v3291
        %v3293 = vpop.xlane.xlu0 %3292
        %v3294 = vrcp.pop %v3293
        %v3295 = vmul.f32 1.0, %v3294
        %3296 = vrot.lane.b32.xlu0 %v2899, 48
        %v3297 = vpop.permute.xlu0 %3296
        %v3299 = vsel %vm2757, %v3297, 0
        %v3302 = vsel %vm2761, %v2897, 0
        %3304 = vmatprep.subr.bf16.mxu0 0
        %3305 = vmatpush1.bf16.msra.mxu0 0
        %3306 = vmatprep.subr.bf16.mxu0 0
        %3307 = vmatpush1.bf16.msra.mxu0 0
        %3308 = vmatprep.subr.bf16.mxu0 0
        %3309 = vmatpush1.bf16.msra.mxu0 0
        %3310 = vmatprep.subr.bf16.mxu0 0
        %3311 = vmatpush1.bf16.msra.mxu0 0
        %3312 = vmatprep.subr.bf16.mxu0 0
        %3313 = vmatpush1.bf16.msra.mxu0 0
        %3314 = vmatprep.subr.bf16.mxu0 0
        %3315 = vmatpush1.bf16.msra.mxu0 0
        %3316 = vmatprep.subr.bf16.mxu0 0
        %3317 = vmatpush1.bf16.msra.mxu0 0
        %3318 = vmatprep.subr.bf16.mxu0 0
        %3319 = vmatpush1.bf16.msra.mxu0 %v3302
        %3320 = vmatprep.subr.bf16.mxu0 0
        %3321 = vmatpush2.bf16.msra.mxu0 0
        %3322 = vmatprep.subr.bf16.mxu0 0
        %3323 = vmatpush2.bf16.msra.mxu0 0
        %3324 = vmatprep.subr.bf16.mxu0 0
        %3325 = vmatpush2.bf16.msra.mxu0 0
        %3326 = vmatprep.subr.bf16.mxu0 0
        %3327 = vmatpush2.bf16.msra.mxu0 0
        %3328 = vmatprep.subr.bf16.mxu0 0
        %3329 = vmatpush2.bf16.msra.mxu0 0
        %3330 = vmatprep.subr.bf16.mxu0 0
        %3331 = vmatpush2.bf16.msra.mxu0 0
        %3332 = vmatprep.subr.bf16.mxu0 0
        %3333 = vmatpush2.bf16.msra.mxu0 0
        %3334 = vmatprep.subr.bf16.mxu0 0
        %3335 = vmatpush2.bf16.msra.mxu0 0
        %3336 = vmatprep.mubr.bf16.mxu0 0
        %3337 = vmatmul.mubr.bf16.gmra.mxu0 %v3299
        %v3338 = vpop.f32.mrf.mxu0
        %v3339 = vadd.f32 0.0, %v3338
        %v3340 = vpop.f32.mrf.mxu0
        %v3341 = vpop.f32.mrf.mxu0
        %v3342 = vpop.f32.mrf.mxu0
        %3343 = vdwg.mxu0
        %v3344 = vpack.c.bf16 %v3339, %v3339
        %v3345 = vpack.c.bf16 %v3290, %v3290
        %v3347 = vsel %vm2757, %v3345, 0
        %v3350 = vsel %vm2761, %v3344, 0
        %3352 = vmatprep.subr.bf16.mxu0 0
        %3353 = vmatpush1.bf16.msra.mxu0 0
        %3354 = vmatprep.subr.bf16.mxu0 0
        %3355 = vmatpush1.bf16.msra.mxu0 0
        %3356 = vmatprep.subr.bf16.mxu0 0
        %3357 = vmatpush1.bf16.msra.mxu0 0
        %3358 = vmatprep.subr.bf16.mxu0 0
        %3359 = vmatpush1.bf16.msra.mxu0 0
        %3360 = vmatprep.subr.bf16.mxu0 0
        %3361 = vmatpush1.bf16.msra.mxu0 0
        %3362 = vmatprep.subr.bf16.mxu0 0
        %3363 = vmatpush1.bf16.msra.mxu0 0
        %3364 = vmatprep.subr.bf16.mxu0 0
        %3365 = vmatpush1.bf16.msra.mxu0 0
        %3366 = vmatprep.subr.bf16.mxu0 0
        %3367 = vmatpush1.bf16.msra.mxu0 %v3350
        %3368 = vmatprep.subr.bf16.mxu0 0
        %3369 = vmatpush2.bf16.msra.mxu0 0
        %3370 = vmatprep.subr.bf16.mxu0 0
        %3371 = vmatpush2.bf16.msra.mxu0 0
        %3372 = vmatprep.subr.bf16.mxu0 0
        %3373 = vmatpush2.bf16.msra.mxu0 0
        %3374 = vmatprep.subr.bf16.mxu0 0
        %3375 = vmatpush2.bf16.msra.mxu0 0
        %3376 = vmatprep.subr.bf16.mxu0 0
        %3377 = vmatpush2.bf16.msra.mxu0 0
        %3378 = vmatprep.subr.bf16.mxu0 0
        %3379 = vmatpush2.bf16.msra.mxu0 0
        %3380 = vmatprep.subr.bf16.mxu0 0
        %3381 = vmatpush2.bf16.msra.mxu0 0
        %3382 = vmatprep.subr.bf16.mxu0 0
        %3383 = vmatpush2.bf16.msra.mxu0 0
        %3384 = vmatprep.mubr.bf16.mxu0 0
        %3385 = vmatmul.mubr.bf16.gmra.mxu0 %v3347
        %v3386 = vpop.f32.mrf.mxu0
        %v3387 = vadd.f32 0.0, %v3386
        %v3388 = vpop.f32.mrf.mxu0
        %v3389 = vpop.f32.mrf.mxu0
        %v3390 = vpop.f32.mrf.mxu0
        %3391 = vdwg.mxu0
        %v3392 = vmul.f32 %v3387, %v3295
        %v3393 = vadd.f32 %v3228, %v3392
        %3394 = vrot.lane.b32.xlu0 %v2899, 104
        %v3395 = vpop.permute.xlu0 %3394
        %3396 = vrot.lane.b32.xlu0 %v2899, 72
        %v3397 = vpop.permute.xlu0 %3396
        %v3399 = vsel %vm2757, %v3395, 0
        %v3402 = vsel %vm2757, %v3397, 0
        %3404 = vmatprep.subr.bf16.mxu0 0
        %3405 = vmatpush1.bf16.xpose.msra.mxu0 0
        %3406 = vmatprep.subr.bf16.mxu0 0
        %3407 = vmatpush1.bf16.xpose.msra.mxu0 0
        %3408 = vmatprep.subr.bf16.mxu0 0
        %3409 = vmatpush1.bf16.xpose.msra.mxu0 0
        %3410 = vmatprep.subr.bf16.mxu0 0
        %3411 = vmatpush1.bf16.xpose.msra.mxu0 0
        %3412 = vmatprep.subr.bf16.mxu0 0
        %3413 = vmatpush1.bf16.xpose.msra.mxu0 0
        %3414 = vmatprep.subr.bf16.mxu0 0
        %3415 = vmatpush1.bf16.xpose.msra.mxu0 0
        %3416 = vmatprep.subr.bf16.mxu0 0
        %3417 = vmatpush1.bf16.xpose.msra.mxu0 0
        %3418 = vmatprep.subr.bf16.mxu0 0
        %3419 = vmatpush1.bf16.xpose.msra.mxu0 %v3402
        %3420 = vmatprep.subr.bf16.mxu0 0
        %3421 = vmatpush2.bf16.xpose.msra.mxu0 0
        %3422 = vmatprep.subr.bf16.mxu0 0
        %3423 = vmatpush2.bf16.xpose.msra.mxu0 0
        %3424 = vmatprep.subr.bf16.mxu0 0
        %3425 = vmatpush2.bf16.xpose.msra.mxu0 0
        %3426 = vmatprep.subr.bf16.mxu0 0
        %3427 = vmatpush2.bf16.xpose.msra.mxu0 0
        %3428 = vmatprep.subr.bf16.mxu0 0
        %3429 = vmatpush2.bf16.xpose.msra.mxu0 0
        %3430 = vmatprep.subr.bf16.mxu0 0
        %3431 = vmatpush2.bf16.xpose.msra.mxu0 0
        %3432 = vmatprep.subr.bf16.mxu0 0
        %3433 = vmatpush2.bf16.xpose.msra.mxu0 0
        %3434 = vmatprep.subr.bf16.mxu0 0
        %3435 = vmatpush2.bf16.xpose.msra.mxu0 0
        %3436 = vmatprep.mubr.bf16.mxu0 0
        %3437 = vmatmul.mubr.bf16.gmra.mxu0 %v3399
        %v3438 = vpop.f32.mrf.mxu0
        %v3439 = vadd.f32 0.0, %v3438
        %v3440 = vpop.f32.mrf.mxu0
        %v3441 = vpop.f32.mrf.mxu0
        %v3442 = vpop.f32.mrf.mxu0
        %3443 = vdwg.mxu0
        %v3444 = vmul.f32 %v3439, 0.35355338
        %s3445 = sadd.s32 %s2950, 3
        %s3446 = smul.u32 %s3445, 8
        %s3447 = scalar_lea.vmem [#allocation3], %s3446
        %v3448 = vld [vmem:[%s3447] sm:$0xff]
        %v3449 = vadd.f32 %v3444, %v3448
        %v3450 = vsel %vm2757, %v3449, -inf
        %3451 = vmax.xlane.f32.xlu0 %v3450
        %v3452 = vpop.xlane.xlu0 %3451
        %v3453 = vsub.f32 %v3449, %v3452
        %v3454 = vmul.f32 %v3453, 1.442695
        %v3455 = vpow.pop %v3454
        %v3456 = vsel %vm2757, %v3455, 0.0
        %3457 = vadd.xlane.f32.xlu0 %v3456
        %v3458 = vpop.xlane.xlu0 %3457
        %v3459 = vrcp.pop %v3458
        %v3460 = vmul.f32 1.0, %v3459
        %3461 = vrot.lane.b32.xlu0 %v2899, 40
        %v3462 = vpop.permute.xlu0 %3461
        %v3464 = vsel %vm2757, %v3462, 0
        %v3467 = vsel %vm2761, %v2898, 0
        %3469 = vmatprep.subr.bf16.mxu0 0
        %3470 = vmatpush1.bf16.msra.mxu0 0
        %3471 = vmatprep.subr.bf16.mxu0 0
        %3472 = vmatpush1.bf16.msra.mxu0 0
        %3473 = vmatprep.subr.bf16.mxu0 0
        %3474 = vmatpush1.bf16.msra.mxu0 0
        %3475 = vmatprep.subr.bf16.mxu0 0
        %3476 = vmatpush1.bf16.msra.mxu0 0
        %3477 = vmatprep.subr.bf16.mxu0 0
        %3478 = vmatpush1.bf16.msra.mxu0 0
        %3479 = vmatprep.subr.bf16.mxu0 0
        %3480 = vmatpush1.bf16.msra.mxu0 0
        %3481 = vmatprep.subr.bf16.mxu0 0
        %3482 = vmatpush1.bf16.msra.mxu0 0
        %3483 = vmatprep.subr.bf16.mxu0 0
        %3484 = vmatpush1.bf16.msra.mxu0 %v3467
        %3485 = vmatprep.subr.bf16.mxu0 0
        %3486 = vmatpush2.bf16.msra.mxu0 0
        %3487 = vmatprep.subr.bf16.mxu0 0
        %3488 = vmatpush2.bf16.msra.mxu0 0
        %3489 = vmatprep.subr.bf16.mxu0 0
        %3490 = vmatpush2.bf16.msra.mxu0 0
        %3491 = vmatprep.subr.bf16.mxu0 0
        %3492 = vmatpush2.bf16.msra.mxu0 0
        %3493 = vmatprep.subr.bf16.mxu0 0
        %3494 = vmatpush2.bf16.msra.mxu0 0
        %3495 = vmatprep.subr.bf16.mxu0 0
        %3496 = vmatpush2.bf16.msra.mxu0 0
        %3497 = vmatprep.subr.bf16.mxu0 0
        %3498 = vmatpush2.bf16.msra.mxu0 0
        %3499 = vmatprep.subr.bf16.mxu0 0
        %3500 = vmatpush2.bf16.msra.mxu0 0
        %3501 = vmatprep.mubr.bf16.mxu0 0
        %3502 = vmatmul.mubr.bf16.gmra.mxu0 %v3464
        %v3503 = vpop.f32.mrf.mxu0
        %v3504 = vadd.f32 0.0, %v3503
        %v3505 = vpop.f32.mrf.mxu0
        %v3506 = vpop.f32.mrf.mxu0
        %v3507 = vpop.f32.mrf.mxu0
        %3508 = vdwg.mxu0
        %v3509 = vpack.c.bf16 %v3504, %v3504
        %v3510 = vpack.c.bf16 %v3455, %v3455
        %v3512 = vsel %vm2757, %v3510, 0
        %v3515 = vsel %vm2761, %v3509, 0
        %3517 = vmatprep.subr.bf16.mxu0 0
        %3518 = vmatpush1.bf16.msra.mxu0 0
        %3519 = vmatprep.subr.bf16.mxu0 0
        %3520 = vmatpush1.bf16.msra.mxu0 0
        %3521 = vmatprep.subr.bf16.mxu0 0
        %3522 = vmatpush1.bf16.msra.mxu0 0
        %3523 = vmatprep.subr.bf16.mxu0 0
        %3524 = vmatpush1.bf16.msra.mxu0 0
        %3525 = vmatprep.subr.bf16.mxu0 0
        %3526 = vmatpush1.bf16.msra.mxu0 0
        %3527 = vmatprep.subr.bf16.mxu0 0
        %3528 = vmatpush1.bf16.msra.mxu0 0
        %3529 = vmatprep.subr.bf16.mxu0 0
        %3530 = vmatpush1.bf16.msra.mxu0 0
        %3531 = vmatprep.subr.bf16.mxu0 0
        %3532 = vmatpush1.bf16.msra.mxu0 %v3515
        %3533 = vmatprep.subr.bf16.mxu0 0
        %3534 = vmatpush2.bf16.msra.mxu0 0
        %3535 = vmatprep.subr.bf16.mxu0 0
        %3536 = vmatpush2.bf16.msra.mxu0 0
        %3537 = vmatprep.subr.bf16.mxu0 0
        %3538 = vmatpush2.bf16.msra.mxu0 0
        %3539 = vmatprep.subr.bf16.mxu0 0
        %3540 = vmatpush2.bf16.msra.mxu0 0
        %3541 = vmatprep.subr.bf16.mxu0 0
        %3542 = vmatpush2.bf16.msra.mxu0 0
        %3543 = vmatprep.subr.bf16.mxu0 0
        %3544 = vmatpush2.bf16.msra.mxu0 0
        %3545 = vmatprep.subr.bf16.mxu0 0
        %3546 = vmatpush2.bf16.msra.mxu0 0
        %3547 = vmatprep.subr.bf16.mxu0 0
        %3548 = vmatpush2.bf16.msra.mxu0 0
        %3549 = vmatprep.mubr.bf16.mxu0 0
        %3550 = vmatmul.mubr.bf16.gmra.mxu0 %v3512
        %v3551 = vpop.f32.mrf.mxu0
        %v3552 = vadd.f32 0.0, %v3551
        %v3553 = vpop.f32.mrf.mxu0
        %v3554 = vpop.f32.mrf.mxu0
        %v3555 = vpop.f32.mrf.mxu0
        %3556 = vdwg.mxu0
        %v3557 = vmul.f32 %v3552, %v3460
        %v3558 = vadd.f32 %v3393, %v3557
        %v3559 = vadd.f32 %v2806, %v3558
        %v3560 = vld [vmem:[%s929] sm:$0x1]
        %v3562 = vlaneseq
        %v3563 = vshrl.u32 %v3562, 7
        %v3564 = vsub.s32 0, %v3563
        %v3565 = vrot.slane %v3560, %v3564
        %v3567 = vadd.f32 %v3559, %v3565
        %v3568 = vsel %vm2807, %v3567, 0.0
        %3569 = vadd.xlane.f32.xlu0 %v3568
        %v3570 = vpop.xlane.xlu0 %3569
        %v3571 = vmul.f32 %v3570, %v2811
        %v3572 = vsub.f32 %v3567, %v3571
        %v3573 = vmul.f32 %v3572, %v3572
        %v3574 = vsel %vm2807, %v3573, 0.0
        %3575 = vadd.xlane.f32.xlu0 %v3574
        %v3576 = vpop.xlane.xlu0 %3575
        %v3577 = vmul.f32 %v3576, %v2811
        %v3578 = vadd.f32 %v3577, 1e-05
        %v3579 = vrsqrt.pop %v3578
        %v3580 = vmul.f32 %v3572, %v3579
        %3582 = vrot.lane.b32.xlu0 %v2805, 64
        %v3583 = vpop.permute.xlu0 %3582
        %v3585 = vmul.f32 %v3580, %v3583
        %3586 = vrot.lane.b32.xlu0 %v2800, 32
        %v3587 = vpop.permute.xlu0 %3586
        %v3589 = vadd.f32 %v3585, %v3587
        %v3590 = vld [vmem:[%s934] sm:$0xf]
        %v3591 = vld [vmem:[%s934 + $0x4] sm:$0xf]
        %v3592 = vld [vmem:[%s934 + $0x8] sm:$0xf]
        %v3593 = vld [vmem:[%s934 + $0xc] sm:$0xf]
        %v3594 = vpack.c.bf16 %v3589, %v3589
        %v3595 = vld [vmem:[%s937] sm:$0x1]
        %v3597 = vlaneseq
        %v3598 = vshrl.u32 %v3597, 7
        %v3599 = vsub.s32 0, %v3598
        %v3600 = vrot.slane %v3595, %v3599
        %v3606 = vunpack.c.l.b16 %v3590
        %v3607 = vunpack.c.l.b16 %v3591
        %v3608 = vunpack.c.l.b16 %v3592
        %v3609 = vunpack.c.l.b16 %v3593
        %v3610 = vpack.c.b16 %v3607, %v3606
        %v3611 = vpack.c.b16 %v3609, %v3608
        %v3615 = vsel %vm2807, %v3594, 0
        %3617 = vmatprep.subr.bf16.mxu0 0
        %3618 = vmatpush1.bf16.msra.mxu0 0
        %3619 = vmatprep.subr.bf16.mxu0 0
        %3620 = vmatpush1.bf16.msra.mxu0 0
        %3621 = vmatprep.subr.bf16.mxu0 0
        %3622 = vmatpush1.bf16.msra.mxu0 0
        %3623 = vmatprep.subr.bf16.mxu0 0
        %3624 = vmatpush1.bf16.msra.mxu0 0
        %3625 = vmatprep.subr.bf16.mxu0 0
        %3626 = vmatpush1.bf16.msra.mxu0 0
        %3627 = vmatprep.subr.bf16.mxu0 0
        %3628 = vmatpush1.bf16.msra.mxu0 0
        %3629 = vmatprep.subr.bf16.mxu0 0
        %3630 = vmatpush1.bf16.msra.mxu0 %v3611
        %3631 = vmatprep.subr.bf16.mxu0 0
        %3632 = vmatpush1.bf16.msra.mxu0 %v3610
        %3633 = vmatprep.subr.bf16.mxu0 0
        %3634 = vmatpush2.bf16.msra.mxu0 0
        %3635 = vmatprep.subr.bf16.mxu0 0
        %3636 = vmatpush2.bf16.msra.mxu0 0
        %3637 = vmatprep.subr.bf16.mxu0 0
        %3638 = vmatpush2.bf16.msra.mxu0 0
        %3639 = vmatprep.subr.bf16.mxu0 0
        %3640 = vmatpush2.bf16.msra.mxu0 0
        %3641 = vmatprep.subr.bf16.mxu0 0
        %3642 = vmatpush2.bf16.msra.mxu0 0
        %3643 = vmatprep.subr.bf16.mxu0 0
        %3644 = vmatpush2.bf16.msra.mxu0 0
        %3645 = vmatprep.subr.bf16.mxu0 0
        %3646 = vmatpush2.bf16.msra.mxu0 0
        %3647 = vmatprep.subr.bf16.mxu0 0
        %3648 = vmatpush2.bf16.msra.mxu0 0
        %3649 = vmatprep.mubr.bf16.mxu0 0
        %3650 = vmatmul.mubr.bf16.gmra.mxu0 %v3615
        %v3651 = vpop.f32.mrf.mxu0
        %v3652 = vadd.f32 %v3600, %v3651
        %v3653 = vpop.f32.mrf.mxu0
        %v3654 = vpop.f32.mrf.mxu0
        %v3655 = vpop.f32.mrf.mxu0
        %3656 = vdwg.mxu0
        %v3657 = vmax.f32 %v3652, 0.0
        %v3658 = vld [vmem:[%s942] sm:$0xf]
        %v3659 = vld [vmem:[%s942 + $0x4] sm:$0xf]
        %v3660 = vld [vmem:[%s942 + $0x8] sm:$0xf]
        %v3661 = vld [vmem:[%s942 + $0xc] sm:$0xf]
        %v3662 = vld [vmem:[%s942 + $0x10] sm:$0xf]
        %v3663 = vld [vmem:[%s942 + $0x14] sm:$0xf]
        %v3664 = vld [vmem:[%s942 + $0x18] sm:$0xf]
        %v3665 = vld [vmem:[%s942 + $0x1c] sm:$0xf]
        %v3666 = vld [vmem:[%s942 + $0x20] sm:$0xf]
        %v3667 = vld [vmem:[%s942 + $0x24] sm:$0xf]
        %v3668 = vld [vmem:[%s942 + $0x28] sm:$0xf]
        %v3669 = vld [vmem:[%s942 + $0x2c] sm:$0xf]
        %v3670 = vld [vmem:[%s942 + $0x30] sm:$0xf]
        %v3671 = vld [vmem:[%s942 + $0x34] sm:$0xf]
        %v3672 = vld [vmem:[%s942 + $0x38] sm:$0xf]
        %v3673 = vld [vmem:[%s942 + $0x3c] sm:$0xf]
        %v3674 = vpack.c.bf16 %v3657, %v3657
        %v3691 = vunpack.c.l.b16 %v3658
        %v3692 = vunpack.c.l.b16 %v3659
        %v3693 = vunpack.c.l.b16 %v3660
        %v3694 = vunpack.c.l.b16 %v3661
        %v3695 = vunpack.c.l.b16 %v3662
        %v3696 = vunpack.c.l.b16 %v3663
        %v3697 = vunpack.c.l.b16 %v3664
        %v3698 = vunpack.c.l.b16 %v3665
        %v3699 = vunpack.c.l.b16 %v3666
        %v3700 = vunpack.c.l.b16 %v3667
        %v3701 = vunpack.c.l.b16 %v3668
        %v3702 = vunpack.c.l.b16 %v3669
        %v3703 = vunpack.c.l.b16 %v3670
        %v3704 = vunpack.c.l.b16 %v3671
        %v3705 = vunpack.c.l.b16 %v3672
        %v3706 = vunpack.c.l.b16 %v3673
        %v3707 = vpack.c.b16 %v3692, %v3691
        %v3708 = vpack.c.b16 %v3694, %v3693
        %v3709 = vpack.c.b16 %v3696, %v3695
        %v3710 = vpack.c.b16 %v3698, %v3697
        %v3711 = vpack.c.b16 %v3700, %v3699
        %v3712 = vpack.c.b16 %v3702, %v3701
        %v3713 = vpack.c.b16 %v3704, %v3703
        %v3714 = vpack.c.b16 %v3706, %v3705
        %3723 = vmatprep.subr.bf16.mxu0 0
        %3724 = vmatpush1.bf16.msra.mxu0 %v3714
        %3725 = vmatprep.subr.bf16.mxu0 0
        %3726 = vmatpush1.bf16.msra.mxu0 %v3713
        %3727 = vmatprep.subr.bf16.mxu0 0
        %3728 = vmatpush1.bf16.msra.mxu0 %v3712
        %3729 = vmatprep.subr.bf16.mxu0 0
        %3730 = vmatpush1.bf16.msra.mxu0 %v3711
        %3731 = vmatprep.subr.bf16.mxu0 0
        %3732 = vmatpush1.bf16.msra.mxu0 %v3710
        %3733 = vmatprep.subr.bf16.mxu0 0
        %3734 = vmatpush1.bf16.msra.mxu0 %v3709
        %3735 = vmatprep.subr.bf16.mxu0 0
        %3736 = vmatpush1.bf16.msra.mxu0 %v3708
        %3737 = vmatprep.subr.bf16.mxu0 0
        %3738 = vmatpush1.bf16.msra.mxu0 %v3707
        %3739 = vmatprep.subr.bf16.mxu0 0
        %3740 = vmatpush2.bf16.msra.mxu0 0
        %3741 = vmatprep.subr.bf16.mxu0 0
        %3742 = vmatpush2.bf16.msra.mxu0 0
        %3743 = vmatprep.subr.bf16.mxu0 0
        %3744 = vmatpush2.bf16.msra.mxu0 0
        %3745 = vmatprep.subr.bf16.mxu0 0
        %3746 = vmatpush2.bf16.msra.mxu0 0
        %3747 = vmatprep.subr.bf16.mxu0 0
        %3748 = vmatpush2.bf16.msra.mxu0 0
        %3749 = vmatprep.subr.bf16.mxu0 0
        %3750 = vmatpush2.bf16.msra.mxu0 0
        %3751 = vmatprep.subr.bf16.mxu0 0
        %3752 = vmatpush2.bf16.msra.mxu0 0
        %3753 = vmatprep.subr.bf16.mxu0 0
        %3754 = vmatpush2.bf16.msra.mxu0 0
        %3755 = vmatprep.mubr.bf16.mxu0 0
        %3756 = vmatmul.mubr.bf16.gmra.mxu0 %v3674
        %v3757 = vpop.f32.mrf.mxu0
        %v3758 = vadd.f32 0.0, %v3757
        %v3759 = vpop.f32.mrf.mxu0
        %v3760 = vpop.f32.mrf.mxu0
        %v3761 = vpop.f32.mrf.mxu0
        %3762 = vdwg.mxu0
        %v3763 = vadd.f32 %v3567, %v3758
        %v3764 = vld [vmem:[%s945] sm:$0x1]
        %v3766 = vlaneseq
        %v3767 = vshrl.u32 %v3766, 7
        %v3768 = vsub.s32 0, %v3767
        %v3769 = vrot.slane %v3764, %v3768
        %v3771 = vadd.f32 %v3763, %v3769
        %3772 = vst.msk [vmem:[#allocation2] sm:$0xff] %vm2807, %v3771
        %p3773 = scmp.eq.s32.totalorder %s43, 1
        // Predicated region
        $region121: #{_lambda_.1} parent=115 // pred_check
          %p3774 = pneg %p3773
        $region122: #{_lambda_.1} parent=115 // pred_check_branch
          %3776 = sbr.rel (%p3774) target = $region124
        $region123: #{_lambda_.1} parent=115 // pred_region
          %v3777 = vld [vmem:[%s20] sm:$0xf]
          %v3778 = vld [vmem:[%s20 + $0x4] sm:$0xf]
          %v3779 = vld [vmem:[%s20 + $0x8] sm:$0xf]
          %v3780 = vld [vmem:[%s20 + $0xc] sm:$0xf]
          %v3781 = vpack.c.bf16 %v3771, %v3771
          %v3782 = vld [vmem:[%s21] sm:$0x1]
          %v3784 = vlaneseq
          %v3785 = vshrl.u32 %v3784, 7
          %v3786 = vsub.s32 0, %v3785
          %v3787 = vrot.slane %v3782, %v3786
          %v3793 = vunpack.c.l.b16 %v3777
          %v3794 = vunpack.c.l.b16 %v3778
          %v3795 = vunpack.c.l.b16 %v3779
          %v3796 = vunpack.c.l.b16 %v3780
          %v3797 = vpack.c.b16 %v3794, %v3793
          %v3798 = vpack.c.b16 %v3796, %v3795
          %v3802 = vsel %vm2807, %v3781, 0
          %3804 = vmatprep.subr.bf16.mxu0 0
          %3805 = vmatpush1.bf16.msra.mxu0 0
          %3806 = vmatprep.subr.bf16.mxu0 0
          %3807 = vmatpush1.bf16.msra.mxu0 0
          %3808 = vmatprep.subr.bf16.mxu0 0
          %3809 = vmatpush1.bf16.msra.mxu0 0
          %3810 = vmatprep.subr.bf16.mxu0 0
          %3811 = vmatpush1.bf16.msra.mxu0 0
          %3812 = vmatprep.subr.bf16.mxu0 0
          %3813 = vmatpush1.bf16.msra.mxu0 0
          %3814 = vmatprep.subr.bf16.mxu0 0
          %3815 = vmatpush1.bf16.msra.mxu0 0
          %3816 = vmatprep.subr.bf16.mxu0 0
          %3817 = vmatpush1.bf16.msra.mxu0 %v3798
          %3818 = vmatprep.subr.bf16.mxu0 0
          %3819 = vmatpush1.bf16.msra.mxu0 %v3797
          %3820 = vmatprep.subr.bf16.mxu0 0
          %3821 = vmatpush2.bf16.msra.mxu0 0
          %3822 = vmatprep.subr.bf16.mxu0 0
          %3823 = vmatpush2.bf16.msra.mxu0 0
          %3824 = vmatprep.subr.bf16.mxu0 0
          %3825 = vmatpush2.bf16.msra.mxu0 0
          %3826 = vmatprep.subr.bf16.mxu0 0
          %3827 = vmatpush2.bf16.msra.mxu0 0
          %3828 = vmatprep.subr.bf16.mxu0 0
          %3829 = vmatpush2.bf16.msra.mxu0 0
          %3830 = vmatprep.subr.bf16.mxu0 0
          %3831 = vmatpush2.bf16.msra.mxu0 0
          %3832 = vmatprep.subr.bf16.mxu0 0
          %3833 = vmatpush2.bf16.msra.mxu0 0
          %3834 = vmatprep.subr.bf16.mxu0 0
          %3835 = vmatpush2.bf16.msra.mxu0 0
          %3836 = vmatprep.mubr.bf16.mxu0 0
          %3837 = vmatmul.mubr.bf16.gmra.mxu0 %v3802
          %v3838 = vpop.f32.mrf.mxu0
          %v3839 = vadd.f32 %v3787, %v3838
          %v3840 = vpop.f32.mrf.mxu0
          %v3841 = vpop.f32.mrf.mxu0
          %v3842 = vpop.f32.mrf.mxu0
          %3843 = vdwg.mxu0
          %v3844 = vmax.f32 %v3839, 0.0
          %v3845 = vld [vmem:[%s22] sm:$0xf]
          %v3846 = vld [vmem:[%s22 + $0x4] sm:$0xf]
          %v3847 = vld [vmem:[%s22 + $0x8] sm:$0xf]
          %v3848 = vld [vmem:[%s22 + $0xc] sm:$0xf]
          %v3849 = vpack.c.bf16 %v3844, %v3844
          %v3850 = vld [vmem:[%s23] sm:$0x1]
          %v3852 = vlaneseq
          %v3853 = vshrl.u32 %v3852, 7
          %v3854 = vsub.s32 0, %v3853
          %v3855 = vrot.slane %v3850, %v3854
          %v3861 = vunpack.c.l.b16 %v3845
          %v3862 = vunpack.c.l.b16 %v3846
          %v3863 = vunpack.c.l.b16 %v3847
          %v3864 = vunpack.c.l.b16 %v3848
          %v3865 = vpack.c.b16 %v3862, %v3861
          %v3866 = vpack.c.b16 %v3864, %v3863
          %v3870 = vsel %vm2807, %v3849, 0
          %3872 = vmatprep.subr.bf16.mxu0 0
          %3873 = vmatpush1.bf16.msra.mxu0 0
          %3874 = vmatprep.subr.bf16.mxu0 0
          %3875 = vmatpush1.bf16.msra.mxu0 0
          %3876 = vmatprep.subr.bf16.mxu0 0
          %3877 = vmatpush1.bf16.msra.mxu0 0
          %3878 = vmatprep.subr.bf16.mxu0 0
          %3879 = vmatpush1.bf16.msra.mxu0 0
          %3880 = vmatprep.subr.bf16.mxu0 0
          %3881 = vmatpush1.bf16.msra.mxu0 0
          %3882 = vmatprep.subr.bf16.mxu0 0
          %3883 = vmatpush1.bf16.msra.mxu0 0
          %3884 = vmatprep.subr.bf16.mxu0 0
          %3885 = vmatpush1.bf16.msra.mxu0 %v3866
          %3886 = vmatprep.subr.bf16.mxu0 0
          %3887 = vmatpush1.bf16.msra.mxu0 %v3865
          %3888 = vmatprep.subr.bf16.mxu0 0
          %3889 = vmatpush2.bf16.msra.mxu0 0
          %3890 = vmatprep.subr.bf16.mxu0 0
          %3891 = vmatpush2.bf16.msra.mxu0 0
          %3892 = vmatprep.subr.bf16.mxu0 0
          %3893 = vmatpush2.bf16.msra.mxu0 0
          %3894 = vmatprep.subr.bf16.mxu0 0
          %3895 = vmatpush2.bf16.msra.mxu0 0
          %3896 = vmatprep.subr.bf16.mxu0 0
          %3897 = vmatpush2.bf16.msra.mxu0 0
          %3898 = vmatprep.subr.bf16.mxu0 0
          %3899 = vmatpush2.bf16.msra.mxu0 0
          %3900 = vmatprep.subr.bf16.mxu0 0
          %3901 = vmatpush2.bf16.msra.mxu0 0
          %3902 = vmatprep.subr.bf16.mxu0 0
          %3903 = vmatpush2.bf16.msra.mxu0 0
          %3904 = vmatprep.mubr.bf16.mxu0 0
          %3905 = vmatmul.mubr.bf16.gmra.mxu0 %v3870
          %v3906 = vpop.f32.mrf.mxu0
          %v3907 = vadd.f32 %v3855, %v3906
          %v3908 = vpop.f32.mrf.mxu0
          %v3909 = vpop.f32.mrf.mxu0
          %v3910 = vpop.f32.mrf.mxu0
          %3911 = vdwg.mxu0
          %vm3912 = vcmask 130048
          %3913 = vst.msk [vmem:[%s894] sm:$0xff] %vm3912, %v3907
        $region124: #{_lambda_.1} parent=115 // pred_fallthru
          _
        %s3914 = sand.u32 %s627, 1
        %s3915 = scalar_lea.sflag [#allocation5], %s3914
        %s3916 = sand.u32 %s627, 1
        %s3917 = smul.addr %s3916, 8
        %s3918 = scalar_lea.vmem [#allocation4], %s3917
        // Predicated region
        $region125: #{_lambda_.1} parent=115 // pred_check
          %p3919 = pneg %p637
        $region126: #{_lambda_.1} parent=115 // pred_check_branch
          %3921 = sbr.rel (%p3919) target = $region128
        $region127: #{_lambda_.1} parent=115 // pred_region
          %s3923 = ssub.s32 128, 128
          %3924 = vsyncadd %s3915, %s3923
          %s3925 = smul.addr %s42, 128
          %s3926 = scalar_lea.hbm %s24, %s3925
          %s3928 = sshll.u32 %s3918, 4
          %s3929 = int_to_ptr.vmem [resolvable:$true] %s3928
          %3931 = dma.vmem_to_hbm [thread:$0]  %s3929, 128, %s3926, %s3915
        $region128: #{_lambda_.1} parent=115 // pred_fallthru
          _
      $region116: #{_lambda_.1} parent=5 // pred_fallthru
        _
      %p3932 = scmp.le.s32.totalorder 2, %s33
      // Predicated region
      $region129: #{_lambda_.1} parent=5 // pred_check
        %p3933 = pneg %p3932
      $region130: #{_lambda_.1} parent=5 // pred_check_branch
        %3935 = sbr.rel (%p3933) target = $region132
      $region131: #{_lambda_.1} parent=5 // pred_region
        %s3936 = ssub.s32 %s33, 2
        // Predicated region
        $region133: #{_lambda_.1} parent=131 // pred_check
          %p3937 = pneg %p643
        $region134: #{_lambda_.1} parent=131 // pred_check_branch
          %3939 = sbr.rel (%p3937) target = $region136
        $region135: #{_lambda_.1} parent=131 // pred_region
          %s3940 = sand.u32 %s628, 1
          %s3941 = scalar_lea.sflag [#allocation5], %s3940
          %s3942 = sand.u32 %s628, 1
          %s3943 = smul.addr %s3942, 8
          %s3944 = scalar_lea.vmem [#allocation4], %s3943
          %3945 = dma.done %s3941, 128
        $region136: #{_lambda_.1} parent=131 // pred_fallthru
          _
      $region132: #{_lambda_.1} parent=5 // pred_fallthru
        _
    $region6: #{_lambda_.1} parent=1 // loop_footer
      %s37 = sadd.s32 1, %s33
    $region7: #{_lambda_.1} parent=1 // loop_footer_branch
      %32 = sbr.rel target = $region3
    $region8: #{_lambda_.1} parent=1 // loop_exit
      _
    %3946 = vsyncpa [#allocation5], 1
    %s3947 = scalar_lea.sflag [#allocation5], 1
    %3948 = vsyncpa %s3947, 1

</llo_original>
